<compile_context>
chip_gen: v7x
topology: tpu7x:2x2x1
jax: 0.10.0
libtpu: 0.0.40
codegen_flags: <defaults>
</compile_context>

<pallas_src>
import functools

import jax
import jax.numpy as jnp
import numpy as np
from jax import lax
from jax.experimental import pallas as pl
from jax.experimental.pallas import tpu as pltpu


_VMEM_LIMIT = 48 << 20  # explicit budget; < v7x's 64 MiB physical, > v5e's 16 MiB default


def _pick_point_tile(n_points):
    """Point-axis tile: big tiles amortize the ~0.35us per-grid-step overhead.

    Cost model: padded rows (MXU work is ~linear in rows) + steps * ~150 row-equivalents
    of per-step overhead (0.35us vs ~2.4us for a 1024-row tile).  N is padded up to a
    multiple of the chosen tile in the wrapper, so no full-N fallback is ever needed.
    """
    best_t, best_cost = 128, None
    for t in (4096, 2048, 1024, 512, 256, 128):
        steps = -(-n_points // t)          # cdiv
        padded = steps * t
        cost = padded + steps * 150
        if best_cost is None or cost < best_cost:
            best_cost, best_t = cost, t
    return best_t


def _use_vpu_conv1(k):
    """VPU broadcast-FMA conv1 only pays off on v5e (no spare MXU, VPU filler is free)."""
    if k > 16:
        return False
    try:
        kind = jax.devices()[0].device_kind.lower()
    except Exception:
        return False
    return ("v5 lite" in kind) or ("v5e" in kind) or ("v5litepod" in kind)


# ------------------------------- kernels --------------------------------------
def _pool_kernel(points_ref, w1_ref, b1_ref, w2_ref, b2_ref, w3_ref, b3_ref,
                 pooled_ref, acc_ref, *, vpu_conv1, tile_n, n_valid, need_mask):
    """Per-point MLP (conv1/2/3 + folded BN) + running global max over point tiles."""
    n = pl.program_id(1)

    @pl.when(n == 0)
    def _():
        acc_ref[...] = jnp.full_like(acc_ref, -jnp.inf)

    pts = points_ref[0]                                    # (tN, k)  bf16 (MXU) / f32 (VPU)
    k = pts.shape[1]

    # conv1 (+bn1) + ReLU -> (tN, 128)
    if vpu_conv1:
        # v5e only: k broadcast-FMAs on the VPU instead of a near-empty MXU contraction.
        w1 = w1_ref[...]                                   # (k, 128) float32
        h = b1_ref[...] + pts[:, 0:1] * w1[0:1, :]
        for j in range(1, k):
            h = h + pts[:, j:j + 1] * w1[j:j + 1, :]
    else:
        h = jnp.dot(pts, w1_ref[...], preferred_element_type=jnp.float32) + b1_ref[...]
    h = jnp.maximum(h, 0.0)

    # conv2 (+bn2) + ReLU -> (tN, 256)   (bf16 MXU operands, f32 accum, f32 bias/ReLU)
    h = jnp.dot(h.astype(jnp.bfloat16), w2_ref[...],
                preferred_element_type=jnp.float32) + b2_ref[...]
    h = jnp.maximum(h, 0.0)

    # conv3 (+bn3), no ReLU -> (tN, 1024)
    h = jnp.dot(h.astype(jnp.bfloat16), w3_ref[...],
                preferred_element_type=jnp.float32) + b3_ref[...]

    if need_mask:
        # Padded rows must not win the max (zero-padded points still get biases added).
        row = n * tile_n + lax.broadcasted_iota(jnp.int32, (tile_n, 1), 0)
        h = jnp.where(row < n_valid, h, -jnp.inf)

    # running max over point tiles (cheap per-tile reduce instead of one huge one)
    acc_ref[...] = jnp.maximum(acc_ref[...], jnp.max(h, axis=0, keepdims=True))

    @pl.when(n == pl.num_programs(1) - 1)
    def _():
        pooled_ref[0] = acc_ref[...]


def _head_kernel(pooled_ref, w4_ref, b4_ref, w5_ref, b5_ref, w6_ref, b6_ref, mats_ref):
    """fc1/fc2/fc3 (+folded BN, +eye(k) already folded into b6), batched over all B rows."""
    g = pooled_ref[...]                                    # (B, 1024) float32
    g = jnp.maximum(jnp.dot(g.astype(jnp.bfloat16), w4_ref[...],
                            preferred_element_type=jnp.float32) + b4_ref[...], 0.0)
    g = jnp.maximum(jnp.dot(g.astype(jnp.bfloat16), w5_ref[...],
                            preferred_element_type=jnp.float32) + b5_ref[...], 0.0)
    mats_ref[...] = jnp.dot(g.astype(jnp.bfloat16), w6_ref[...],
                            preferred_element_type=jnp.float32) + b6_ref[...]


def _bmm_kernel(mats_t_ref, points_ref, out_ref):
    """out.T[b] tile = mat[b].T @ points[b].T — lane-dense (k, tN) store (N on lanes)."""
    mat_t = mats_t_ref[0]                                  # (k_out, k_in) bf16
    pts = points_ref[0]                                    # (tN, k_in)    bf16
    # result[o, n] = sum_i mat_t[o, i] * pts[n, i]  ==  (pts @ mat).T   (f32 accumulation)
    out_ref[0] = lax.dot_general(mat_t, pts,
                                 dimension_numbers=(((1,), (1,)), ((), ())),
                                 preferred_element_type=jnp.float32)


# ------------------------------- wrapper ---------------------------------------
def alignment_forward(points, params):
    B, N, k = points.shape
    (w1, b1, w2, b2, w3, b3, w4, b4, w5, b5, w6, b6) = params

    # bf16 MXU operands (halves weight DMA + VMEM); biases stay f32.
    w2b, w3b, w4b, w5b, w6b = (w.astype(jnp.bfloat16) for w in (w2, w3, w4, w5, w6))

    tN = _pick_point_tile(N)
    nN = -(-N // tN)                                       # cdiv
    N_pad = nN * tN
    need_mask = N_pad != N
    vpu_conv1 = _use_vpu_conv1(k)
    w1p = w1 if vpu_conv1 else w1.astype(jnp.bfloat16)     # no per-step in-kernel recast

    # Pad the point axis to a multiple of the tile (bounds VMEM for any N); padded
    # rows are masked to -inf inside the pool kernel and sliced off the bmm output.
    points_p = points if not need_mask else jnp.pad(points, ((0, 0), (0, N_pad - N), (0, 0)))
    points_pb = points_p.astype(jnp.bfloat16)
    pass1_points = points_p if vpu_conv1 else points_pb    # VPU path (v5e) needs f32

    conv_params = (w1p, b1, w2b, b2, w3b, b3)

    def _const_spec(arr):
        # Weights/biases never change across grid steps: single-buffer them.
        return pl.BlockSpec(arr.shape, lambda b, n: (0, 0),
                            pipeline_mode=pl.Buffered(1))

    # ---- pass 1: per-point MLP + global max pool -> (B, 1, 1024) ----
    pooled3 = pl.pallas_call(
        functools.partial(_pool_kernel, vpu_conv1=vpu_conv1, tile_n=tN,
                          n_valid=N, need_mask=need_mask),
        out_shape=jax.ShapeDtypeStruct((B, 1, 1024), jnp.float32),
        grid=(B, nN),
        in_specs=[pl.BlockSpec((1, tN, k), lambda b, n: (b, n, 0))]
                 + [_const_spec(a) for a in conv_params],
        out_specs=pl.BlockSpec((1, 1, 1024), lambda b, n: (b, 0, 0)),
        scratch_shapes=[pltpu.VMEM((1, 1024), jnp.float32)],
        compiler_params=pltpu.CompilerParams(
            dimension_semantics=("parallel", "arbitrary"),
            vmem_limit_bytes=_VMEM_LIMIT),
    )(pass1_points, *conv_params)
    pooled = pooled3.reshape(B, 1024)                      # metadata-only reshape (XLA)

    # ---- pass 2: batched FC head over all B pooled rows -> (B, k*k) ----
    mats_flat = pl.pallas_call(
        _head_kernel,
        out_shape=jax.ShapeDtypeStruct((B, k * k), jnp.float32),
    )(pooled, w4b, b4, w5b, b5, w6b, b6)

    # (B, k*k) -> (B, k, k) -> pre-transposed bf16 matrices; done in XLA, not in a kernel.
    mats_t = mats_flat.reshape(B, k, k).transpose(0, 2, 1).astype(jnp.bfloat16)

    # ---- pass 3: bmm(points, matrix), emitted lane-dense as (B, k, N_pad) ----
    out_t = pl.pallas_call(
        _bmm_kernel,
        out_shape=jax.ShapeDtypeStruct((B, k, N_pad), jnp.float32),
        grid=(B, nN),
        in_specs=[pl.BlockSpec((1, k, k), lambda b, n: (b, 0, 0),
                               pipeline_mode=pl.Buffered(1)),
                  pl.BlockSpec((1, tN, k), lambda b, n: (b, n, 0))],
        out_specs=pl.BlockSpec((1, k, tN), lambda b, n: (b, 0, n)),
        compiler_params=pltpu.CompilerParams(
            dimension_semantics=("parallel", "parallel"),
            vmem_limit_bytes=_VMEM_LIMIT),
    )(mats_t, points_pb)

    if need_mask:
        out_t = out_t[:, :, :N]                            # drop padded tail (zeros)
    return out_t.transpose(0, 2, 1)                        # back to (B, N, k) in XLA


# -------------------------- parameter construction -----------------------------
def init_alignment_params(key, k):
    """Deterministic synthetic params; BN (eval mode) folded into conv/linear. All f32."""
    ks = iter(jax.random.split(key, 40))

    def linear(fan_in, fan_out):
        bound = 1.0 / np.sqrt(fan_in)
        W = jax.random.uniform(next(ks), (fan_in, fan_out), jnp.float32, -bound, bound)
        b = jax.random.uniform(next(ks), (fan_out,), jnp.float32, -bound, bound)
        return W, b

    def bn(c):
        gamma = jax.random.uniform(next(ks), (c,), jnp.float32, 0.5, 1.5)
        beta = 0.1 * jax.random.normal(next(ks), (c,), jnp.float32)
        mean = 0.1 * jax.random.normal(next(ks), (c,), jnp.float32)
        var = jax.random.uniform(next(ks), (c,), jnp.float32, 0.5, 1.5)
        return gamma, beta, mean, var

    def fold(W, b, bn_p, eps=1e-5):
        gamma, beta, mean, var = bn_p
        scale = gamma / jnp.sqrt(var + eps)
        return W * scale[None, :], (b - mean) * scale + beta

    w1, b1 = fold(*linear(k, 128), bn(128))
    w2, b2 = fold(*linear(128, 256), bn(256))
    w3, b3 = fold(*linear(256, 1024), bn(1024))
    w4, b4 = fold(*linear(1024, 512), bn(512))
    w5, b5 = fold(*linear(512, 256), bn(256))
    w6, b6 = linear(256, k * k)
    b6 = b6 + jnp.eye(k, dtype=jnp.float32).reshape(-1)    # fc3.bias += eye(k).view(-1)

    # biases as (1, C) rows for clean broadcasting inside the kernels
    return (w1, b1.reshape(1, -1), w2, b2.reshape(1, -1), w3, b3.reshape(1, -1),
            w4, b4.reshape(1, -1), w5, b5.reshape(1, -1), w6, b6.reshape(1, -1))


# ----------------------------- pure-JAX reference -------------------------------
def alignment_reference(points, params):
    w1, b1, w2, b2, w3, b3, w4, b4, w5, b5, w6, b6 = params
    B, N, k = points.shape
    h = jax.nn.relu(points @ w1 + b1)
    h = jax.nn.relu(h @ w2 + b2)
    h = h @ w3 + b3                       # (B, N, 1024)
    g = jnp.max(h, axis=1)                # (B, 1024)
    g = jax.nn.relu(g @ w4 + b4)
    g = jax.nn.relu(g @ w5 + b5)
    g = g @ w6 + b6                       # (B, k*k)
    mat = g.reshape(B, k, k)
    return jnp.einsum("bnk,bkj->bnj", points, mat)


# ----------------------------------- main ---------------------------------------
if __name__ == "__main__":
    B, N, k = 2, 16, 8                    # B multiple of 2 -> both v7x TensorCores busy
    key = jax.random.PRNGKey(0)
    k_pts, k_par = jax.random.split(key)

    points = jax.random.normal(k_pts, (B, N, k), jnp.float32)
    params = init_alignment_params(k_par, k)

    out = jax.jit(alignment_forward)(points, params)
    out = jax.block_until_ready(out)

    ref = jax.block_until_ready(alignment_reference(points, params))
    assert out.shape == (B, N, k)
    # bf16 MXU operands (f32 accumulation) need a looser tolerance than pure f32.
    np.testing.assert_allclose(np.asarray(out), np.asarray(ref), rtol=2e-2, atol=2e-2)

    print("KERNEL_OK")
</pallas_src>

<mosaic_0001>
module attributes {stable_mosaic.version = 11 : i64} {
  func.func @_pool_kernel(%arg0: i32, %arg1: i32, %arg2: memref<1x128x8xbf16, #tpu.memory_space<vmem>>, %arg3: memref<8x128xbf16, #tpu.memory_space<vmem>>, %arg4: memref<1x128xf32, #tpu.memory_space<vmem>>, %arg5: memref<128x256xbf16, #tpu.memory_space<vmem>>, %arg6: memref<1x256xf32, #tpu.memory_space<vmem>>, %arg7: memref<256x1024xbf16, #tpu.memory_space<vmem>>, %arg8: memref<1x1024xf32, #tpu.memory_space<vmem>>, %arg9: memref<1x1x1024xf32, #tpu.memory_space<vmem>>, %arg10: memref<1x1024xf32, #tpu.memory_space<vmem>>) attributes {dimension_semantics = [#tpu.dimension_semantics<parallel>, #tpu.dimension_semantics<arbitrary>], iteration_bounds = array<i64: 2, 1>, scalar_prefetch = 0 : i64, scratch_operands = 1 : i64, tpu.core_type = #tpu.core_type<tc>, window_params = [{transform_indices = @transform_0, window_bounds = array<i64: 1, 128, 8>}, {pipeline_mode = #tpu.pipeline_mode<synchronous>, transform_indices = @transform_1, window_bounds = array<i64: 8, 128>}, {pipeline_mode = #tpu.pipeline_mode<synchronous>, transform_indices = @transform_2, window_bounds = array<i64: 1, 128>}, {pipeline_mode = #tpu.pipeline_mode<synchronous>, transform_indices = @transform_3, window_bounds = array<i64: 128, 256>}, {pipeline_mode = #tpu.pipeline_mode<synchronous>, transform_indices = @transform_4, window_bounds = array<i64: 1, 256>}, {pipeline_mode = #tpu.pipeline_mode<synchronous>, transform_indices = @transform_5, window_bounds = array<i64: 256, 1024>}, {pipeline_mode = #tpu.pipeline_mode<synchronous>, transform_indices = @transform_6, window_bounds = array<i64: 1, 1024>}, {transform_indices = @transform_7, window_bounds = array<i64: 1, 1, 1024>}]} {
    %c0_i32 = arith.constant 0 : i32
    %0 = arith.cmpi eq, %arg1, %c0_i32 : i32
    %1 = arith.extui %0 : i1 to i32
    %c0_i32_0 = arith.constant 0 : i32
    %2 = arith.cmpi ne, %1, %c0_i32_0 : i32
    scf.if %2 {
      %cst_27 = arith.constant 0xFF800000 : f32
      %44 = vector.broadcast %cst_27 : f32 to vector<1x1024xf32>
      %c0_28 = arith.constant 0 : index
      %c0_29 = arith.constant 0 : index
      %45 = vector.load %arg10[%c0_28, %c0_29] : memref<1x1024xf32, #tpu.memory_space<vmem>>, vector<1x1024xf32>
      tpu.vector_store %arg10[%c0_28, %c0_29], %44 {strides = array<i32>} : memref<1x1024xf32, #tpu.memory_space<vmem>>, vector<1x1024xf32>,
    } else {
    }
    %c0 = arith.constant 0 : index
    %c0_1 = arith.constant 0 : index
    %c0_2 = arith.constant 0 : index
    %3 = vector.load %arg2[%c0, %c0_1, %c0_2] : memref<1x128x8xbf16, #tpu.memory_space<vmem>>, vector<1x128x8xbf16>
    %4 = vector.shape_cast %3 : vector<1x128x8xbf16> to vector<128x8xbf16>
    %c0_3 = arith.constant 0 : index
    %c0_4 = arith.constant 0 : index
    %5 = vector.load %arg3[%c0_3, %c0_4] : memref<8x128xbf16, #tpu.memory_space<vmem>>, vector<8x128xbf16>
    %cst = arith.constant dense<0.000000e+00> : vector<128x128xf32>
    %6 = tpu.matmul %4, %5, %cst {dimension_numbers = #tpu.dot_dimension_numbers<[1], [0], [0], [1], [0, 0, 1, 1], [], []>} : vector<128x8xbf16>, vector<8x128xbf16>, vector<128x128xf32> -> vector<128x128xf32>
    %c0_5 = arith.constant 0 : index
    %c0_6 = arith.constant 0 : index
    %7 = vector.load %arg4[%c0_5, %c0_6] : memref<1x128xf32, #tpu.memory_space<vmem>>, vector<1x128xf32>
    %8 = vector.broadcast %7 : vector<1x128xf32> to vector<128x128xf32>
    %9 = arith.addf %6, %8 : vector<128x128xf32>
    %cst_7 = arith.constant 0.000000e+00 : f32
    %10 = vector.broadcast %cst_7 : f32 to vector<128x128xf32>
    %11 = arith.maximumf %9, %10 : vector<128x128xf32>
    %12 = arith.truncf %11 : vector<128x128xf32> to vector<128x128xbf16>
    %c0_8 = arith.constant 0 : index
    %c0_9 = arith.constant 0 : index
    %13 = vector.load %arg5[%c0_8, %c0_9] : memref<128x256xbf16, #tpu.memory_space<vmem>>, vector<128x256xbf16>
    %cst_10 = arith.constant dense<0.000000e+00> : vector<128x256xf32>
    %14 = tpu.matmul %12, %13, %cst_10 {dimension_numbers = #tpu.dot_dimension_numbers<[1], [0], [0], [1], [0, 0, 1, 1], [], []>} : vector<128x128xbf16>, vector<128x256xbf16>, vector<128x256xf32> -> vector<128x256xf32>
    %c0_11 = arith.constant 0 : index
    %c0_12 = arith.constant 0 : index
    %15 = vector.load %arg6[%c0_11, %c0_12] : memref<1x256xf32, #tpu.memory_space<vmem>>, vector<1x256xf32>
    %16 = vector.broadcast %15 : vector<1x256xf32> to vector<128x256xf32>
    %17 = arith.addf %14, %16 : vector<128x256xf32>
    %cst_13 = arith.constant 0.000000e+00 : f32
    %18 = vector.broadcast %cst_13 : f32 to vector<128x256xf32>
    %19 = arith.maximumf %17, %18 : vector<128x256xf32>
    %20 = arith.truncf %19 : vector<128x256xf32> to vector<128x256xbf16>
    %c0_14 = arith.constant 0 : index
    %c0_15 = arith.constant 0 : index
    %21 = vector.load %arg7[%c0_14, %c0_15] : memref<256x1024xbf16, #tpu.memory_space<vmem>>, vector<256x1024xbf16>
    %cst_16 = arith.constant dense<0.000000e+00> : vector<128x1024xf32>
    %22 = tpu.matmul %20, %21, %cst_16 {dimension_numbers = #tpu.dot_dimension_numbers<[1], [0], [0], [1], [0, 0, 1, 1], [], []>} : vector<128x256xbf16>, vector<256x1024xbf16>, vector<128x1024xf32> -> vector<128x1024xf32>
    %c0_17 = arith.constant 0 : index
    %c0_18 = arith.constant 0 : index
    %23 = vector.load %arg8[%c0_17, %c0_18] : memref<1x1024xf32, #tpu.memory_space<vmem>>, vector<1x1024xf32>
    %24 = vector.broadcast %23 : vector<1x1024xf32> to vector<128x1024xf32>
    %25 = arith.addf %22, %24 : vector<128x1024xf32>
    %c128_i32 = arith.constant 128 : i32
    %26 = arith.muli %arg1, %c128_i32 : i32
    %27 = tpu.iota {dimensions = array<i32: 0>} : vector<128x1xi32>
    %28 = vector.broadcast %26 : i32 to vector<128x1xi32>
    %29 = arith.addi %28, %27 : vector<128x1xi32>
    %c16_i32 = arith.constant 16 : i32
    %30 = vector.broadcast %c16_i32 : i32 to vector<128x1xi32>
    %31 = arith.cmpi slt, %29, %30 : vector<128x1xi32>
    %cst_19 = arith.constant 0xFF800000 : f32
    %32 = vector.shape_cast %31 : vector<128x1xi1> to vector<128x1xi1>
    %33 = vector.broadcast %32 : vector<128x1xi1> to vector<128x1024xi1>
    %34 = vector.broadcast %cst_19 : f32 to vector<128x1024xf32>
    %35 = arith.select %33, %25, %34 : vector<128x1024xi1>, vector<128x1024xf32>
    %c0_20 = arith.constant 0 : index
    %c0_21 = arith.constant 0 : index
    %36 = vector.load %arg10[%c0_20, %c0_21] : memref<1x1024xf32, #tpu.memory_space<vmem>>, vector<1x1024xf32>
    %cst_22 = arith.constant dense<0xFF800000> : vector<1024xf32>
    %37 = vector.multi_reduction <maximumf>, %35, %cst_22 [0] : vector<128x1024xf32> to vector<1024xf32>
    %38 = vector.shape_cast %37 : vector<1024xf32> to vector<1x1024xf32>
    %39 = arith.maximumf %36, %38 : vector<1x1024xf32>
    %c0_23 = arith.constant 0 : index
    %c0_24 = arith.constant 0 : index
    %40 = vector.load %arg10[%c0_23, %c0_24] : memref<1x1024xf32, #tpu.memory_space<vmem>>, vector<1x1024xf32>
    tpu.vector_store %arg10[%c0_23, %c0_24], %39 {strides = array<i32>} : memref<1x1024xf32, #tpu.memory_space<vmem>>, vector<1x1024xf32>,
    %c0_i32_25 = arith.constant 0 : i32
    %41 = arith.cmpi eq, %arg1, %c0_i32_25 : i32
    %42 = arith.extui %41 : i1 to i32
    %c0_i32_26 = arith.constant 0 : i32
    %43 = arith.cmpi ne, %42, %c0_i32_26 : i32
    scf.if %43 {
      %c0_27 = arith.constant 0 : index
      %c0_28 = arith.constant 0 : index
      %44 = vector.load %arg10[%c0_27, %c0_28] : memref<1x1024xf32, #tpu.memory_space<vmem>>, vector<1x1024xf32>
      %c0_29 = arith.constant 0 : index
      %c0_30 = arith.constant 0 : index
      %c0_31 = arith.constant 0 : index
      %45 = vector.load %arg9[%c0_29, %c0_30, %c0_31] : memref<1x1x1024xf32, #tpu.memory_space<vmem>>, vector<1x1x1024xf32>
      %46 = vector.shape_cast %45 : vector<1x1x1024xf32> to vector<1x1024xf32>
      %47 = vector.shape_cast %44 : vector<1x1024xf32> to vector<1x1x1024xf32>
      tpu.vector_store %arg9[%c0_29, %c0_30, %c0_31], %47 {strides = array<i32>} : memref<1x1x1024xf32, #tpu.memory_space<vmem>>, vector<1x1x1024xf32>,
    } else {
    }
    return
  }
  func.func @transform_0(%arg0: i32, %arg1: i32) -> (i32, i32, i32) {
    %c0_i32 = arith.constant 0 : i32
    %c0_i32_0 = arith.constant 0 : i32
    return %arg0, %arg1, %c0_i32 : i32, i32, i32
  }
  func.func @transform_1(%arg0: i32, %arg1: i32) -> (i32, i32) {
    %c0_i32 = arith.constant 0 : i32
    %c0_i32_0 = arith.constant 0 : i32
    %c0_i32_1 = arith.constant 0 : i32
    return %c0_i32, %c0_i32_0 : i32, i32
  }
  func.func @transform_2(%arg0: i32, %arg1: i32) -> (i32, i32) {
    %c0_i32 = arith.constant 0 : i32
    %c0_i32_0 = arith.constant 0 : i32
    %c0_i32_1 = arith.constant 0 : i32
    return %c0_i32, %c0_i32_0 : i32, i32
  }
  func.func @transform_3(%arg0: i32, %arg1: i32) -> (i32, i32) {
    %c0_i32 = arith.constant 0 : i32
    %c0_i32_0 = arith.constant 0 : i32
    %c0_i32_1 = arith.constant 0 : i32
    return %c0_i32, %c0_i32_0 : i32, i32
  }
  func.func @transform_4(%arg0: i32, %arg1: i32) -> (i32, i32) {
    %c0_i32 = arith.constant 0 : i32
    %c0_i32_0 = arith.constant 0 : i32
    %c0_i32_1 = arith.constant 0 : i32
    return %c0_i32, %c0_i32_0 : i32, i32
  }
  func.func @transform_5(%arg0: i32, %arg1: i32) -> (i32, i32) {
    %c0_i32 = arith.constant 0 : i32
    %c0_i32_0 = arith.constant 0 : i32
    %c0_i32_1 = arith.constant 0 : i32
    return %c0_i32, %c0_i32_0 : i32, i32
  }
  func.func @transform_6(%arg0: i32, %arg1: i32) -> (i32, i32) {
    %c0_i32 = arith.constant 0 : i32
    %c0_i32_0 = arith.constant 0 : i32
    %c0_i32_1 = arith.constant 0 : i32
    return %c0_i32, %c0_i32_0 : i32, i32
  }
  func.func @transform_7(%arg0: i32, %arg1: i32) -> (i32, i32, i32) {
    %c0_i32 = arith.constant 0 : i32
    %c0_i32_0 = arith.constant 0 : i32
    %c0_i32_1 = arith.constant 0 : i32
    return %arg0, %c0_i32, %c0_i32_0 : i32, i32, i32
  }
}

module attributes {stable_mosaic.version = 11 : i64} {
  func.func @_head_kernel(%arg0: memref<2x1024xf32, #tpu.memory_space<vmem>>, %arg1: memref<1024x512xbf16, #tpu.memory_space<vmem>>, %arg2: memref<1x512xf32, #tpu.memory_space<vmem>>, %arg3: memref<512x256xbf16, #tpu.memory_space<vmem>>, %arg4: memref<1x256xf32, #tpu.memory_space<vmem>>, %arg5: memref<256x64xbf16, #tpu.memory_space<vmem>>, %arg6: memref<1x64xf32, #tpu.memory_space<vmem>>, %arg7: memref<2x64xf32, #tpu.memory_space<vmem>>) attributes {dimension_semantics = [], scalar_prefetch = 0 : i64, scratch_operands = 0 : i64, tpu.core_type = #tpu.core_type<tc>} {
    %c0 = arith.constant 0 : index
    %c0_0 = arith.constant 0 : index
    %0 = vector.load %arg0[%c0, %c0_0] : memref<2x1024xf32, #tpu.memory_space<vmem>>, vector<2x1024xf32>
    %1 = arith.truncf %0 : vector<2x1024xf32> to vector<2x1024xbf16>
    %c0_1 = arith.constant 0 : index
    %c0_2 = arith.constant 0 : index
    %2 = vector.load %arg1[%c0_1, %c0_2] : memref<1024x512xbf16, #tpu.memory_space<vmem>>, vector<1024x512xbf16>
    %cst = arith.constant dense<0.000000e+00> : vector<2x512xf32>
    %3 = tpu.matmul %1, %2, %cst {dimension_numbers = #tpu.dot_dimension_numbers<[1], [0], [0], [1], [0, 0, 1, 1], [], []>} : vector<2x1024xbf16>, vector<1024x512xbf16>, vector<2x512xf32> -> vector<2x512xf32>
    %c0_3 = arith.constant 0 : index
    %c0_4 = arith.constant 0 : index
    %4 = vector.load %arg2[%c0_3, %c0_4] : memref<1x512xf32, #tpu.memory_space<vmem>>, vector<1x512xf32>
    %5 = vector.broadcast %4 : vector<1x512xf32> to vector<2x512xf32>
    %6 = arith.addf %3, %5 : vector<2x512xf32>
    %cst_5 = arith.constant 0.000000e+00 : f32
    %7 = vector.broadcast %cst_5 : f32 to vector<2x512xf32>
    %8 = arith.maximumf %6, %7 : vector<2x512xf32>
    %9 = arith.truncf %8 : vector<2x512xf32> to vector<2x512xbf16>
    %c0_6 = arith.constant 0 : index
    %c0_7 = arith.constant 0 : index
    %10 = vector.load %arg3[%c0_6, %c0_7] : memref<512x256xbf16, #tpu.memory_space<vmem>>, vector<512x256xbf16>
    %cst_8 = arith.constant dense<0.000000e+00> : vector<2x256xf32>
    %11 = tpu.matmul %9, %10, %cst_8 {dimension_numbers = #tpu.dot_dimension_numbers<[1], [0], [0], [1], [0, 0, 1, 1], [], []>} : vector<2x512xbf16>, vector<512x256xbf16>, vector<2x256xf32> -> vector<2x256xf32>
    %c0_9 = arith.constant 0 : index
    %c0_10 = arith.constant 0 : index
    %12 = vector.load %arg4[%c0_9, %c0_10] : memref<1x256xf32, #tpu.memory_space<vmem>>, vector<1x256xf32>
    %13 = vector.broadcast %12 : vector<1x256xf32> to vector<2x256xf32>
    %14 = arith.addf %11, %13 : vector<2x256xf32>
    %cst_11 = arith.constant 0.000000e+00 : f32
    %15 = vector.broadcast %cst_11 : f32 to vector<2x256xf32>
    %16 = arith.maximumf %14, %15 : vector<2x256xf32>
    %17 = arith.truncf %16 : vector<2x256xf32> to vector<2x256xbf16>
    %c0_12 = arith.constant 0 : index
    %c0_13 = arith.constant 0 : index
    %18 = vector.load %arg5[%c0_12, %c0_13] : memref<256x64xbf16, #tpu.memory_space<vmem>>, vector<256x64xbf16>
    %cst_14 = arith.constant dense<0.000000e+00> : vector<2x64xf32>
    %19 = tpu.matmul %17, %18, %cst_14 {dimension_numbers = #tpu.dot_dimension_numbers<[1], [0], [0], [1], [0, 0, 1, 1], [], []>} : vector<2x256xbf16>, vector<256x64xbf16>, vector<2x64xf32> -> vector<2x64xf32>
    %c0_15 = arith.constant 0 : index
    %c0_16 = arith.constant 0 : index
    %20 = vector.load %arg6[%c0_15, %c0_16] : memref<1x64xf32, #tpu.memory_space<vmem>>, vector<1x64xf32>
    %21 = vector.broadcast %20 : vector<1x64xf32> to vector<2x64xf32>
    %22 = arith.addf %19, %21 : vector<2x64xf32>
    %c0_17 = arith.constant 0 : index
    %c0_18 = arith.constant 0 : index
    %23 = vector.load %arg7[%c0_17, %c0_18] : memref<2x64xf32, #tpu.memory_space<vmem>>, vector<2x64xf32>
    tpu.vector_store %arg7[%c0_17, %c0_18], %22 {strides = array<i32>} : memref<2x64xf32, #tpu.memory_space<vmem>>, vector<2x64xf32>,
    return
  }
}

module attributes {stable_mosaic.version = 11 : i64} {
  func.func @_bmm_kernel(%arg0: i32, %arg1: i32, %arg2: memref<1x8x8xbf16, #tpu.memory_space<vmem>>, %arg3: memref<1x128x8xbf16, #tpu.memory_space<vmem>>, %arg4: memref<1x8x128xf32, #tpu.memory_space<vmem>>) attributes {dimension_semantics = [#tpu.dimension_semantics<parallel>, #tpu.dimension_semantics<parallel>], iteration_bounds = array<i64: 2, 1>, scalar_prefetch = 0 : i64, scratch_operands = 0 : i64, tpu.core_type = #tpu.core_type<tc>, window_params = [{pipeline_mode = #tpu.pipeline_mode<synchronous>, transform_indices = @transform_0, window_bounds = array<i64: 1, 8, 8>}, {transform_indices = @transform_1, window_bounds = array<i64: 1, 128, 8>}, {transform_indices = @transform_2, window_bounds = array<i64: 1, 8, 128>}]} {
    %c0 = arith.constant 0 : index
    %c0_0 = arith.constant 0 : index
    %c0_1 = arith.constant 0 : index
    %0 = vector.load %arg2[%c0, %c0_0, %c0_1] : memref<1x8x8xbf16, #tpu.memory_space<vmem>>, vector<1x8x8xbf16>
    %1 = vector.shape_cast %0 : vector<1x8x8xbf16> to vector<8x8xbf16>
    %c0_2 = arith.constant 0 : index
    %c0_3 = arith.constant 0 : index
    %c0_4 = arith.constant 0 : index
    %2 = vector.load %arg3[%c0_2, %c0_3, %c0_4] : memref<1x128x8xbf16, #tpu.memory_space<vmem>>, vector<1x128x8xbf16>
    %3 = vector.shape_cast %2 : vector<1x128x8xbf16> to vector<128x8xbf16>
    %cst = arith.constant dense<0.000000e+00> : vector<8x128xf32>
    %4 = tpu.matmul %1, %3, %cst {dimension_numbers = #tpu.dot_dimension_numbers<[1], [1], [0], [0], [0, 0, 1, 0], [], []>} : vector<8x8xbf16>, vector<128x8xbf16>, vector<8x128xf32> -> vector<8x128xf32>
    %c0_5 = arith.constant 0 : index
    %c0_6 = arith.constant 0 : index
    %c0_7 = arith.constant 0 : index
    %5 = vector.load %arg4[%c0_5, %c0_6, %c0_7] : memref<1x8x128xf32, #tpu.memory_space<vmem>>, vector<1x8x128xf32>
    %6 = vector.shape_cast %5 : vector<1x8x128xf32> to vector<8x128xf32>
    %7 = vector.shape_cast %4 : vector<8x128xf32> to vector<1x8x128xf32>
    tpu.vector_store %arg4[%c0_5, %c0_6, %c0_7], %7 {strides = array<i32>} : memref<1x8x128xf32, #tpu.memory_space<vmem>>, vector<1x8x128xf32>,
    return
  }
  func.func @transform_0(%arg0: i32, %arg1: i32) -> (i32, i32, i32) {
    %c0_i32 = arith.constant 0 : i32
    %c0_i32_0 = arith.constant 0 : i32
    %c0_i32_1 = arith.constant 0 : i32
    return %arg0, %c0_i32, %c0_i32_0 : i32, i32, i32
  }
  func.func @transform_1(%arg0: i32, %arg1: i32) -> (i32, i32, i32) {
    %c0_i32 = arith.constant 0 : i32
    %c0_i32_0 = arith.constant 0 : i32
    return %arg0, %arg1, %c0_i32 : i32, i32, i32
  }
  func.func @transform_2(%arg0: i32, %arg1: i32) -> (i32, i32, i32) {
    %c0_i32 = arith.constant 0 : i32
    %c0_i32_0 = arith.constant 0 : i32
    return %arg0, %c0_i32, %arg1 : i32, i32, i32
  }
}

</mosaic_0001>

<llo_original>
// kernel: alignment_forward.5
$region0: #{alignment_forward.5}
  #allocation0 [shape = 'u32[]', space=smem, size = 0x4, offset = 0x4, fixed_abs, tag = 'smem constant byte address 0x4 - core index']
  #allocation1 [shape = 'u32[144,128]{1,0:T(1,128)}', space=vmem, size = 0x12000, scoped, tag = 'internal scratch']
  %s0 = inlined_call_operand.vmem [shape: bf16[2,8,8], index: 0, kind: input, shape index: {}]
  %s1 = inlined_call_operand.vmem [shape: bf16[2,128,8], index: 1, kind: input, shape index: {}]
  %s2 = inlined_call_operand.vmem [shape: f32[2,8,128], index: 2, kind: output, shape index: {}]
  %s3 = sld [smem:[#allocation0]]
  $region41: #{alignment_forward.5} parent=0
    _
  %s5 = ssub.s32 1, %s3
  %s6 = scalar_select 0, %s5, %s3
  loop: start=0, step=1, limit=4
  $region2: #{alignment_forward.5} parent=0 // loop_pre_header
    _
  $region3: #{alignment_forward.5} parent=0 // loop_header
    %s8 = sphi 0, %s12
    %p9 = scmp.ge.s32.totalorder %s8, 4
    %s15 = sphi 0, %s27
    %s16 = sphi 0, %s23
    %s17 = sphi 0, %s15
    %s18 = sphi 0, %s16
    %s19 = sphi 0, %s17
    %s20 = sphi 0, %s18
    %s30 = sphi 0, %s32
    %s33 = sphi 0, %s30
    %s34 = sphi 0, %s33
    %s50 = sphi 0, %s34
    %s58 = sphi 0, %s60
    %s61 = sphi 0, %s58
    %s62 = sphi 0, %s61
    %s78 = sphi 0, %s62
    %s86 = sphi 0, %s88
    %s89 = sphi 0, %s86
    %s90 = sphi 0, %s89
    %s106 = sphi 0, %s90
  $region4: #{alignment_forward.5} parent=0 // loop_header_branch
    %11 = sbr.rel (%p9) target = $region8
  $region5: #{alignment_forward.5} parent=0 // loop_body
    %s13 = ssub.s32 %s8, 1
    %s14 = ssub.s32 %s8, 2
    %s21 = sadd.s32 1, %s16
    %p22 = scmp.ge.s32.totalorder %s21, 1
    %s23 = scalar_select %p22, 0, %s21
    %s24 = sadd.s32 1, %s15
    %s25 = scalar_select %p22, %s24, %s15
    %p26 = scmp.ge.s32.totalorder %s25, 2
    %s27 = scalar_select %p26, 0, %s25
    %s28 = ssub.s32 %s15, %s27
    %p29 = scmp.eq.s32.totalorder %s28, 0
    %s31 = sadd.s32 %s30, 1
    %s32 = scalar_select %p29, %s30, %s31
    %p35 = pneg %p29
    %p36 = scmp.eq.s32.totalorder %s8, 1
    %p37 = por %p35, %p36
    %p38 = scmp.ne.s32.totalorder %s30, %s33
    %p39 = scmp.eq.s32.totalorder %s8, 0
    %p40 = por %p38, %p39
    %p41 = scmp.ne.s32.totalorder %s30, %s33
    %p42 = scmp.eq.s32.totalorder %s13, 1
    %p43 = por %p41, %p42
    %p44 = scmp.ne.s32.totalorder %s33, %s34
    %p45 = scmp.eq.s32.totalorder %s13, 0
    %p46 = por %p44, %p45
    %p47 = scmp.ne.s32.totalorder %s33, %s34
    %p48 = scmp.eq.s32.totalorder %s14, 1
    %p49 = por %p47, %p48
    %p51 = scmp.ne.s32.totalorder %s34, %s50
    %p52 = scmp.eq.s32.totalorder %s14, 0
    %p53 = por %p51, %p52
    %s54 = ssub.s32 %s15, %s27
    %s55 = ssub.s32 %s16, %s23
    %s56 = sor.u32 %s54, %s55
    %p57 = scmp.eq.s32.totalorder %s56, 0
    %s59 = sadd.s32 %s58, 1
    %s60 = scalar_select %p57, %s58, %s59
    %p63 = pneg %p57
    %p64 = scmp.eq.s32.totalorder %s8, 1
    %p65 = por %p63, %p64
    %p66 = scmp.ne.s32.totalorder %s58, %s61
    %p67 = scmp.eq.s32.totalorder %s8, 0
    %p68 = por %p66, %p67
    %p69 = scmp.ne.s32.totalorder %s58, %s61
    %p70 = scmp.eq.s32.totalorder %s13, 1
    %p71 = por %p69, %p70
    %p72 = scmp.ne.s32.totalorder %s61, %s62
    %p73 = scmp.eq.s32.totalorder %s13, 0
    %p74 = por %p72, %p73
    %p75 = scmp.ne.s32.totalorder %s61, %s62
    %p76 = scmp.eq.s32.totalorder %s14, 1
    %p77 = por %p75, %p76
    %p79 = scmp.ne.s32.totalorder %s62, %s78
    %p80 = scmp.eq.s32.totalorder %s14, 0
    %p81 = por %p79, %p80
    %s82 = ssub.s32 %s15, %s27
    %s83 = ssub.s32 %s16, %s23
    %s84 = sor.u32 %s82, %s83
    %p85 = scmp.eq.s32.totalorder %s84, 0
    %s87 = sadd.s32 %s86, 1
    %s88 = scalar_select %p85, %s86, %s87
    %p91 = pneg %p85
    %p92 = scmp.eq.s32.totalorder %s8, 1
    %p93 = por %p91, %p92
    %p94 = scmp.ne.s32.totalorder %s86, %s89
    %p95 = scmp.eq.s32.totalorder %s8, 0
    %p96 = por %p94, %p95
    %p97 = scmp.ne.s32.totalorder %s86, %s89
    %p98 = scmp.eq.s32.totalorder %s13, 1
    %p99 = por %p97, %p98
    %p100 = scmp.ne.s32.totalorder %s89, %s90
    %p101 = scmp.eq.s32.totalorder %s13, 0
    %p102 = por %p100, %p101
    %p103 = scmp.ne.s32.totalorder %s89, %s90
    %p104 = scmp.eq.s32.totalorder %s14, 1
    %p105 = por %p103, %p104
    %p107 = scmp.ne.s32.totalorder %s90, %s106
    %p108 = scmp.eq.s32.totalorder %s14, 0
    %p109 = por %p107, %p108
    %p110 = scmp.le.s32.totalorder 1, %s8
    %p111 = scmp.lt.s32.totalorder %s8, 3
    %p112 = pnand %p110, %p111
    %p113 = pneg %p112
    // Predicated region
    $region9: #{alignment_forward.5} parent=5 // pred_check
      _
    $region10: #{alignment_forward.5} parent=5 // pred_check_branch
      %115 = sbr.rel (%p112) target = $region12
    $region11: #{alignment_forward.5} parent=5 // pred_region
      %s116 = ssub.s32 %s8, 1
      // Predicated region
      $region13: #{alignment_forward.5} parent=11 // pred_check
        %p117 = pneg %p46
      $region14: #{alignment_forward.5} parent=11 // pred_check_branch
        %119 = sbr.rel (%p117) target = $region16
      $region15: #{alignment_forward.5} parent=11 // pred_region
        %p120 = scmp.lt.s32.totalorder %s17, 1
        %s121 = scalar_select %p120, %s17, 1
        %s122 = smul.addr %s121, 4
        %s123 = scalar_lea.vmem %s0, %s122
      $region16: #{alignment_forward.5} parent=11 // pred_fallthru
        _
    $region12: #{alignment_forward.5} parent=5 // pred_fallthru
      _
    %p124 = scmp.lt.s32.totalorder %s8, 2
    // Predicated region
    $region17: #{alignment_forward.5} parent=5 // pred_check
      %p125 = pneg %p124
    $region18: #{alignment_forward.5} parent=5 // pred_check_branch
      %127 = sbr.rel (%p125) target = $region20
    $region19: #{alignment_forward.5} parent=5 // pred_region
      // Predicated region
      $region21: #{alignment_forward.5} parent=19 // pred_check
        %p128 = pneg %p68
      $region22: #{alignment_forward.5} parent=19 // pred_check_branch
        %130 = sbr.rel (%p128) target = $region24
      $region23: #{alignment_forward.5} parent=19 // pred_region
        %s131 = smul.u32 16, %s16
        %p132 = scmp.lt.s32.totalorder %s15, 1
        %s133 = scalar_select %p132, %s15, 1
        %p134 = scmp.lt.s32.totalorder %s131, 15
        %s135 = scalar_select %p134, %s131, 15
        %s136 = smul.addr %s133, 16
        %s137 = sadd.s32 %s135, %s136
        %s138 = smul.addr %s137, 4
        %s139 = scalar_lea.vmem %s1, %s138
        %s140 = smul.u32 16, %s16
      $region24: #{alignment_forward.5} parent=19 // pred_fallthru
        _
    $region20: #{alignment_forward.5} parent=5 // pred_fallthru
      _
    %p141 = scmp.le.s32.totalorder 1, %s8
    %p142 = scmp.lt.s32.totalorder %s8, 3
    %p143 = pnand %p141, %p142
    %p144 = pneg %p143
    // Predicated region
    $region25: #{alignment_forward.5} parent=5 // pred_check
      _
    $region26: #{alignment_forward.5} parent=5 // pred_check_branch
      %146 = sbr.rel (%p143) target = $region28
    $region27: #{alignment_forward.5} parent=5 // pred_region
      %s147 = ssub.s32 %s8, 1
      %p148 = scmp.lt.s32.totalorder %s17, 1
      %s149 = scalar_select %p148, %s17, 1
      %s150 = smul.addr %s149, 4
      %s151 = scalar_lea.vmem %s0, %s150
      %p152 = pneg %p46
      %p153 = pneg %p43
      %s154 = smul.u32 16, %s18
      %p155 = scmp.lt.s32.totalorder %s17, 1
      %s156 = scalar_select %p155, %s17, 1
      %p157 = scmp.lt.s32.totalorder %s154, 15
      %s158 = scalar_select %p157, %s154, 15
      %s159 = smul.addr %s156, 16
      %s160 = sadd.s32 %s158, %s159
      %s161 = smul.addr %s160, 4
      %s162 = scalar_lea.vmem %s1, %s161
      %p163 = pneg %p74
      %p164 = pneg %p71
      %p165 = pneg %p102
      %p166 = pneg %p99
      %p167 = scmp.lt.s32.totalorder %s17, 1
      %s168 = scalar_select %p167, %s17, 1
      %p169 = scmp.lt.s32.totalorder %s18, 0
      %s170 = scalar_select %p169, %s18, 0
      %s171 = sadd.s32 %s170, %s168
      %s172 = smul.addr %s171, 8
      %s173 = scalar_lea.vmem %s2, %s172
      %p174 = scmp.lt.s32.totalorder %s17, 1
      %s175 = scalar_select %p174, %s17, 1
      %s176 = smul.addr %s175, 4
      %s177 = scalar_lea.vmem %s0, %s176
      %s178 = smul.u32 16, %s18
      %p179 = scmp.lt.s32.totalorder %s17, 1
      %s180 = scalar_select %p179, %s17, 1
      %p181 = scmp.lt.s32.totalorder %s178, 15
      %s182 = scalar_select %p181, %s178, 15
      %s183 = smul.addr %s180, 16
      %s184 = sadd.s32 %s182, %s183
      %s185 = smul.addr %s184, 4
      %s186 = scalar_lea.vmem %s1, %s185
      %s187 = smul.u32 16, %s18
      %p188 = scmp.lt.s32.totalorder %s17, 1
      %s189 = scalar_select %p188, %s17, 1
      %p190 = scmp.lt.s32.totalorder %s18, 0
      %s191 = scalar_select %p190, %s18, 0
      %s192 = sadd.s32 %s191, %s189
      %s193 = smul.addr %s192, 8
      %s194 = scalar_lea.vmem %s2, %s193
      %v196 = vld [vmem:[%s177] sm:$0xf]
      %v197 = vld [vmem:[%s186] sm:$0xf]
      %v198 = vld [vmem:[%s186 + $0x4] sm:$0xf]
      %v199 = vld [vmem:[%s186 + $0x8] sm:$0xf]
      %v200 = vld [vmem:[%s186 + $0xc] sm:$0xf]
      %v201 = vld [vmem:[%s186 + $0x10] sm:$0xf]
      %v202 = vld [vmem:[%s186 + $0x14] sm:$0xf]
      %v203 = vld [vmem:[%s186 + $0x18] sm:$0xf]
      %v204 = vld [vmem:[%s186 + $0x1c] sm:$0xf]
      %v205 = vld [vmem:[%s186 + $0x20] sm:$0xf]
      %v206 = vld [vmem:[%s186 + $0x24] sm:$0xf]
      %v207 = vld [vmem:[%s186 + $0x28] sm:$0xf]
      %v208 = vld [vmem:[%s186 + $0x2c] sm:$0xf]
      %v209 = vld [vmem:[%s186 + $0x30] sm:$0xf]
      %v210 = vld [vmem:[%s186 + $0x34] sm:$0xf]
      %v211 = vld [vmem:[%s186 + $0x38] sm:$0xf]
      %v212 = vld [vmem:[%s186 + $0x3c] sm:$0xf]
      %v229 = vunpack.c.l.b16 %v197
      %v230 = vunpack.c.l.b16 %v198
      %v231 = vunpack.c.l.b16 %v199
      %v232 = vunpack.c.l.b16 %v200
      %v233 = vunpack.c.l.b16 %v201
      %v234 = vunpack.c.l.b16 %v202
      %v235 = vunpack.c.l.b16 %v203
      %v236 = vunpack.c.l.b16 %v204
      %v237 = vunpack.c.l.b16 %v205
      %v238 = vunpack.c.l.b16 %v206
      %v239 = vunpack.c.l.b16 %v207
      %v240 = vunpack.c.l.b16 %v208
      %v241 = vunpack.c.l.b16 %v209
      %v242 = vunpack.c.l.b16 %v210
      %v243 = vunpack.c.l.b16 %v211
      %v244 = vunpack.c.l.b16 %v212
      %v245 = vpack.c.b16 %v230, %v229
      %v246 = vpack.c.b16 %v232, %v231
      %v247 = vpack.c.b16 %v234, %v233
      %v248 = vpack.c.b16 %v236, %v235
      %v249 = vpack.c.b16 %v238, %v237
      %v250 = vpack.c.b16 %v240, %v239
      %v251 = vpack.c.b16 %v242, %v241
      %v252 = vpack.c.b16 %v244, %v243
      %vm253 = vcmask 64512
      %v255 = vsel %vm253, %v196, 0
      %v258 = vsel %vm253, %v245, 0
      %v261 = vsel %vm253, %v246, 0
      %v264 = vsel %vm253, %v247, 0
      %v267 = vsel %vm253, %v248, 0
      %v270 = vsel %vm253, %v249, 0
      %v273 = vsel %vm253, %v250, 0
      %v276 = vsel %vm253, %v251, 0
      %v279 = vsel %vm253, %v252, 0
      %281 = vmatprep.subr.bf16.mxu0 0
      %282 = vmatpush1.bf16.xpose.msra.mxu0 %v258
      %283 = vmatprep.subr.bf16.mxu0 0
      %284 = vmatpush1.bf16.xpose.msra.mxu0 %v261
      %285 = vmatprep.subr.bf16.mxu0 0
      %286 = vmatpush1.bf16.xpose.msra.mxu0 %v264
      %287 = vmatprep.subr.bf16.mxu0 0
      %288 = vmatpush1.bf16.xpose.msra.mxu0 %v267
      %289 = vmatprep.subr.bf16.mxu0 0
      %290 = vmatpush1.bf16.xpose.msra.mxu0 %v270
      %291 = vmatprep.subr.bf16.mxu0 0
      %292 = vmatpush1.bf16.xpose.msra.mxu0 %v273
      %293 = vmatprep.subr.bf16.mxu0 0
      %294 = vmatpush1.bf16.xpose.msra.mxu0 %v276
      %295 = vmatprep.subr.bf16.mxu0 0
      %296 = vmatpush1.bf16.xpose.msra.mxu0 %v279
      %297 = vmatprep.subr.bf16.mxu0 0
      %298 = vmatpush1.bf16.xpose.msra.mxu0 0
      %299 = vmatprep.subr.bf16.mxu0 0
      %300 = vmatpush1.bf16.xpose.msra.mxu0 0
      %301 = vmatprep.subr.bf16.mxu0 0
      %302 = vmatpush1.bf16.xpose.msra.mxu0 0
      %303 = vmatprep.subr.bf16.mxu0 0
      %304 = vmatpush1.bf16.xpose.msra.mxu0 0
      %305 = vmatprep.subr.bf16.mxu0 0
      %306 = vmatpush1.bf16.xpose.msra.mxu0 0
      %307 = vmatprep.subr.bf16.mxu0 0
      %308 = vmatpush1.bf16.xpose.msra.mxu0 0
      %309 = vmatprep.subr.bf16.mxu0 0
      %310 = vmatpush1.bf16.xpose.msra.mxu0 0
      %311 = vmatprep.subr.bf16.mxu0 0
      %312 = vmatpush1.bf16.xpose.msra.mxu0 0
      %313 = vmatprep.mubr.bf16.mxu0 0
      %314 = vmatmul.mubr.bf16.gmra.mrb[0].mxu0 %v255
      %v315 = vpop.f32.mrb[0].mxu0
      %v316 = vadd.f32 0.0, %v315
      %v317 = vpop.f32.mrb[0].mxu0
      %v318 = vpop.f32.mrb[0].mxu0
      %v319 = vpop.f32.mrb[0].mxu0
      %320 = vdwg.mxu0
      %321 = vst [vmem:[%s194] sm:$0xff] %v316
      %p322 = scmp.lt.s32.totalorder %s17, 1
      %s323 = scalar_select %p322, %s17, 1
      %p324 = scmp.lt.s32.totalorder %s18, 0
      %s325 = scalar_select %p324, %s18, 0
      %s326 = sadd.s32 %s325, %s323
      %s327 = smul.addr %s326, 8
      %s328 = scalar_lea.vmem %s2, %s327
      // Predicated region
      $region29: #{alignment_forward.5} parent=27 // pred_check
        %p329 = pneg %p99
      $region30: #{alignment_forward.5} parent=27 // pred_check_branch
        %331 = sbr.rel (%p329) target = $region32
      $region31: #{alignment_forward.5} parent=27 // pred_region
        _
      $region32: #{alignment_forward.5} parent=27 // pred_fallthru
        _
    $region28: #{alignment_forward.5} parent=5 // pred_fallthru
      _
    %p332 = scmp.le.s32.totalorder 2, %s8
    // Predicated region
    $region33: #{alignment_forward.5} parent=5 // pred_check
      %p333 = pneg %p332
    $region34: #{alignment_forward.5} parent=5 // pred_check_branch
      %335 = sbr.rel (%p333) target = $region36
    $region35: #{alignment_forward.5} parent=5 // pred_region
      %s336 = ssub.s32 %s8, 2
      // Predicated region
      $region37: #{alignment_forward.5} parent=35 // pred_check
        %p337 = pneg %p105
      $region38: #{alignment_forward.5} parent=35 // pred_check_branch
        %339 = sbr.rel (%p337) target = $region40
      $region39: #{alignment_forward.5} parent=35 // pred_region
        %p340 = scmp.lt.s32.totalorder %s19, 1
        %s341 = scalar_select %p340, %s19, 1
        %p342 = scmp.lt.s32.totalorder %s20, 0
        %s343 = scalar_select %p342, %s20, 0
        %s344 = sadd.s32 %s343, %s341
        %s345 = smul.addr %s344, 8
        %s346 = scalar_lea.vmem %s2, %s345
      $region40: #{alignment_forward.5} parent=35 // pred_fallthru
        _
    $region36: #{alignment_forward.5} parent=5 // pred_fallthru
      _
  $region6: #{alignment_forward.5} parent=0 // loop_footer
    %s12 = sadd.s32 1, %s8
  $region7: #{alignment_forward.5} parent=0 // loop_footer_branch
    %7 = sbr.rel target = $region3
  $region8: #{alignment_forward.5} parent=0 // loop_exit
    _

// kernel: alignment_forward.3
$region0: #{alignment_forward.3}
  #allocation0 [shape = 'u32[]', space=smem, size = 0x4, offset = 0x4, fixed_abs, tag = 'smem constant byte address 0x4 - core index']
  #allocation1 [shape = 'u32[144,128]{1,0:T(1,128)}', space=vmem, size = 0x12000, scoped, tag = 'internal scratch']
  #allocation2 [shape = 'f32[1,1024]{1,0:T(1,128)}', space=vmem, size = 0x1000, scoped, tag = 'scratch operand']
  %s0 = inlined_call_operand.vmem [shape: bf16[2,128,8], index: 0, kind: input, shape index: {}]
  %s1 = inlined_call_operand.vmem [shape: bf16[8,128], index: 1, kind: input, shape index: {}]
  %s2 = inlined_call_operand.vmem [shape: f32[1,128], index: 2, kind: input, shape index: {}]
  %s3 = inlined_call_operand.vmem [shape: bf16[128,256], index: 3, kind: input, shape index: {}]
  %s4 = inlined_call_operand.vmem [shape: f32[1,256], index: 4, kind: input, shape index: {}]
  %s5 = inlined_call_operand.vmem [shape: bf16[256,1024], index: 5, kind: input, shape index: {}]
  %s6 = inlined_call_operand.vmem [shape: f32[1,1024], index: 6, kind: input, shape index: {}]
  %s7 = inlined_call_operand.vmem [shape: f32[2,1,1024], index: 7, kind: output, shape index: {}]
  %s8 = sld [smem:[#allocation0]]
  $region69: #{alignment_forward.3} parent=0
    _
  %s10 = ssub.s32 1, %s8
  %s11 = scalar_select 0, %s10, %s8
  loop: start=0, step=1, limit=4
  $region2: #{alignment_forward.3} parent=0 // loop_pre_header
    _
  $region3: #{alignment_forward.3} parent=0 // loop_header
    %s13 = sphi 0, %s17
    %p14 = scmp.ge.s32.totalorder %s13, 4
    %s20 = sphi 0, %s32
    %s21 = sphi 0, %s28
    %s22 = sphi 0, %s20
    %s23 = sphi 0, %s21
    %s24 = sphi 0, %s22
    %s25 = sphi 0, %s23
    %s37 = sphi 0, %s39
    %s40 = sphi 0, %s37
    %s41 = sphi 0, %s40
    %s57 = sphi 0, %s41
    %s61 = sphi 0, %s61
    %s63 = sphi 0, %s61
    %s64 = sphi 0, %s63
    %s78 = sphi 0, %s64
    %s82 = sphi 0, %s82
    %s84 = sphi 0, %s82
    %s85 = sphi 0, %s84
    %s99 = sphi 0, %s85
    %s103 = sphi 0, %s103
    %s105 = sphi 0, %s103
    %s106 = sphi 0, %s105
    %s120 = sphi 0, %s106
    %s124 = sphi 0, %s124
    %s126 = sphi 0, %s124
    %s127 = sphi 0, %s126
    %s141 = sphi 0, %s127
    %s145 = sphi 0, %s145
    %s147 = sphi 0, %s145
    %s148 = sphi 0, %s147
    %s162 = sphi 0, %s148
    %s166 = sphi 0, %s166
    %s168 = sphi 0, %s166
    %s169 = sphi 0, %s168
    %s183 = sphi 0, %s169
    %s189 = sphi 0, %s191
    %s192 = sphi 0, %s189
    %s193 = sphi 0, %s192
    %s209 = sphi 0, %s193
  $region4: #{alignment_forward.3} parent=0 // loop_header_branch
    %16 = sbr.rel (%p14) target = $region8
  $region5: #{alignment_forward.3} parent=0 // loop_body
    %s18 = ssub.s32 %s13, 1
    %s19 = ssub.s32 %s13, 2
    %s26 = sadd.s32 1, %s21
    %p27 = scmp.ge.s32.totalorder %s26, 1
    %s28 = scalar_select %p27, 0, %s26
    %s29 = sadd.s32 1, %s20
    %s30 = scalar_select %p27, %s29, %s20
    %p31 = scmp.ge.s32.totalorder %s30, 2
    %s32 = scalar_select %p31, 0, %s30
    %s33 = ssub.s32 %s20, %s32
    %s34 = ssub.s32 %s21, %s28
    %s35 = sor.u32 %s33, %s34
    %p36 = scmp.eq.s32.totalorder %s35, 0
    %s38 = sadd.s32 %s37, 1
    %s39 = scalar_select %p36, %s37, %s38
    %p42 = pneg %p36
    %p43 = scmp.eq.s32.totalorder %s13, 1
    %p44 = por %p42, %p43
    %p45 = scmp.ne.s32.totalorder %s37, %s40
    %p46 = scmp.eq.s32.totalorder %s13, 0
    %p47 = por %p45, %p46
    %p48 = scmp.ne.s32.totalorder %s37, %s40
    %p49 = scmp.eq.s32.totalorder %s18, 1
    %p50 = por %p48, %p49
    %p51 = scmp.ne.s32.totalorder %s40, %s41
    %p52 = scmp.eq.s32.totalorder %s18, 0
    %p53 = por %p51, %p52
    %p54 = scmp.ne.s32.totalorder %s40, %s41
    %p55 = scmp.eq.s32.totalorder %s19, 1
    %p56 = por %p54, %p55
    %p58 = scmp.ne.s32.totalorder %s41, %s57
    %p59 = scmp.eq.s32.totalorder %s19, 0
    %p60 = por %p58, %p59
    %s62 = sadd.s32 %s61, 1
    %p65 = scmp.eq.s32.totalorder %s13, 1
    %p66 = scmp.ne.s32.totalorder %s61, %s63
    %p67 = scmp.eq.s32.totalorder %s13, 0
    %p68 = por %p66, %p67
    %p69 = scmp.ne.s32.totalorder %s61, %s63
    %p70 = scmp.eq.s32.totalorder %s18, 1
    %p71 = por %p69, %p70
    %p72 = scmp.ne.s32.totalorder %s63, %s64
    %p73 = scmp.eq.s32.totalorder %s18, 0
    %p74 = por %p72, %p73
    %p75 = scmp.ne.s32.totalorder %s63, %s64
    %p76 = scmp.eq.s32.totalorder %s19, 1
    %p77 = por %p75, %p76
    %p79 = scmp.ne.s32.totalorder %s64, %s78
    %p80 = scmp.eq.s32.totalorder %s19, 0
    %p81 = por %p79, %p80
    %s83 = sadd.s32 %s82, 1
    %p86 = scmp.eq.s32.totalorder %s13, 1
    %p87 = scmp.ne.s32.totalorder %s82, %s84
    %p88 = scmp.eq.s32.totalorder %s13, 0
    %p89 = por %p87, %p88
    %p90 = scmp.ne.s32.totalorder %s82, %s84
    %p91 = scmp.eq.s32.totalorder %s18, 1
    %p92 = por %p90, %p91
    %p93 = scmp.ne.s32.totalorder %s84, %s85
    %p94 = scmp.eq.s32.totalorder %s18, 0
    %p95 = por %p93, %p94
    %p96 = scmp.ne.s32.totalorder %s84, %s85
    %p97 = scmp.eq.s32.totalorder %s19, 1
    %p98 = por %p96, %p97
    %p100 = scmp.ne.s32.totalorder %s85, %s99
    %p101 = scmp.eq.s32.totalorder %s19, 0
    %p102 = por %p100, %p101
    %s104 = sadd.s32 %s103, 1
    %p107 = scmp.eq.s32.totalorder %s13, 1
    %p108 = scmp.ne.s32.totalorder %s103, %s105
    %p109 = scmp.eq.s32.totalorder %s13, 0
    %p110 = por %p108, %p109
    %p111 = scmp.ne.s32.totalorder %s103, %s105
    %p112 = scmp.eq.s32.totalorder %s18, 1
    %p113 = por %p111, %p112
    %p114 = scmp.ne.s32.totalorder %s105, %s106
    %p115 = scmp.eq.s32.totalorder %s18, 0
    %p116 = por %p114, %p115
    %p117 = scmp.ne.s32.totalorder %s105, %s106
    %p118 = scmp.eq.s32.totalorder %s19, 1
    %p119 = por %p117, %p118
    %p121 = scmp.ne.s32.totalorder %s106, %s120
    %p122 = scmp.eq.s32.totalorder %s19, 0
    %p123 = por %p121, %p122
    %s125 = sadd.s32 %s124, 1
    %p128 = scmp.eq.s32.totalorder %s13, 1
    %p129 = scmp.ne.s32.totalorder %s124, %s126
    %p130 = scmp.eq.s32.totalorder %s13, 0
    %p131 = por %p129, %p130
    %p132 = scmp.ne.s32.totalorder %s124, %s126
    %p133 = scmp.eq.s32.totalorder %s18, 1
    %p134 = por %p132, %p133
    %p135 = scmp.ne.s32.totalorder %s126, %s127
    %p136 = scmp.eq.s32.totalorder %s18, 0
    %p137 = por %p135, %p136
    %p138 = scmp.ne.s32.totalorder %s126, %s127
    %p139 = scmp.eq.s32.totalorder %s19, 1
    %p140 = por %p138, %p139
    %p142 = scmp.ne.s32.totalorder %s127, %s141
    %p143 = scmp.eq.s32.totalorder %s19, 0
    %p144 = por %p142, %p143
    %s146 = sadd.s32 %s145, 1
    %p149 = scmp.eq.s32.totalorder %s13, 1
    %p150 = scmp.ne.s32.totalorder %s145, %s147
    %p151 = scmp.eq.s32.totalorder %s13, 0
    %p152 = por %p150, %p151
    %p153 = scmp.ne.s32.totalorder %s145, %s147
    %p154 = scmp.eq.s32.totalorder %s18, 1
    %p155 = por %p153, %p154
    %p156 = scmp.ne.s32.totalorder %s147, %s148
    %p157 = scmp.eq.s32.totalorder %s18, 0
    %p158 = por %p156, %p157
    %p159 = scmp.ne.s32.totalorder %s147, %s148
    %p160 = scmp.eq.s32.totalorder %s19, 1
    %p161 = por %p159, %p160
    %p163 = scmp.ne.s32.totalorder %s148, %s162
    %p164 = scmp.eq.s32.totalorder %s19, 0
    %p165 = por %p163, %p164
    %s167 = sadd.s32 %s166, 1
    %p170 = scmp.eq.s32.totalorder %s13, 1
    %p171 = scmp.ne.s32.totalorder %s166, %s168
    %p172 = scmp.eq.s32.totalorder %s13, 0
    %p173 = por %p171, %p172
    %p174 = scmp.ne.s32.totalorder %s166, %s168
    %p175 = scmp.eq.s32.totalorder %s18, 1
    %p176 = por %p174, %p175
    %p177 = scmp.ne.s32.totalorder %s168, %s169
    %p178 = scmp.eq.s32.totalorder %s18, 0
    %p179 = por %p177, %p178
    %p180 = scmp.ne.s32.totalorder %s168, %s169
    %p181 = scmp.eq.s32.totalorder %s19, 1
    %p182 = por %p180, %p181
    %p184 = scmp.ne.s32.totalorder %s169, %s183
    %p185 = scmp.eq.s32.totalorder %s19, 0
    %p186 = por %p184, %p185
    %s187 = ssub.s32 %s20, %s32
    %p188 = scmp.eq.s32.totalorder %s187, 0
    %s190 = sadd.s32 %s189, 1
    %s191 = scalar_select %p188, %s189, %s190
    %p194 = pneg %p188
    %p195 = scmp.eq.s32.totalorder %s13, 1
    %p196 = por %p194, %p195
    %p197 = scmp.ne.s32.totalorder %s189, %s192
    %p198 = scmp.eq.s32.totalorder %s13, 0
    %p199 = por %p197, %p198
    %p200 = scmp.ne.s32.totalorder %s189, %s192
    %p201 = scmp.eq.s32.totalorder %s18, 1
    %p202 = por %p200, %p201
    %p203 = scmp.ne.s32.totalorder %s192, %s193
    %p204 = scmp.eq.s32.totalorder %s18, 0
    %p205 = por %p203, %p204
    %p206 = scmp.ne.s32.totalorder %s192, %s193
    %p207 = scmp.eq.s32.totalorder %s19, 1
    %p208 = por %p206, %p207
    %p210 = scmp.ne.s32.totalorder %s193, %s209
    %p211 = scmp.eq.s32.totalorder %s19, 0
    %p212 = por %p210, %p211
    %p213 = scmp.le.s32.totalorder 1, %s13
    %p214 = scmp.lt.s32.totalorder %s13, 3
    %p215 = pnand %p213, %p214
    %p216 = pneg %p215
    // Predicated region
    $region9: #{alignment_forward.3} parent=5 // pred_check
      _
    $region10: #{alignment_forward.3} parent=5 // pred_check_branch
      %218 = sbr.rel (%p215) target = $region12
    $region11: #{alignment_forward.3} parent=5 // pred_region
      %s219 = ssub.s32 %s13, 1
      // Predicated region
      $region13: #{alignment_forward.3} parent=11 // pred_check
        %p220 = pneg %p74
      $region14: #{alignment_forward.3} parent=11 // pred_check_branch
        %222 = sbr.rel (%p220) target = $region16
      $region15: #{alignment_forward.3} parent=11 // pred_region
        _
      $region16: #{alignment_forward.3} parent=11 // pred_fallthru
        _
      // Predicated region
      $region17: #{alignment_forward.3} parent=11 // pred_check
        %p223 = pneg %p95
      $region18: #{alignment_forward.3} parent=11 // pred_check_branch
        %225 = sbr.rel (%p223) target = $region20
      $region19: #{alignment_forward.3} parent=11 // pred_region
        _
      $region20: #{alignment_forward.3} parent=11 // pred_fallthru
        _
      // Predicated region
      $region21: #{alignment_forward.3} parent=11 // pred_check
        %p226 = pneg %p116
      $region22: #{alignment_forward.3} parent=11 // pred_check_branch
        %228 = sbr.rel (%p226) target = $region24
      $region23: #{alignment_forward.3} parent=11 // pred_region
        _
      $region24: #{alignment_forward.3} parent=11 // pred_fallthru
        _
      // Predicated region
      $region25: #{alignment_forward.3} parent=11 // pred_check
        %p229 = pneg %p137
      $region26: #{alignment_forward.3} parent=11 // pred_check_branch
        %231 = sbr.rel (%p229) target = $region28
      $region27: #{alignment_forward.3} parent=11 // pred_region
        _
      $region28: #{alignment_forward.3} parent=11 // pred_fallthru
        _
      // Predicated region
      $region29: #{alignment_forward.3} parent=11 // pred_check
        %p232 = pneg %p158
      $region30: #{alignment_forward.3} parent=11 // pred_check_branch
        %234 = sbr.rel (%p232) target = $region32
      $region31: #{alignment_forward.3} parent=11 // pred_region
        _
      $region32: #{alignment_forward.3} parent=11 // pred_fallthru
        _
      // Predicated region
      $region33: #{alignment_forward.3} parent=11 // pred_check
        %p235 = pneg %p179
      $region34: #{alignment_forward.3} parent=11 // pred_check_branch
        %237 = sbr.rel (%p235) target = $region36
      $region35: #{alignment_forward.3} parent=11 // pred_region
        _
      $region36: #{alignment_forward.3} parent=11 // pred_fallthru
        _
    $region12: #{alignment_forward.3} parent=5 // pred_fallthru
      _
    %p238 = scmp.lt.s32.totalorder %s13, 2
    // Predicated region
    $region37: #{alignment_forward.3} parent=5 // pred_check
      %p239 = pneg %p238
    $region38: #{alignment_forward.3} parent=5 // pred_check_branch
      %241 = sbr.rel (%p239) target = $region40
    $region39: #{alignment_forward.3} parent=5 // pred_region
      // Predicated region
      $region41: #{alignment_forward.3} parent=39 // pred_check
        %p242 = pneg %p47
      $region42: #{alignment_forward.3} parent=39 // pred_check_branch
        %244 = sbr.rel (%p242) target = $region44
      $region43: #{alignment_forward.3} parent=39 // pred_region
        %s245 = smul.u32 16, %s21
        %p246 = scmp.lt.s32.totalorder %s20, 1
        %s247 = scalar_select %p246, %s20, 1
        %p248 = scmp.lt.s32.totalorder %s245, 15
        %s249 = scalar_select %p248, %s245, 15
        %s250 = smul.addr %s247, 16
        %s251 = sadd.s32 %s249, %s250
        %s252 = smul.addr %s251, 4
        %s253 = scalar_lea.vmem %s0, %s252
        %s254 = smul.u32 16, %s21
      $region44: #{alignment_forward.3} parent=39 // pred_fallthru
        _
    $region40: #{alignment_forward.3} parent=5 // pred_fallthru
      _
    %p255 = scmp.le.s32.totalorder 1, %s13
    %p256 = scmp.lt.s32.totalorder %s13, 3
    %p257 = pnand %p255, %p256
    %p258 = pneg %p257
    // Predicated region
    $region45: #{alignment_forward.3} parent=5 // pred_check
      _
    $region46: #{alignment_forward.3} parent=5 // pred_check_branch
      %260 = sbr.rel (%p257) target = $region48
    $region47: #{alignment_forward.3} parent=5 // pred_region
      %s261 = ssub.s32 %s13, 1
      %s262 = smul.u32 16, %s23
      %p263 = scmp.lt.s32.totalorder %s22, 1
      %s264 = scalar_select %p263, %s22, 1
      %p265 = scmp.lt.s32.totalorder %s262, 15
      %s266 = scalar_select %p265, %s262, 15
      %s267 = smul.addr %s264, 16
      %s268 = sadd.s32 %s266, %s267
      %s269 = smul.addr %s268, 4
      %s270 = scalar_lea.vmem %s0, %s269
      %p271 = pneg %p53
      %p272 = pneg %p50
      %p273 = pneg %p74
      %p274 = pneg %p71
      %p275 = pneg %p95
      %p276 = pneg %p92
      %p277 = pneg %p116
      %p278 = pneg %p113
      %p279 = pneg %p137
      %p280 = pneg %p134
      %p281 = pneg %p158
      %p282 = pneg %p155
      %p283 = pneg %p179
      %p284 = pneg %p176
      %p285 = pneg %p205
      %p286 = pneg %p202
      %p287 = scmp.lt.s32.totalorder %s22, 1
      %s288 = scalar_select %p287, %s22, 1
      %s289 = smul.addr %s288, 8
      %s290 = scalar_lea.vmem %s7, %s289
      %s291 = smul.u32 16, %s23
      %p292 = scmp.lt.s32.totalorder %s22, 1
      %s293 = scalar_select %p292, %s22, 1
      %p294 = scmp.lt.s32.totalorder %s291, 15
      %s295 = scalar_select %p294, %s291, 15
      %s296 = smul.addr %s293, 16
      %s297 = sadd.s32 %s295, %s296
      %s298 = smul.addr %s297, 4
      %s299 = scalar_lea.vmem %s0, %s298
      %s300 = smul.u32 16, %s23
      %p301 = scmp.lt.s32.totalorder %s22, 1
      %s302 = scalar_select %p301, %s22, 1
      %s303 = smul.addr %s302, 8
      %s304 = scalar_lea.vmem %s7, %s303
      %p306 = scmp.eq.s32.totalorder %s23, 0
      // Predicated region
      $region49: #{alignment_forward.3} parent=47 // pred_check
        %p307 = pneg %p306
      $region50: #{alignment_forward.3} parent=47 // pred_check_branch
        %309 = sbr.rel (%p307) target = $region52
      $region51: #{alignment_forward.3} parent=47 // pred_region
        %310 = vst [vmem:[#allocation2] sm:$0xff] -inf
      $region52: #{alignment_forward.3} parent=47 // pred_fallthru
        _
      %v311 = vld [vmem:[%s299] sm:$0xf]
      %v312 = vld [vmem:[%s299 + $0x4] sm:$0xf]
      %v313 = vld [vmem:[%s299 + $0x8] sm:$0xf]
      %v314 = vld [vmem:[%s299 + $0xc] sm:$0xf]
      %v315 = vld [vmem:[%s299 + $0x10] sm:$0xf]
      %v316 = vld [vmem:[%s299 + $0x14] sm:$0xf]
      %v317 = vld [vmem:[%s299 + $0x18] sm:$0xf]
      %v318 = vld [vmem:[%s299 + $0x1c] sm:$0xf]
      %v319 = vld [vmem:[%s299 + $0x20] sm:$0xf]
      %v320 = vld [vmem:[%s299 + $0x24] sm:$0xf]
      %v321 = vld [vmem:[%s299 + $0x28] sm:$0xf]
      %v322 = vld [vmem:[%s299 + $0x2c] sm:$0xf]
      %v323 = vld [vmem:[%s299 + $0x30] sm:$0xf]
      %v324 = vld [vmem:[%s299 + $0x34] sm:$0xf]
      %v325 = vld [vmem:[%s299 + $0x38] sm:$0xf]
      %v326 = vld [vmem:[%s299 + $0x3c] sm:$0xf]
      %v327 = vld [vmem:[%s1] sm:$0xf]
      %v328 = vld [vmem:[%s2] sm:$0x1]
      %v330 = vlaneseq
      %v331 = vshrl.u32 %v330, 7
      %v332 = vsub.s32 0, %v331
      %v333 = vrot.slane %v328, %v332
      %v351 = vunpack.c.l.b16 %v311
      %v352 = vunpack.c.l.b16 %v312
      %v353 = vunpack.c.l.b16 %v313
      %v354 = vunpack.c.l.b16 %v314
      %v355 = vunpack.c.l.b16 %v315
      %v356 = vunpack.c.l.b16 %v316
      %v357 = vunpack.c.l.b16 %v317
      %v358 = vunpack.c.l.b16 %v318
      %v359 = vunpack.c.l.b16 %v319
      %v360 = vunpack.c.l.b16 %v320
      %v361 = vunpack.c.l.b16 %v321
      %v362 = vunpack.c.l.b16 %v322
      %v363 = vunpack.c.l.b16 %v323
      %v364 = vunpack.c.l.b16 %v324
      %v365 = vunpack.c.l.b16 %v325
      %v366 = vunpack.c.l.b16 %v326
      %v367 = vpack.c.b16 %v352, %v351
      %v368 = vpack.c.b16 %v354, %v353
      %v369 = vpack.c.b16 %v356, %v355
      %v370 = vpack.c.b16 %v358, %v357
      %v371 = vpack.c.b16 %v360, %v359
      %v372 = vpack.c.b16 %v362, %v361
      %v373 = vpack.c.b16 %v364, %v363
      %v374 = vpack.c.b16 %v366, %v365
      %vm375 = vcmask 64512
      %v377 = vsel %vm375, %v367, 0
      %v380 = vsel %vm375, %v368, 0
      %v383 = vsel %vm375, %v369, 0
      %v386 = vsel %vm375, %v370, 0
      %v389 = vsel %vm375, %v371, 0
      %v392 = vsel %vm375, %v372, 0
      %v395 = vsel %vm375, %v373, 0
      %v398 = vsel %vm375, %v374, 0
      %vm400 = vcmask 1043456
      %v402 = vsel %vm400, %v327, 0
      %404 = vmatprep.subr.bf16.mxu0 0
      %405 = vmatpush1.bf16.msra.mxu0 %v402
      %406 = vmatprep.subr.bf16.mxu0 0
      %407 = vmatpush1.bf16.msra.mxu0 0
      %408 = vmatprep.subr.bf16.mxu0 0
      %409 = vmatpush1.bf16.msra.mxu0 0
      %410 = vmatprep.subr.bf16.mxu0 0
      %411 = vmatpush1.bf16.msra.mxu0 0
      %412 = vmatprep.subr.bf16.mxu0 0
      %413 = vmatpush1.bf16.msra.mxu0 0
      %414 = vmatprep.subr.bf16.mxu0 0
      %415 = vmatpush1.bf16.msra.mxu0 0
      %416 = vmatprep.subr.bf16.mxu0 0
      %417 = vmatpush1.bf16.msra.mxu0 0
      %418 = vmatprep.subr.bf16.mxu0 0
      %419 = vmatpush1.bf16.msra.mxu0 0
      %420 = vmatprep.subr.bf16.mxu0 0
      %421 = vmatpush1.bf16.msra.mxu0 0
      %422 = vmatprep.subr.bf16.mxu0 0
      %423 = vmatpush1.bf16.msra.mxu0 0
      %424 = vmatprep.subr.bf16.mxu0 0
      %425 = vmatpush1.bf16.msra.mxu0 0
      %426 = vmatprep.subr.bf16.mxu0 0
      %427 = vmatpush1.bf16.msra.mxu0 0
      %428 = vmatprep.subr.bf16.mxu0 0
      %429 = vmatpush1.bf16.msra.mxu0 0
      %430 = vmatprep.subr.bf16.mxu0 0
      %431 = vmatpush1.bf16.msra.mxu0 0
      %432 = vmatprep.subr.bf16.mxu0 0
      %433 = vmatpush1.bf16.msra.mxu0 0
      %434 = vmatprep.subr.bf16.mxu0 0
      %435 = vmatpush1.bf16.msra.mxu0 0
      %436 = vmatprep.mubr.bf16.mxu0 0
      %437 = vmatmul.mubr.bf16.gmra.mrb[0].mxu0 %v377
      %v438 = vpop.f32.mrb[0].mxu0
      %v439 = vadd.f32 %v333, %v438
      %v440 = vpop.f32.mrb[0].mxu0
      %v441 = vpop.f32.mrb[0].mxu0
      %v442 = vadd.f32 %v333, %v441
      %v443 = vpop.f32.mrb[0].mxu0
      %444 = vmatprep.mubr.bf16.mxu0 0
      %445 = vmatmul.mubr.bf16.gmra.mrb[0].mxu0 %v380
      %v446 = vpop.f32.mrb[0].mxu0
      %v447 = vadd.f32 %v333, %v446
      %v448 = vpop.f32.mrb[0].mxu0
      %v449 = vpop.f32.mrb[0].mxu0
      %v450 = vadd.f32 %v333, %v449
      %v451 = vpop.f32.mrb[0].mxu0
      %452 = vmatprep.mubr.bf16.mxu0 0
      %453 = vmatmul.mubr.bf16.gmra.mrb[0].mxu0 %v383
      %v454 = vpop.f32.mrb[0].mxu0
      %v455 = vadd.f32 %v333, %v454
      %v456 = vpop.f32.mrb[0].mxu0
      %v457 = vpop.f32.mrb[0].mxu0
      %v458 = vadd.f32 %v333, %v457
      %v459 = vpop.f32.mrb[0].mxu0
      %460 = vmatprep.mubr.bf16.mxu0 0
      %461 = vmatmul.mubr.bf16.gmra.mrb[0].mxu0 %v386
      %v462 = vpop.f32.mrb[0].mxu0
      %v463 = vadd.f32 %v333, %v462
      %v464 = vpop.f32.mrb[0].mxu0
      %v465 = vpop.f32.mrb[0].mxu0
      %v466 = vadd.f32 %v333, %v465
      %v467 = vpop.f32.mrb[0].mxu0
      %468 = vmatprep.mubr.bf16.mxu0 0
      %469 = vmatmul.mubr.bf16.gmra.mrb[0].mxu0 %v389
      %v470 = vpop.f32.mrb[0].mxu0
      %v471 = vadd.f32 %v333, %v470
      %v472 = vpop.f32.mrb[0].mxu0
      %v473 = vpop.f32.mrb[0].mxu0
      %v474 = vadd.f32 %v333, %v473
      %v475 = vpop.f32.mrb[0].mxu0
      %476 = vmatprep.mubr.bf16.mxu0 0
      %477 = vmatmul.mubr.bf16.gmra.mrb[0].mxu0 %v392
      %v478 = vpop.f32.mrb[0].mxu0
      %v479 = vadd.f32 %v333, %v478
      %v480 = vpop.f32.mrb[0].mxu0
      %v481 = vpop.f32.mrb[0].mxu0
      %v482 = vadd.f32 %v333, %v481
      %v483 = vpop.f32.mrb[0].mxu0
      %484 = vmatprep.mubr.bf16.mxu0 0
      %485 = vmatmul.mubr.bf16.gmra.mrb[0].mxu0 %v395
      %v486 = vpop.f32.mrb[0].mxu0
      %v487 = vadd.f32 %v333, %v486
      %v488 = vpop.f32.mrb[0].mxu0
      %v489 = vpop.f32.mrb[0].mxu0
      %v490 = vadd.f32 %v333, %v489
      %v491 = vpop.f32.mrb[0].mxu0
      %492 = vmatprep.mubr.bf16.mxu0 0
      %493 = vmatmul.mubr.bf16.gmra.mrb[0].mxu0 %v398
      %v494 = vpop.f32.mrb[0].mxu0
      %v495 = vadd.f32 %v333, %v494
      %v496 = vpop.f32.mrb[0].mxu0
      %v497 = vpop.f32.mrb[0].mxu0
      %v498 = vadd.f32 %v333, %v497
      %v499 = vpop.f32.mrb[0].mxu0
      %500 = vdwg.mxu0
      %v501 = vmax.f32 %v439, 0.0
      %v502 = vmax.f32 %v442, 0.0
      %v503 = vmax.f32 %v447, 0.0
      %v504 = vmax.f32 %v450, 0.0
      %v505 = vmax.f32 %v455, 0.0
      %v506 = vmax.f32 %v458, 0.0
      %v507 = vmax.f32 %v463, 0.0
      %v508 = vmax.f32 %v466, 0.0
      %v509 = vmax.f32 %v471, 0.0
      %v510 = vmax.f32 %v474, 0.0
      %v511 = vmax.f32 %v479, 0.0
      %v512 = vmax.f32 %v482, 0.0
      %v513 = vmax.f32 %v487, 0.0
      %v514 = vmax.f32 %v490, 0.0
      %v515 = vmax.f32 %v495, 0.0
      %v516 = vmax.f32 %v498, 0.0
      %v517 = vpack.c.bf16 %v502, %v501
      %v518 = vpack.c.bf16 %v504, %v503
      %v519 = vpack.c.bf16 %v506, %v505
      %v520 = vpack.c.bf16 %v508, %v507
      %v521 = vpack.c.bf16 %v510, %v509
      %v522 = vpack.c.bf16 %v512, %v511
      %v523 = vpack.c.bf16 %v514, %v513
      %v524 = vpack.c.bf16 %v516, %v515
      %v525 = vld [vmem:[%s3] sm:$0xff]
      %v526 = vld [vmem:[%s3 + $0x8] sm:$0xff]
      %v527 = vld [vmem:[%s3 + $0x10] sm:$0xff]
      %v528 = vld [vmem:[%s3 + $0x18] sm:$0xff]
      %v529 = vld [vmem:[%s3 + $0x20] sm:$0xff]
      %v530 = vld [vmem:[%s3 + $0x28] sm:$0xff]
      %v531 = vld [vmem:[%s3 + $0x30] sm:$0xff]
      %v532 = vld [vmem:[%s3 + $0x38] sm:$0xff]
      %v533 = vld [vmem:[%s3 + $0x40] sm:$0xff]
      %v534 = vld [vmem:[%s3 + $0x48] sm:$0xff]
      %v535 = vld [vmem:[%s3 + $0x50] sm:$0xff]
      %v536 = vld [vmem:[%s3 + $0x58] sm:$0xff]
      %v537 = vld [vmem:[%s3 + $0x60] sm:$0xff]
      %v538 = vld [vmem:[%s3 + $0x68] sm:$0xff]
      %v539 = vld [vmem:[%s3 + $0x70] sm:$0xff]
      %v540 = vld [vmem:[%s3 + $0x78] sm:$0xff]
      %v541 = vld [vmem:[%s4] sm:$0x3]
      %v543 = vlaneseq
      %v544 = vshrl.u32 %v543, 7
      %v545 = vsub.s32 0, %v544
      %v546 = vrot.slane %v541, %v545
      %v547 = vlaneseq
      %v548 = vshrl.u32 %v547, 7
      %v549 = vsub.s32 1, %v548
      %v550 = vrot.slane %v541, %v549
      %v569 = vunpack.c.l.b16 %v525
      %v570 = vunpack.c.h.b16 %v525
      %v571 = vunpack.c.l.b16 %v526
      %v572 = vunpack.c.h.b16 %v526
      %v573 = vunpack.c.l.b16 %v527
      %v574 = vunpack.c.h.b16 %v527
      %v575 = vunpack.c.l.b16 %v528
      %v576 = vunpack.c.h.b16 %v528
      %v577 = vunpack.c.l.b16 %v529
      %v578 = vunpack.c.h.b16 %v529
      %v579 = vunpack.c.l.b16 %v530
      %v580 = vunpack.c.h.b16 %v530
      %v581 = vunpack.c.l.b16 %v531
      %v582 = vunpack.c.h.b16 %v531
      %v583 = vunpack.c.l.b16 %v532
      %v584 = vunpack.c.h.b16 %v532
      %v585 = vunpack.c.l.b16 %v533
      %v586 = vunpack.c.h.b16 %v533
      %v587 = vunpack.c.l.b16 %v534
      %v588 = vunpack.c.h.b16 %v534
      %v589 = vunpack.c.l.b16 %v535
      %v590 = vunpack.c.h.b16 %v535
      %v591 = vunpack.c.l.b16 %v536
      %v592 = vunpack.c.h.b16 %v536
      %v593 = vunpack.c.l.b16 %v537
      %v594 = vunpack.c.h.b16 %v537
      %v595 = vunpack.c.l.b16 %v538
      %v596 = vunpack.c.h.b16 %v538
      %v597 = vunpack.c.l.b16 %v539
      %v598 = vunpack.c.h.b16 %v539
      %v599 = vunpack.c.l.b16 %v540
      %v600 = vunpack.c.h.b16 %v540
      %v601 = vpack.c.b16 %v571, %v569
      %v602 = vpack.c.b16 %v572, %v570
      %v603 = vpack.c.b16 %v575, %v573
      %v604 = vpack.c.b16 %v576, %v574
      %v605 = vpack.c.b16 %v579, %v577
      %v606 = vpack.c.b16 %v580, %v578
      %v607 = vpack.c.b16 %v583, %v581
      %v608 = vpack.c.b16 %v584, %v582
      %v609 = vpack.c.b16 %v587, %v585
      %v610 = vpack.c.b16 %v588, %v586
      %v611 = vpack.c.b16 %v591, %v589
      %v612 = vpack.c.b16 %v592, %v590
      %v613 = vpack.c.b16 %v595, %v593
      %v614 = vpack.c.b16 %v596, %v594
      %v615 = vpack.c.b16 %v599, %v597
      %v616 = vpack.c.b16 %v600, %v598
      %633 = vmatprep.subr.bf16.mxu0 %v602
      %634 = vmatpush1.bf16.msra.mxu0 %v601
      %635 = vmatprep.subr.bf16.mxu0 %v604
      %636 = vmatpush1.bf16.msra.mxu0 %v603
      %637 = vmatprep.subr.bf16.mxu0 %v606
      %638 = vmatpush1.bf16.msra.mxu0 %v605
      %639 = vmatprep.subr.bf16.mxu0 %v608
      %640 = vmatpush1.bf16.msra.mxu0 %v607
      %641 = vmatprep.subr.bf16.mxu0 %v610
      %642 = vmatpush1.bf16.msra.mxu0 %v609
      %643 = vmatprep.subr.bf16.mxu0 %v612
      %644 = vmatpush1.bf16.msra.mxu0 %v611
      %645 = vmatprep.subr.bf16.mxu0 %v614
      %646 = vmatpush1.bf16.msra.mxu0 %v613
      %647 = vmatprep.subr.bf16.mxu0 %v616
      %648 = vmatpush1.bf16.msra.mxu0 %v615
      %649 = vmatprep.subr.bf16.mxu0 0
      %650 = vmatpush1.bf16.msra.mxu0 0
      %651 = vmatprep.subr.bf16.mxu0 0
      %652 = vmatpush1.bf16.msra.mxu0 0
      %653 = vmatprep.subr.bf16.mxu0 0
      %654 = vmatpush1.bf16.msra.mxu0 0
      %655 = vmatprep.subr.bf16.mxu0 0
      %656 = vmatpush1.bf16.msra.mxu0 0
      %657 = vmatprep.subr.bf16.mxu0 0
      %658 = vmatpush1.bf16.msra.mxu0 0
      %659 = vmatprep.subr.bf16.mxu0 0
      %660 = vmatpush1.bf16.msra.mxu0 0
      %661 = vmatprep.subr.bf16.mxu0 0
      %662 = vmatpush1.bf16.msra.mxu0 0
      %663 = vmatprep.subr.bf16.mxu0 0
      %664 = vmatpush1.bf16.msra.mxu0 0
      %665 = vmatprep.mubr.bf16.mxu0 0
      %666 = vmatmul.mubr.bf16.gmra.mrb[0].mxu0 %v517
      %v667 = vpop.f32.mrb[0].mxu0
      %v668 = vadd.f32 %v546, %v667
      %v669 = vpop.f32.mrb[0].mxu0
      %v670 = vadd.f32 %v550, %v669
      %v671 = vpop.f32.mrb[0].mxu0
      %v672 = vadd.f32 %v546, %v671
      %v673 = vpop.f32.mrb[0].mxu0
      %v674 = vadd.f32 %v550, %v673
      %675 = vmatprep.mubr.bf16.mxu0 0
      %676 = vmatmul.mubr.bf16.gmra.mrb[0].mxu0 %v518
      %v677 = vpop.f32.mrb[0].mxu0
      %v678 = vadd.f32 %v546, %v677
      %v679 = vpop.f32.mrb[0].mxu0
      %v680 = vadd.f32 %v550, %v679
      %v681 = vpop.f32.mrb[0].mxu0
      %v682 = vadd.f32 %v546, %v681
      %v683 = vpop.f32.mrb[0].mxu0
      %v684 = vadd.f32 %v550, %v683
      %685 = vmatprep.mubr.bf16.mxu0 0
      %686 = vmatmul.mubr.bf16.gmra.mrb[0].mxu0 %v519
      %v687 = vpop.f32.mrb[0].mxu0
      %v688 = vadd.f32 %v546, %v687
      %v689 = vpop.f32.mrb[0].mxu0
      %v690 = vadd.f32 %v550, %v689
      %v691 = vpop.f32.mrb[0].mxu0
      %v692 = vadd.f32 %v546, %v691
      %v693 = vpop.f32.mrb[0].mxu0
      %v694 = vadd.f32 %v550, %v693
      %695 = vmatprep.mubr.bf16.mxu0 0
      %696 = vmatmul.mubr.bf16.gmra.mrb[0].mxu0 %v520
      %v697 = vpop.f32.mrb[0].mxu0
      %v698 = vadd.f32 %v546, %v697
      %v699 = vpop.f32.mrb[0].mxu0
      %v700 = vadd.f32 %v550, %v699
      %v701 = vpop.f32.mrb[0].mxu0
      %v702 = vadd.f32 %v546, %v701
      %v703 = vpop.f32.mrb[0].mxu0
      %v704 = vadd.f32 %v550, %v703
      %705 = vmatprep.mubr.bf16.mxu0 0
      %706 = vmatmul.mubr.bf16.gmra.mrb[0].mxu0 %v521
      %v707 = vpop.f32.mrb[0].mxu0
      %v708 = vadd.f32 %v546, %v707
      %v709 = vpop.f32.mrb[0].mxu0
      %v710 = vadd.f32 %v550, %v709
      %v711 = vpop.f32.mrb[0].mxu0
      %v712 = vadd.f32 %v546, %v711
      %v713 = vpop.f32.mrb[0].mxu0
      %v714 = vadd.f32 %v550, %v713
      %715 = vmatprep.mubr.bf16.mxu0 0
      %716 = vmatmul.mubr.bf16.gmra.mrb[0].mxu0 %v522
      %v717 = vpop.f32.mrb[0].mxu0
      %v718 = vadd.f32 %v546, %v717
      %v719 = vpop.f32.mrb[0].mxu0
      %v720 = vadd.f32 %v550, %v719
      %v721 = vpop.f32.mrb[0].mxu0
      %v722 = vadd.f32 %v546, %v721
      %v723 = vpop.f32.mrb[0].mxu0
      %v724 = vadd.f32 %v550, %v723
      %725 = vmatprep.mubr.bf16.mxu0 0
      %726 = vmatmul.mubr.bf16.gmra.mrb[0].mxu0 %v523
      %v727 = vpop.f32.mrb[0].mxu0
      %v728 = vadd.f32 %v546, %v727
      %v729 = vpop.f32.mrb[0].mxu0
      %v730 = vadd.f32 %v550, %v729
      %v731 = vpop.f32.mrb[0].mxu0
      %v732 = vadd.f32 %v546, %v731
      %v733 = vpop.f32.mrb[0].mxu0
      %v734 = vadd.f32 %v550, %v733
      %735 = vmatprep.mubr.bf16.mxu0 0
      %736 = vmatmul.mubr.bf16.gmra.mrb[0].mxu0 %v524
      %v737 = vpop.f32.mrb[0].mxu0
      %v738 = vadd.f32 %v546, %v737
      %v739 = vpop.f32.mrb[0].mxu0
      %v740 = vadd.f32 %v550, %v739
      %v741 = vpop.f32.mrb[0].mxu0
      %v742 = vadd.f32 %v546, %v741
      %v743 = vpop.f32.mrb[0].mxu0
      %v744 = vadd.f32 %v550, %v743
      %745 = vdwg.mxu0
      %v746 = vmax.f32 %v668, 0.0
      %v747 = vmax.f32 %v670, 0.0
      %v748 = vmax.f32 %v672, 0.0
      %v749 = vmax.f32 %v674, 0.0
      %v750 = vmax.f32 %v678, 0.0
      %v751 = vmax.f32 %v680, 0.0
      %v752 = vmax.f32 %v682, 0.0
      %v753 = vmax.f32 %v684, 0.0
      %v754 = vmax.f32 %v688, 0.0
      %v755 = vmax.f32 %v690, 0.0
      %v756 = vmax.f32 %v692, 0.0
      %v757 = vmax.f32 %v694, 0.0
      %v758 = vmax.f32 %v698, 0.0
      %v759 = vmax.f32 %v700, 0.0
      %v760 = vmax.f32 %v702, 0.0
      %v761 = vmax.f32 %v704, 0.0
      %v762 = vmax.f32 %v708, 0.0
      %v763 = vmax.f32 %v710, 0.0
      %v764 = vmax.f32 %v712, 0.0
      %v765 = vmax.f32 %v714, 0.0
      %v766 = vmax.f32 %v718, 0.0
      %v767 = vmax.f32 %v720, 0.0
      %v768 = vmax.f32 %v722, 0.0
      %v769 = vmax.f32 %v724, 0.0
      %v770 = vmax.f32 %v728, 0.0
      %v771 = vmax.f32 %v730, 0.0
      %v772 = vmax.f32 %v732, 0.0
      %v773 = vmax.f32 %v734, 0.0
      %v774 = vmax.f32 %v738, 0.0
      %v775 = vmax.f32 %v740, 0.0
      %v776 = vmax.f32 %v742, 0.0
      %v777 = vmax.f32 %v744, 0.0
      %v778 = vpack.c.bf16 %v748, %v746
      %v779 = vpack.c.bf16 %v749, %v747
      %v780 = vpack.c.bf16 %v752, %v750
      %v781 = vpack.c.bf16 %v753, %v751
      %v782 = vpack.c.bf16 %v756, %v754
      %v783 = vpack.c.bf16 %v757, %v755
      %v784 = vpack.c.bf16 %v760, %v758
      %v785 = vpack.c.bf16 %v761, %v759
      %v786 = vpack.c.bf16 %v764, %v762
      %v787 = vpack.c.bf16 %v765, %v763
      %v788 = vpack.c.bf16 %v768, %v766
      %v789 = vpack.c.bf16 %v769, %v767
      %v790 = vpack.c.bf16 %v772, %v770
      %v791 = vpack.c.bf16 %v773, %v771
      %v792 = vpack.c.bf16 %v776, %v774
      %v793 = vpack.c.bf16 %v777, %v775
      %v794 = vld [vmem:[%s5] sm:$0xff]
      %v795 = vld [vmem:[%s5 + $0x8] sm:$0xff]
      %v796 = vld [vmem:[%s5 + $0x10] sm:$0xff]
      %v797 = vld [vmem:[%s5 + $0x18] sm:$0xff]
      %v798 = vld [vmem:[%s5 + $0x20] sm:$0xff]
      %v799 = vld [vmem:[%s5 + $0x28] sm:$0xff]
      %v800 = vld [vmem:[%s5 + $0x30] sm:$0xff]
      %v801 = vld [vmem:[%s5 + $0x38] sm:$0xff]
      %v802 = vld [vmem:[%s5 + $0x40] sm:$0xff]
      %v803 = vld [vmem:[%s5 + $0x48] sm:$0xff]
      %v804 = vld [vmem:[%s5 + $0x50] sm:$0xff]
      %v805 = vld [vmem:[%s5 + $0x58] sm:$0xff]
      %v806 = vld [vmem:[%s5 + $0x60] sm:$0xff]
      %v807 = vld [vmem:[%s5 + $0x68] sm:$0xff]
      %v808 = vld [vmem:[%s5 + $0x70] sm:$0xff]
      %v809 = vld [vmem:[%s5 + $0x78] sm:$0xff]
      %v810 = vld [vmem:[%s5 + $0x80] sm:$0xff]
      %v811 = vld [vmem:[%s5 + $0x88] sm:$0xff]
      %v812 = vld [vmem:[%s5 + $0x90] sm:$0xff]
      %v813 = vld [vmem:[%s5 + $0x98] sm:$0xff]
      %v814 = vld [vmem:[%s5 + $0xa0] sm:$0xff]
      %v815 = vld [vmem:[%s5 + $0xa8] sm:$0xff]
      %v816 = vld [vmem:[%s5 + $0xb0] sm:$0xff]
      %v817 = vld [vmem:[%s5 + $0xb8] sm:$0xff]
      %v818 = vld [vmem:[%s5 + $0xc0] sm:$0xff]
      %v819 = vld [vmem:[%s5 + $0xc8] sm:$0xff]
      %v820 = vld [vmem:[%s5 + $0xd0] sm:$0xff]
      %v821 = vld [vmem:[%s5 + $0xd8] sm:$0xff]
      %v822 = vld [vmem:[%s5 + $0xe0] sm:$0xff]
      %v823 = vld [vmem:[%s5 + $0xe8] sm:$0xff]
      %v824 = vld [vmem:[%s5 + $0xf0] sm:$0xff]
      %v825 = vld [vmem:[%s5 + $0xf8] sm:$0xff]
      %v826 = vld [vmem:[%s5 + $0x100] sm:$0xff]
      %v827 = vld [vmem:[%s5 + $0x108] sm:$0xff]
      %v828 = vld [vmem:[%s5 + $0x110] sm:$0xff]
      %v829 = vld [vmem:[%s5 + $0x118] sm:$0xff]
      %v830 = vld [vmem:[%s5 + $0x120] sm:$0xff]
      %v831 = vld [vmem:[%s5 + $0x128] sm:$0xff]
      %v832 = vld [vmem:[%s5 + $0x130] sm:$0xff]
      %v833 = vld [vmem:[%s5 + $0x138] sm:$0xff]
      %v834 = vld [vmem:[%s5 + $0x140] sm:$0xff]
      %v835 = vld [vmem:[%s5 + $0x148] sm:$0xff]
      %v836 = vld [vmem:[%s5 + $0x150] sm:$0xff]
      %v837 = vld [vmem:[%s5 + $0x158] sm:$0xff]
      %v838 = vld [vmem:[%s5 + $0x160] sm:$0xff]
      %v839 = vld [vmem:[%s5 + $0x168] sm:$0xff]
      %v840 = vld [vmem:[%s5 + $0x170] sm:$0xff]
      %v841 = vld [vmem:[%s5 + $0x178] sm:$0xff]
      %v842 = vld [vmem:[%s5 + $0x180] sm:$0xff]
      %v843 = vld [vmem:[%s5 + $0x188] sm:$0xff]
      %v844 = vld [vmem:[%s5 + $0x190] sm:$0xff]
      %v845 = vld [vmem:[%s5 + $0x198] sm:$0xff]
      %v846 = vld [vmem:[%s5 + $0x1a0] sm:$0xff]
      %v847 = vld [vmem:[%s5 + $0x1a8] sm:$0xff]
      %v848 = vld [vmem:[%s5 + $0x1b0] sm:$0xff]
      %v849 = vld [vmem:[%s5 + $0x1b8] sm:$0xff]
      %v850 = vld [vmem:[%s5 + $0x1c0] sm:$0xff]
      %v851 = vld [vmem:[%s5 + $0x1c8] sm:$0xff]
      %v852 = vld [vmem:[%s5 + $0x1d0] sm:$0xff]
      %v853 = vld [vmem:[%s5 + $0x1d8] sm:$0xff]
      %v854 = vld [vmem:[%s5 + $0x1e0] sm:$0xff]
      %v855 = vld [vmem:[%s5 + $0x1e8] sm:$0xff]
      %v856 = vld [vmem:[%s5 + $0x1f0] sm:$0xff]
      %v857 = vld [vmem:[%s5 + $0x1f8] sm:$0xff]
      %v858 = vld [vmem:[%s5 + $0x200] sm:$0xff]
      %v859 = vld [vmem:[%s5 + $0x208] sm:$0xff]
      %v860 = vld [vmem:[%s5 + $0x210] sm:$0xff]
      %v861 = vld [vmem:[%s5 + $0x218] sm:$0xff]
      %v862 = vld [vmem:[%s5 + $0x220] sm:$0xff]
      %v863 = vld [vmem:[%s5 + $0x228] sm:$0xff]
      %v864 = vld [vmem:[%s5 + $0x230] sm:$0xff]
      %v865 = vld [vmem:[%s5 + $0x238] sm:$0xff]
      %v866 = vld [vmem:[%s5 + $0x240] sm:$0xff]
      %v867 = vld [vmem:[%s5 + $0x248] sm:$0xff]
      %v868 = vld [vmem:[%s5 + $0x250] sm:$0xff]
      %v869 = vld [vmem:[%s5 + $0x258] sm:$0xff]
      %v870 = vld [vmem:[%s5 + $0x260] sm:$0xff]
      %v871 = vld [vmem:[%s5 + $0x268] sm:$0xff]
      %v872 = vld [vmem:[%s5 + $0x270] sm:$0xff]
      %v873 = vld [vmem:[%s5 + $0x278] sm:$0xff]
      %v874 = vld [vmem:[%s5 + $0x280] sm:$0xff]
      %v875 = vld [vmem:[%s5 + $0x288] sm:$0xff]
      %v876 = vld [vmem:[%s5 + $0x290] sm:$0xff]
      %v877 = vld [vmem:[%s5 + $0x298] sm:$0xff]
      %v878 = vld [vmem:[%s5 + $0x2a0] sm:$0xff]
      %v879 = vld [vmem:[%s5 + $0x2a8] sm:$0xff]
      %v880 = vld [vmem:[%s5 + $0x2b0] sm:$0xff]
      %v881 = vld [vmem:[%s5 + $0x2b8] sm:$0xff]
      %v882 = vld [vmem:[%s5 + $0x2c0] sm:$0xff]
      %v883 = vld [vmem:[%s5 + $0x2c8] sm:$0xff]
      %v884 = vld [vmem:[%s5 + $0x2d0] sm:$0xff]
      %v885 = vld [vmem:[%s5 + $0x2d8] sm:$0xff]
      %v886 = vld [vmem:[%s5 + $0x2e0] sm:$0xff]
      %v887 = vld [vmem:[%s5 + $0x2e8] sm:$0xff]
      %v888 = vld [vmem:[%s5 + $0x2f0] sm:$0xff]
      %v889 = vld [vmem:[%s5 + $0x2f8] sm:$0xff]
      %v890 = vld [vmem:[%s5 + $0x300] sm:$0xff]
      %v891 = vld [vmem:[%s5 + $0x308] sm:$0xff]
      %v892 = vld [vmem:[%s5 + $0x310] sm:$0xff]
      %v893 = vld [vmem:[%s5 + $0x318] sm:$0xff]
      %v894 = vld [vmem:[%s5 + $0x320] sm:$0xff]
      %v895 = vld [vmem:[%s5 + $0x328] sm:$0xff]
      %v896 = vld [vmem:[%s5 + $0x330] sm:$0xff]
      %v897 = vld [vmem:[%s5 + $0x338] sm:$0xff]
      %v898 = vld [vmem:[%s5 + $0x340] sm:$0xff]
      %v899 = vld [vmem:[%s5 + $0x348] sm:$0xff]
      %v900 = vld [vmem:[%s5 + $0x350] sm:$0xff]
      %v901 = vld [vmem:[%s5 + $0x358] sm:$0xff]
      %v902 = vld [vmem:[%s5 + $0x360] sm:$0xff]
      %v903 = vld [vmem:[%s5 + $0x368] sm:$0xff]
      %v904 = vld [vmem:[%s5 + $0x370] sm:$0xff]
      %v905 = vld [vmem:[%s5 + $0x378] sm:$0xff]
      %v906 = vld [vmem:[%s5 + $0x380] sm:$0xff]
      %v907 = vld [vmem:[%s5 + $0x388] sm:$0xff]
      %v908 = vld [vmem:[%s5 + $0x390] sm:$0xff]
      %v909 = vld [vmem:[%s5 + $0x398] sm:$0xff]
      %v910 = vld [vmem:[%s5 + $0x3a0] sm:$0xff]
      %v911 = vld [vmem:[%s5 + $0x3a8] sm:$0xff]
      %v912 = vld [vmem:[%s5 + $0x3b0] sm:$0xff]
      %v913 = vld [vmem:[%s5 + $0x3b8] sm:$0xff]
      %v914 = vld [vmem:[%s5 + $0x3c0] sm:$0xff]
      %v915 = vld [vmem:[%s5 + $0x3c8] sm:$0xff]
      %v916 = vld [vmem:[%s5 + $0x3d0] sm:$0xff]
      %v917 = vld [vmem:[%s5 + $0x3d8] sm:$0xff]
      %v918 = vld [vmem:[%s5 + $0x3e0] sm:$0xff]
      %v919 = vld [vmem:[%s5 + $0x3e8] sm:$0xff]
      %v920 = vld [vmem:[%s5 + $0x3f0] sm:$0xff]
      %v921 = vld [vmem:[%s5 + $0x3f8] sm:$0xff]
      %v922 = vld [vmem:[%s6] sm:$0xff]
      %v924 = vlaneseq
      %v925 = vshrl.u32 %v924, 7
      %v926 = vsub.s32 0, %v925
      %v927 = vrot.slane %v922, %v926
      %v928 = vlaneseq
      %v929 = vshrl.u32 %v928, 7
      %v930 = vsub.s32 1, %v929
      %v931 = vrot.slane %v922, %v930
      %v932 = vlaneseq
      %v933 = vshrl.u32 %v932, 7
      %v934 = vsub.s32 2, %v933
      %v935 = vrot.slane %v922, %v934
      %v936 = vlaneseq
      %v937 = vshrl.u32 %v936, 7
      %v938 = vsub.s32 3, %v937
      %v939 = vrot.slane %v922, %v938
      %v940 = vlaneseq
      %v941 = vshrl.u32 %v940, 7
      %v942 = vsub.s32 4, %v941
      %v943 = vrot.slane %v922, %v942
      %v944 = vlaneseq
      %v945 = vshrl.u32 %v944, 7
      %v946 = vsub.s32 5, %v945
      %v947 = vrot.slane %v922, %v946
      %v948 = vlaneseq
      %v949 = vshrl.u32 %v948, 7
      %v950 = vsub.s32 6, %v949
      %v951 = vrot.slane %v922, %v950
      %v952 = vlaneseq
      %v953 = vshrl.u32 %v952, 7
      %v954 = vsub.s32 7, %v953
      %v955 = vrot.slane %v922, %v954
      %v1092 = vunpack.c.l.b16 %v794
      %v1093 = vunpack.c.h.b16 %v794
      %v1094 = vunpack.c.l.b16 %v795
      %v1095 = vunpack.c.h.b16 %v795
      %v1096 = vunpack.c.l.b16 %v796
      %v1097 = vunpack.c.h.b16 %v796
      %v1098 = vunpack.c.l.b16 %v797
      %v1099 = vunpack.c.h.b16 %v797
      %v1100 = vunpack.c.l.b16 %v798
      %v1101 = vunpack.c.h.b16 %v798
      %v1102 = vunpack.c.l.b16 %v799
      %v1103 = vunpack.c.h.b16 %v799
      %v1104 = vunpack.c.l.b16 %v800
      %v1105 = vunpack.c.h.b16 %v800
      %v1106 = vunpack.c.l.b16 %v801
      %v1107 = vunpack.c.h.b16 %v801
      %v1108 = vunpack.c.l.b16 %v802
      %v1109 = vunpack.c.h.b16 %v802
      %v1110 = vunpack.c.l.b16 %v803
      %v1111 = vunpack.c.h.b16 %v803
      %v1112 = vunpack.c.l.b16 %v804
      %v1113 = vunpack.c.h.b16 %v804
      %v1114 = vunpack.c.l.b16 %v805
      %v1115 = vunpack.c.h.b16 %v805
      %v1116 = vunpack.c.l.b16 %v806
      %v1117 = vunpack.c.h.b16 %v806
      %v1118 = vunpack.c.l.b16 %v807
      %v1119 = vunpack.c.h.b16 %v807
      %v1120 = vunpack.c.l.b16 %v808
      %v1121 = vunpack.c.h.b16 %v808
      %v1122 = vunpack.c.l.b16 %v809
      %v1123 = vunpack.c.h.b16 %v809
      %v1124 = vunpack.c.l.b16 %v810
      %v1125 = vunpack.c.h.b16 %v810
      %v1126 = vunpack.c.l.b16 %v811
      %v1127 = vunpack.c.h.b16 %v811
      %v1128 = vunpack.c.l.b16 %v812
      %v1129 = vunpack.c.h.b16 %v812
      %v1130 = vunpack.c.l.b16 %v813
      %v1131 = vunpack.c.h.b16 %v813
      %v1132 = vunpack.c.l.b16 %v814
      %v1133 = vunpack.c.h.b16 %v814
      %v1134 = vunpack.c.l.b16 %v815
      %v1135 = vunpack.c.h.b16 %v815
      %v1136 = vunpack.c.l.b16 %v816
      %v1137 = vunpack.c.h.b16 %v816
      %v1138 = vunpack.c.l.b16 %v817
      %v1139 = vunpack.c.h.b16 %v817
      %v1140 = vunpack.c.l.b16 %v818
      %v1141 = vunpack.c.h.b16 %v818
      %v1142 = vunpack.c.l.b16 %v819
      %v1143 = vunpack.c.h.b16 %v819
      %v1144 = vunpack.c.l.b16 %v820
      %v1145 = vunpack.c.h.b16 %v820
      %v1146 = vunpack.c.l.b16 %v821
      %v1147 = vunpack.c.h.b16 %v821
      %v1148 = vunpack.c.l.b16 %v822
      %v1149 = vunpack.c.h.b16 %v822
      %v1150 = vunpack.c.l.b16 %v823
      %v1151 = vunpack.c.h.b16 %v823
      %v1152 = vunpack.c.l.b16 %v824
      %v1153 = vunpack.c.h.b16 %v824
      %v1154 = vunpack.c.l.b16 %v825
      %v1155 = vunpack.c.h.b16 %v825
      %v1156 = vunpack.c.l.b16 %v826
      %v1157 = vunpack.c.h.b16 %v826
      %v1158 = vunpack.c.l.b16 %v827
      %v1159 = vunpack.c.h.b16 %v827
      %v1160 = vunpack.c.l.b16 %v828
      %v1161 = vunpack.c.h.b16 %v828
      %v1162 = vunpack.c.l.b16 %v829
      %v1163 = vunpack.c.h.b16 %v829
      %v1164 = vunpack.c.l.b16 %v830
      %v1165 = vunpack.c.h.b16 %v830
      %v1166 = vunpack.c.l.b16 %v831
      %v1167 = vunpack.c.h.b16 %v831
      %v1168 = vunpack.c.l.b16 %v832
      %v1169 = vunpack.c.h.b16 %v832
      %v1170 = vunpack.c.l.b16 %v833
      %v1171 = vunpack.c.h.b16 %v833
      %v1172 = vunpack.c.l.b16 %v834
      %v1173 = vunpack.c.h.b16 %v834
      %v1174 = vunpack.c.l.b16 %v835
      %v1175 = vunpack.c.h.b16 %v835
      %v1176 = vunpack.c.l.b16 %v836
      %v1177 = vunpack.c.h.b16 %v836
      %v1178 = vunpack.c.l.b16 %v837
      %v1179 = vunpack.c.h.b16 %v837
      %v1180 = vunpack.c.l.b16 %v838
      %v1181 = vunpack.c.h.b16 %v838
      %v1182 = vunpack.c.l.b16 %v839
      %v1183 = vunpack.c.h.b16 %v839
      %v1184 = vunpack.c.l.b16 %v840
      %v1185 = vunpack.c.h.b16 %v840
      %v1186 = vunpack.c.l.b16 %v841
      %v1187 = vunpack.c.h.b16 %v841
      %v1188 = vunpack.c.l.b16 %v842
      %v1189 = vunpack.c.h.b16 %v842
      %v1190 = vunpack.c.l.b16 %v843
      %v1191 = vunpack.c.h.b16 %v843
      %v1192 = vunpack.c.l.b16 %v844
      %v1193 = vunpack.c.h.b16 %v844
      %v1194 = vunpack.c.l.b16 %v845
      %v1195 = vunpack.c.h.b16 %v845
      %v1196 = vunpack.c.l.b16 %v846
      %v1197 = vunpack.c.h.b16 %v846
      %v1198 = vunpack.c.l.b16 %v847
      %v1199 = vunpack.c.h.b16 %v847
      %v1200 = vunpack.c.l.b16 %v848
      %v1201 = vunpack.c.h.b16 %v848
      %v1202 = vunpack.c.l.b16 %v849
      %v1203 = vunpack.c.h.b16 %v849
      %v1204 = vunpack.c.l.b16 %v850
      %v1205 = vunpack.c.h.b16 %v850
      %v1206 = vunpack.c.l.b16 %v851
      %v1207 = vunpack.c.h.b16 %v851
      %v1208 = vunpack.c.l.b16 %v852
      %v1209 = vunpack.c.h.b16 %v852
      %v1210 = vunpack.c.l.b16 %v853
      %v1211 = vunpack.c.h.b16 %v853
      %v1212 = vunpack.c.l.b16 %v854
      %v1213 = vunpack.c.h.b16 %v854
      %v1214 = vunpack.c.l.b16 %v855
      %v1215 = vunpack.c.h.b16 %v855
      %v1216 = vunpack.c.l.b16 %v856
      %v1217 = vunpack.c.h.b16 %v856
      %v1218 = vunpack.c.l.b16 %v857
      %v1219 = vunpack.c.h.b16 %v857
      %v1220 = vunpack.c.l.b16 %v858
      %v1221 = vunpack.c.h.b16 %v858
      %v1222 = vunpack.c.l.b16 %v859
      %v1223 = vunpack.c.h.b16 %v859
      %v1224 = vunpack.c.l.b16 %v860
      %v1225 = vunpack.c.h.b16 %v860
      %v1226 = vunpack.c.l.b16 %v861
      %v1227 = vunpack.c.h.b16 %v861
      %v1228 = vunpack.c.l.b16 %v862
      %v1229 = vunpack.c.h.b16 %v862
      %v1230 = vunpack.c.l.b16 %v863
      %v1231 = vunpack.c.h.b16 %v863
      %v1232 = vunpack.c.l.b16 %v864
      %v1233 = vunpack.c.h.b16 %v864
      %v1234 = vunpack.c.l.b16 %v865
      %v1235 = vunpack.c.h.b16 %v865
      %v1236 = vunpack.c.l.b16 %v866
      %v1237 = vunpack.c.h.b16 %v866
      %v1238 = vunpack.c.l.b16 %v867
      %v1239 = vunpack.c.h.b16 %v867
      %v1240 = vunpack.c.l.b16 %v868
      %v1241 = vunpack.c.h.b16 %v868
      %v1242 = vunpack.c.l.b16 %v869
      %v1243 = vunpack.c.h.b16 %v869
      %v1244 = vunpack.c.l.b16 %v870
      %v1245 = vunpack.c.h.b16 %v870
      %v1246 = vunpack.c.l.b16 %v871
      %v1247 = vunpack.c.h.b16 %v871
      %v1248 = vunpack.c.l.b16 %v872
      %v1249 = vunpack.c.h.b16 %v872
      %v1250 = vunpack.c.l.b16 %v873
      %v1251 = vunpack.c.h.b16 %v873
      %v1252 = vunpack.c.l.b16 %v874
      %v1253 = vunpack.c.h.b16 %v874
      %v1254 = vunpack.c.l.b16 %v875
      %v1255 = vunpack.c.h.b16 %v875
      %v1256 = vunpack.c.l.b16 %v876
      %v1257 = vunpack.c.h.b16 %v876
      %v1258 = vunpack.c.l.b16 %v877
      %v1259 = vunpack.c.h.b16 %v877
      %v1260 = vunpack.c.l.b16 %v878
      %v1261 = vunpack.c.h.b16 %v878
      %v1262 = vunpack.c.l.b16 %v879
      %v1263 = vunpack.c.h.b16 %v879
      %v1264 = vunpack.c.l.b16 %v880
      %v1265 = vunpack.c.h.b16 %v880
      %v1266 = vunpack.c.l.b16 %v881
      %v1267 = vunpack.c.h.b16 %v881
      %v1268 = vunpack.c.l.b16 %v882
      %v1269 = vunpack.c.h.b16 %v882
      %v1270 = vunpack.c.l.b16 %v883
      %v1271 = vunpack.c.h.b16 %v883
      %v1272 = vunpack.c.l.b16 %v884
      %v1273 = vunpack.c.h.b16 %v884
      %v1274 = vunpack.c.l.b16 %v885
      %v1275 = vunpack.c.h.b16 %v885
      %v1276 = vunpack.c.l.b16 %v886
      %v1277 = vunpack.c.h.b16 %v886
      %v1278 = vunpack.c.l.b16 %v887
      %v1279 = vunpack.c.h.b16 %v887
      %v1280 = vunpack.c.l.b16 %v888
      %v1281 = vunpack.c.h.b16 %v888
      %v1282 = vunpack.c.l.b16 %v889
      %v1283 = vunpack.c.h.b16 %v889
      %v1284 = vunpack.c.l.b16 %v890
      %v1285 = vunpack.c.h.b16 %v890
      %v1286 = vunpack.c.l.b16 %v891
      %v1287 = vunpack.c.h.b16 %v891
      %v1288 = vunpack.c.l.b16 %v892
      %v1289 = vunpack.c.h.b16 %v892
      %v1290 = vunpack.c.l.b16 %v893
      %v1291 = vunpack.c.h.b16 %v893
      %v1292 = vunpack.c.l.b16 %v894
      %v1293 = vunpack.c.h.b16 %v894
      %v1294 = vunpack.c.l.b16 %v895
      %v1295 = vunpack.c.h.b16 %v895
      %v1296 = vunpack.c.l.b16 %v896
      %v1297 = vunpack.c.h.b16 %v896
      %v1298 = vunpack.c.l.b16 %v897
      %v1299 = vunpack.c.h.b16 %v897
      %v1300 = vunpack.c.l.b16 %v898
      %v1301 = vunpack.c.h.b16 %v898
      %v1302 = vunpack.c.l.b16 %v899
      %v1303 = vunpack.c.h.b16 %v899
      %v1304 = vunpack.c.l.b16 %v900
      %v1305 = vunpack.c.h.b16 %v900
      %v1306 = vunpack.c.l.b16 %v901
      %v1307 = vunpack.c.h.b16 %v901
      %v1308 = vunpack.c.l.b16 %v902
      %v1309 = vunpack.c.h.b16 %v902
      %v1310 = vunpack.c.l.b16 %v903
      %v1311 = vunpack.c.h.b16 %v903
      %v1312 = vunpack.c.l.b16 %v904
      %v1313 = vunpack.c.h.b16 %v904
      %v1314 = vunpack.c.l.b16 %v905
      %v1315 = vunpack.c.h.b16 %v905
      %v1316 = vunpack.c.l.b16 %v906
      %v1317 = vunpack.c.h.b16 %v906
      %v1318 = vunpack.c.l.b16 %v907
      %v1319 = vunpack.c.h.b16 %v907
      %v1320 = vunpack.c.l.b16 %v908
      %v1321 = vunpack.c.h.b16 %v908
      %v1322 = vunpack.c.l.b16 %v909
      %v1323 = vunpack.c.h.b16 %v909
      %v1324 = vunpack.c.l.b16 %v910
      %v1325 = vunpack.c.h.b16 %v910
      %v1326 = vunpack.c.l.b16 %v911
      %v1327 = vunpack.c.h.b16 %v911
      %v1328 = vunpack.c.l.b16 %v912
      %v1329 = vunpack.c.h.b16 %v912
      %v1330 = vunpack.c.l.b16 %v913
      %v1331 = vunpack.c.h.b16 %v913
      %v1332 = vunpack.c.l.b16 %v914
      %v1333 = vunpack.c.h.b16 %v914
      %v1334 = vunpack.c.l.b16 %v915
      %v1335 = vunpack.c.h.b16 %v915
      %v1336 = vunpack.c.l.b16 %v916
      %v1337 = vunpack.c.h.b16 %v916
      %v1338 = vunpack.c.l.b16 %v917
      %v1339 = vunpack.c.h.b16 %v917
      %v1340 = vunpack.c.l.b16 %v918
      %v1341 = vunpack.c.h.b16 %v918
      %v1342 = vunpack.c.l.b16 %v919
      %v1343 = vunpack.c.h.b16 %v919
      %v1344 = vunpack.c.l.b16 %v920
      %v1345 = vunpack.c.h.b16 %v920
      %v1346 = vunpack.c.l.b16 %v921
      %v1347 = vunpack.c.h.b16 %v921
      %v1348 = vpack.c.b16 %v1100, %v1092
      %v1349 = vpack.c.b16 %v1101, %v1093
      %v1350 = vpack.c.b16 %v1102, %v1094
      %v1351 = vpack.c.b16 %v1103, %v1095
      %v1352 = vpack.c.b16 %v1104, %v1096
      %v1353 = vpack.c.b16 %v1105, %v1097
      %v1354 = vpack.c.b16 %v1106, %v1098
      %v1355 = vpack.c.b16 %v1107, %v1099
      %v1356 = vpack.c.b16 %v1116, %v1108
      %v1357 = vpack.c.b16 %v1117, %v1109
      %v1358 = vpack.c.b16 %v1118, %v1110
      %v1359 = vpack.c.b16 %v1119, %v1111
      %v1360 = vpack.c.b16 %v1120, %v1112
      %v1361 = vpack.c.b16 %v1121, %v1113
      %v1362 = vpack.c.b16 %v1122, %v1114
      %v1363 = vpack.c.b16 %v1123, %v1115
      %v1364 = vpack.c.b16 %v1132, %v1124
      %v1365 = vpack.c.b16 %v1133, %v1125
      %v1366 = vpack.c.b16 %v1134, %v1126
      %v1367 = vpack.c.b16 %v1135, %v1127
      %v1368 = vpack.c.b16 %v1136, %v1128
      %v1369 = vpack.c.b16 %v1137, %v1129
      %v1370 = vpack.c.b16 %v1138, %v1130
      %v1371 = vpack.c.b16 %v1139, %v1131
      %v1372 = vpack.c.b16 %v1148, %v1140
      %v1373 = vpack.c.b16 %v1149, %v1141
      %v1374 = vpack.c.b16 %v1150, %v1142
      %v1375 = vpack.c.b16 %v1151, %v1143
      %v1376 = vpack.c.b16 %v1152, %v1144
      %v1377 = vpack.c.b16 %v1153, %v1145
      %v1378 = vpack.c.b16 %v1154, %v1146
      %v1379 = vpack.c.b16 %v1155, %v1147
      %v1380 = vpack.c.b16 %v1164, %v1156
      %v1381 = vpack.c.b16 %v1165, %v1157
      %v1382 = vpack.c.b16 %v1166, %v1158
      %v1383 = vpack.c.b16 %v1167, %v1159
      %v1384 = vpack.c.b16 %v1168, %v1160
      %v1385 = vpack.c.b16 %v1169, %v1161
      %v1386 = vpack.c.b16 %v1170, %v1162
      %v1387 = vpack.c.b16 %v1171, %v1163
      %v1388 = vpack.c.b16 %v1180, %v1172
      %v1389 = vpack.c.b16 %v1181, %v1173
      %v1390 = vpack.c.b16 %v1182, %v1174
      %v1391 = vpack.c.b16 %v1183, %v1175
      %v1392 = vpack.c.b16 %v1184, %v1176
      %v1393 = vpack.c.b16 %v1185, %v1177
      %v1394 = vpack.c.b16 %v1186, %v1178
      %v1395 = vpack.c.b16 %v1187, %v1179
      %v1396 = vpack.c.b16 %v1196, %v1188
      %v1397 = vpack.c.b16 %v1197, %v1189
      %v1398 = vpack.c.b16 %v1198, %v1190
      %v1399 = vpack.c.b16 %v1199, %v1191
      %v1400 = vpack.c.b16 %v1200, %v1192
      %v1401 = vpack.c.b16 %v1201, %v1193
      %v1402 = vpack.c.b16 %v1202, %v1194
      %v1403 = vpack.c.b16 %v1203, %v1195
      %v1404 = vpack.c.b16 %v1212, %v1204
      %v1405 = vpack.c.b16 %v1213, %v1205
      %v1406 = vpack.c.b16 %v1214, %v1206
      %v1407 = vpack.c.b16 %v1215, %v1207
      %v1408 = vpack.c.b16 %v1216, %v1208
      %v1409 = vpack.c.b16 %v1217, %v1209
      %v1410 = vpack.c.b16 %v1218, %v1210
      %v1411 = vpack.c.b16 %v1219, %v1211
      %v1412 = vpack.c.b16 %v1228, %v1220
      %v1413 = vpack.c.b16 %v1229, %v1221
      %v1414 = vpack.c.b16 %v1230, %v1222
      %v1415 = vpack.c.b16 %v1231, %v1223
      %v1416 = vpack.c.b16 %v1232, %v1224
      %v1417 = vpack.c.b16 %v1233, %v1225
      %v1418 = vpack.c.b16 %v1234, %v1226
      %v1419 = vpack.c.b16 %v1235, %v1227
      %v1420 = vpack.c.b16 %v1244, %v1236
      %v1421 = vpack.c.b16 %v1245, %v1237
      %v1422 = vpack.c.b16 %v1246, %v1238
      %v1423 = vpack.c.b16 %v1247, %v1239
      %v1424 = vpack.c.b16 %v1248, %v1240
      %v1425 = vpack.c.b16 %v1249, %v1241
      %v1426 = vpack.c.b16 %v1250, %v1242
      %v1427 = vpack.c.b16 %v1251, %v1243
      %v1428 = vpack.c.b16 %v1260, %v1252
      %v1429 = vpack.c.b16 %v1261, %v1253
      %v1430 = vpack.c.b16 %v1262, %v1254
      %v1431 = vpack.c.b16 %v1263, %v1255
      %v1432 = vpack.c.b16 %v1264, %v1256
      %v1433 = vpack.c.b16 %v1265, %v1257
      %v1434 = vpack.c.b16 %v1266, %v1258
      %v1435 = vpack.c.b16 %v1267, %v1259
      %v1436 = vpack.c.b16 %v1276, %v1268
      %v1437 = vpack.c.b16 %v1277, %v1269
      %v1438 = vpack.c.b16 %v1278, %v1270
      %v1439 = vpack.c.b16 %v1279, %v1271
      %v1440 = vpack.c.b16 %v1280, %v1272
      %v1441 = vpack.c.b16 %v1281, %v1273
      %v1442 = vpack.c.b16 %v1282, %v1274
      %v1443 = vpack.c.b16 %v1283, %v1275
      %v1444 = vpack.c.b16 %v1292, %v1284
      %v1445 = vpack.c.b16 %v1293, %v1285
      %v1446 = vpack.c.b16 %v1294, %v1286
      %v1447 = vpack.c.b16 %v1295, %v1287
      %v1448 = vpack.c.b16 %v1296, %v1288
      %v1449 = vpack.c.b16 %v1297, %v1289
      %v1450 = vpack.c.b16 %v1298, %v1290
      %v1451 = vpack.c.b16 %v1299, %v1291
      %v1452 = vpack.c.b16 %v1308, %v1300
      %v1453 = vpack.c.b16 %v1309, %v1301
      %v1454 = vpack.c.b16 %v1310, %v1302
      %v1455 = vpack.c.b16 %v1311, %v1303
      %v1456 = vpack.c.b16 %v1312, %v1304
      %v1457 = vpack.c.b16 %v1313, %v1305
      %v1458 = vpack.c.b16 %v1314, %v1306
      %v1459 = vpack.c.b16 %v1315, %v1307
      %v1460 = vpack.c.b16 %v1324, %v1316
      %v1461 = vpack.c.b16 %v1325, %v1317
      %v1462 = vpack.c.b16 %v1326, %v1318
      %v1463 = vpack.c.b16 %v1327, %v1319
      %v1464 = vpack.c.b16 %v1328, %v1320
      %v1465 = vpack.c.b16 %v1329, %v1321
      %v1466 = vpack.c.b16 %v1330, %v1322
      %v1467 = vpack.c.b16 %v1331, %v1323
      %v1468 = vpack.c.b16 %v1340, %v1332
      %v1469 = vpack.c.b16 %v1341, %v1333
      %v1470 = vpack.c.b16 %v1342, %v1334
      %v1471 = vpack.c.b16 %v1343, %v1335
      %v1472 = vpack.c.b16 %v1344, %v1336
      %v1473 = vpack.c.b16 %v1345, %v1337
      %v1474 = vpack.c.b16 %v1346, %v1338
      %v1475 = vpack.c.b16 %v1347, %v1339
      %1604 = vmatprep.subr.bf16.mxu0 %v1349
      %1605 = vmatpush1.bf16.msra.mxu0 %v1348
      %1606 = vmatprep.subr.bf16.mxu0 %v1357
      %1607 = vmatpush1.bf16.msra.mxu0 %v1356
      %1608 = vmatprep.subr.bf16.mxu0 %v1365
      %1609 = vmatpush1.bf16.msra.mxu0 %v1364
      %1610 = vmatprep.subr.bf16.mxu0 %v1373
      %1611 = vmatpush1.bf16.msra.mxu0 %v1372
      %1612 = vmatprep.subr.bf16.mxu0 %v1381
      %1613 = vmatpush1.bf16.msra.mxu0 %v1380
      %1614 = vmatprep.subr.bf16.mxu0 %v1389
      %1615 = vmatpush1.bf16.msra.mxu0 %v1388
      %1616 = vmatprep.subr.bf16.mxu0 %v1397
      %1617 = vmatpush1.bf16.msra.mxu0 %v1396
      %1618 = vmatprep.subr.bf16.mxu0 %v1405
      %1619 = vmatpush1.bf16.msra.mxu0 %v1404
      %1620 = vmatprep.subr.bf16.mxu0 %v1413
      %1621 = vmatpush1.bf16.msra.mxu0 %v1412
      %1622 = vmatprep.subr.bf16.mxu0 %v1421
      %1623 = vmatpush1.bf16.msra.mxu0 %v1420
      %1624 = vmatprep.subr.bf16.mxu0 %v1429
      %1625 = vmatpush1.bf16.msra.mxu0 %v1428
      %1626 = vmatprep.subr.bf16.mxu0 %v1437
      %1627 = vmatpush1.bf16.msra.mxu0 %v1436
      %1628 = vmatprep.subr.bf16.mxu0 %v1445
      %1629 = vmatpush1.bf16.msra.mxu0 %v1444
      %1630 = vmatprep.subr.bf16.mxu0 %v1453
      %1631 = vmatpush1.bf16.msra.mxu0 %v1452
      %1632 = vmatprep.subr.bf16.mxu0 %v1461
      %1633 = vmatpush1.bf16.msra.mxu0 %v1460
      %1634 = vmatprep.subr.bf16.mxu0 %v1469
      %1635 = vmatpush1.bf16.msra.mxu0 %v1468
      %1636 = vmatprep.mubr.bf16.mxu0 %v779
      %1637 = vmatmul.mubr.bf16.gmra.mrb[0].mxu0 %v778
      %v1638 = vpop.f32.mrb[0].mxu0
      %v1639 = vadd.f32 %v927, %v1638
      %v1640 = vpop.f32.mrb[0].mxu0
      %v1641 = vadd.f32 %v931, %v1640
      %v1642 = vpop.f32.mrb[0].mxu0
      %v1643 = vadd.f32 %v927, %v1642
      %v1644 = vpop.f32.mrb[0].mxu0
      %v1645 = vadd.f32 %v931, %v1644
      %1646 = vmatprep.mubr.bf16.mxu0 %v781
      %1647 = vmatmul.mubr.bf16.gmra.mrb[0].mxu0 %v780
      %v1648 = vpop.f32.mrb[0].mxu0
      %v1649 = vadd.f32 %v927, %v1648
      %v1650 = vpop.f32.mrb[0].mxu0
      %v1651 = vadd.f32 %v931, %v1650
      %v1652 = vpop.f32.mrb[0].mxu0
      %v1653 = vadd.f32 %v927, %v1652
      %v1654 = vpop.f32.mrb[0].mxu0
      %v1655 = vadd.f32 %v931, %v1654
      %1656 = vmatprep.mubr.bf16.mxu0 %v783
      %1657 = vmatmul.mubr.bf16.gmra.mrb[0].mxu0 %v782
      %v1658 = vpop.f32.mrb[0].mxu0
      %v1659 = vadd.f32 %v927, %v1658
      %v1660 = vpop.f32.mrb[0].mxu0
      %v1661 = vadd.f32 %v931, %v1660
      %v1662 = vpop.f32.mrb[0].mxu0
      %v1663 = vadd.f32 %v927, %v1662
      %v1664 = vpop.f32.mrb[0].mxu0
      %v1665 = vadd.f32 %v931, %v1664
      %1666 = vmatprep.mubr.bf16.mxu0 %v785
      %1667 = vmatmul.mubr.bf16.gmra.mrb[0].mxu0 %v784
      %v1668 = vpop.f32.mrb[0].mxu0
      %v1669 = vadd.f32 %v927, %v1668
      %v1670 = vpop.f32.mrb[0].mxu0
      %v1671 = vadd.f32 %v931, %v1670
      %v1672 = vpop.f32.mrb[0].mxu0
      %v1673 = vadd.f32 %v927, %v1672
      %v1674 = vpop.f32.mrb[0].mxu0
      %v1675 = vadd.f32 %v931, %v1674
      %1676 = vmatprep.mubr.bf16.mxu0 %v787
      %1677 = vmatmul.mubr.bf16.gmra.mrb[0].mxu0 %v786
      %v1678 = vpop.f32.mrb[0].mxu0
      %v1679 = vadd.f32 %v927, %v1678
      %v1680 = vpop.f32.mrb[0].mxu0
      %v1681 = vadd.f32 %v931, %v1680
      %v1682 = vpop.f32.mrb[0].mxu0
      %v1683 = vadd.f32 %v927, %v1682
      %v1684 = vpop.f32.mrb[0].mxu0
      %v1685 = vadd.f32 %v931, %v1684
      %1686 = vmatprep.mubr.bf16.mxu0 %v789
      %1687 = vmatmul.mubr.bf16.gmra.mrb[0].mxu0 %v788
      %v1688 = vpop.f32.mrb[0].mxu0
      %v1689 = vadd.f32 %v927, %v1688
      %v1690 = vpop.f32.mrb[0].mxu0
      %v1691 = vadd.f32 %v931, %v1690
      %v1692 = vpop.f32.mrb[0].mxu0
      %v1693 = vadd.f32 %v927, %v1692
      %v1694 = vpop.f32.mrb[0].mxu0
      %v1695 = vadd.f32 %v931, %v1694
      %1696 = vmatprep.mubr.bf16.mxu0 %v791
      %1697 = vmatmul.mubr.bf16.gmra.mrb[0].mxu0 %v790
      %v1698 = vpop.f32.mrb[0].mxu0
      %v1699 = vadd.f32 %v927, %v1698
      %v1700 = vpop.f32.mrb[0].mxu0
      %v1701 = vadd.f32 %v931, %v1700
      %v1702 = vpop.f32.mrb[0].mxu0
      %v1703 = vadd.f32 %v927, %v1702
      %v1704 = vpop.f32.mrb[0].mxu0
      %v1705 = vadd.f32 %v931, %v1704
      %1706 = vmatprep.mubr.bf16.mxu0 %v793
      %1707 = vmatmul.mubr.bf16.gmra.mrb[0].mxu0 %v792
      %v1708 = vpop.f32.mrb[0].mxu0
      %v1709 = vadd.f32 %v927, %v1708
      %v1710 = vpop.f32.mrb[0].mxu0
      %v1711 = vadd.f32 %v931, %v1710
      %v1712 = vpop.f32.mrb[0].mxu0
      %v1713 = vadd.f32 %v927, %v1712
      %v1714 = vpop.f32.mrb[0].mxu0
      %v1715 = vadd.f32 %v931, %v1714
      %1716 = vdwg.mxu0
      %1717 = vmatprep.subr.bf16.mxu0 %v1351
      %1718 = vmatpush1.bf16.msra.mxu0 %v1350
      %1719 = vmatprep.subr.bf16.mxu0 %v1359
      %1720 = vmatpush1.bf16.msra.mxu0 %v1358
      %1721 = vmatprep.subr.bf16.mxu0 %v1367
      %1722 = vmatpush1.bf16.msra.mxu0 %v1366
      %1723 = vmatprep.subr.bf16.mxu0 %v1375
      %1724 = vmatpush1.bf16.msra.mxu0 %v1374
      %1725 = vmatprep.subr.bf16.mxu0 %v1383
      %1726 = vmatpush1.bf16.msra.mxu0 %v1382
      %1727 = vmatprep.subr.bf16.mxu0 %v1391
      %1728 = vmatpush1.bf16.msra.mxu0 %v1390
      %1729 = vmatprep.subr.bf16.mxu0 %v1399
      %1730 = vmatpush1.bf16.msra.mxu0 %v1398
      %1731 = vmatprep.subr.bf16.mxu0 %v1407
      %1732 = vmatpush1.bf16.msra.mxu0 %v1406
      %1733 = vmatprep.subr.bf16.mxu0 %v1415
      %1734 = vmatpush1.bf16.msra.mxu0 %v1414
      %1735 = vmatprep.subr.bf16.mxu0 %v1423
      %1736 = vmatpush1.bf16.msra.mxu0 %v1422
      %1737 = vmatprep.subr.bf16.mxu0 %v1431
      %1738 = vmatpush1.bf16.msra.mxu0 %v1430
      %1739 = vmatprep.subr.bf16.mxu0 %v1439
      %1740 = vmatpush1.bf16.msra.mxu0 %v1438
      %1741 = vmatprep.subr.bf16.mxu0 %v1447
      %1742 = vmatpush1.bf16.msra.mxu0 %v1446
      %1743 = vmatprep.subr.bf16.mxu0 %v1455
      %1744 = vmatpush1.bf16.msra.mxu0 %v1454
      %1745 = vmatprep.subr.bf16.mxu0 %v1463
      %1746 = vmatpush1.bf16.msra.mxu0 %v1462
      %1747 = vmatprep.subr.bf16.mxu0 %v1471
      %1748 = vmatpush1.bf16.msra.mxu0 %v1470
      %1749 = vmatprep.mubr.bf16.mxu0 %v779
      %1750 = vmatmul.mubr.bf16.gmra.mrb[0].mxu0 %v778
      %v1751 = vpop.f32.mrb[0].mxu0
      %v1752 = vadd.f32 %v935, %v1751
      %v1753 = vpop.f32.mrb[0].mxu0
      %v1754 = vadd.f32 %v939, %v1753
      %v1755 = vpop.f32.mrb[0].mxu0
      %v1756 = vadd.f32 %v935, %v1755
      %v1757 = vpop.f32.mrb[0].mxu0
      %v1758 = vadd.f32 %v939, %v1757
      %1759 = vmatprep.mubr.bf16.mxu0 %v781
      %1760 = vmatmul.mubr.bf16.gmra.mrb[0].mxu0 %v780
      %v1761 = vpop.f32.mrb[0].mxu0
      %v1762 = vadd.f32 %v935, %v1761
      %v1763 = vpop.f32.mrb[0].mxu0
      %v1764 = vadd.f32 %v939, %v1763
      %v1765 = vpop.f32.mrb[0].mxu0
      %v1766 = vadd.f32 %v935, %v1765
      %v1767 = vpop.f32.mrb[0].mxu0
      %v1768 = vadd.f32 %v939, %v1767
      %1769 = vmatprep.mubr.bf16.mxu0 %v783
      %1770 = vmatmul.mubr.bf16.gmra.mrb[0].mxu0 %v782
      %v1771 = vpop.f32.mrb[0].mxu0
      %v1772 = vadd.f32 %v935, %v1771
      %v1773 = vpop.f32.mrb[0].mxu0
      %v1774 = vadd.f32 %v939, %v1773
      %v1775 = vpop.f32.mrb[0].mxu0
      %v1776 = vadd.f32 %v935, %v1775
      %v1777 = vpop.f32.mrb[0].mxu0
      %v1778 = vadd.f32 %v939, %v1777
      %1779 = vmatprep.mubr.bf16.mxu0 %v785
      %1780 = vmatmul.mubr.bf16.gmra.mrb[0].mxu0 %v784
      %v1781 = vpop.f32.mrb[0].mxu0
      %v1782 = vadd.f32 %v935, %v1781
      %v1783 = vpop.f32.mrb[0].mxu0
      %v1784 = vadd.f32 %v939, %v1783
      %v1785 = vpop.f32.mrb[0].mxu0
      %v1786 = vadd.f32 %v935, %v1785
      %v1787 = vpop.f32.mrb[0].mxu0
      %v1788 = vadd.f32 %v939, %v1787
      %1789 = vmatprep.mubr.bf16.mxu0 %v787
      %1790 = vmatmul.mubr.bf16.gmra.mrb[0].mxu0 %v786
      %v1791 = vpop.f32.mrb[0].mxu0
      %v1792 = vadd.f32 %v935, %v1791
      %v1793 = vpop.f32.mrb[0].mxu0
      %v1794 = vadd.f32 %v939, %v1793
      %v1795 = vpop.f32.mrb[0].mxu0
      %v1796 = vadd.f32 %v935, %v1795
      %v1797 = vpop.f32.mrb[0].mxu0
      %v1798 = vadd.f32 %v939, %v1797
      %1799 = vmatprep.mubr.bf16.mxu0 %v789
      %1800 = vmatmul.mubr.bf16.gmra.mrb[0].mxu0 %v788
      %v1801 = vpop.f32.mrb[0].mxu0
      %v1802 = vadd.f32 %v935, %v1801
      %v1803 = vpop.f32.mrb[0].mxu0
      %v1804 = vadd.f32 %v939, %v1803
      %v1805 = vpop.f32.mrb[0].mxu0
      %v1806 = vadd.f32 %v935, %v1805
      %v1807 = vpop.f32.mrb[0].mxu0
      %v1808 = vadd.f32 %v939, %v1807
      %1809 = vmatprep.mubr.bf16.mxu0 %v791
      %1810 = vmatmul.mubr.bf16.gmra.mrb[0].mxu0 %v790
      %v1811 = vpop.f32.mrb[0].mxu0
      %v1812 = vadd.f32 %v935, %v1811
      %v1813 = vpop.f32.mrb[0].mxu0
      %v1814 = vadd.f32 %v939, %v1813
      %v1815 = vpop.f32.mrb[0].mxu0
      %v1816 = vadd.f32 %v935, %v1815
      %v1817 = vpop.f32.mrb[0].mxu0
      %v1818 = vadd.f32 %v939, %v1817
      %1819 = vmatprep.mubr.bf16.mxu0 %v793
      %1820 = vmatmul.mubr.bf16.gmra.mrb[0].mxu0 %v792
      %v1821 = vpop.f32.mrb[0].mxu0
      %v1822 = vadd.f32 %v935, %v1821
      %v1823 = vpop.f32.mrb[0].mxu0
      %v1824 = vadd.f32 %v939, %v1823
      %v1825 = vpop.f32.mrb[0].mxu0
      %v1826 = vadd.f32 %v935, %v1825
      %v1827 = vpop.f32.mrb[0].mxu0
      %v1828 = vadd.f32 %v939, %v1827
      %1829 = vdwg.mxu0
      %1830 = vmatprep.subr.bf16.mxu0 %v1353
      %1831 = vmatpush1.bf16.msra.mxu0 %v1352
      %1832 = vmatprep.subr.bf16.mxu0 %v1361
      %1833 = vmatpush1.bf16.msra.mxu0 %v1360
      %1834 = vmatprep.subr.bf16.mxu0 %v1369
      %1835 = vmatpush1.bf16.msra.mxu0 %v1368
      %1836 = vmatprep.subr.bf16.mxu0 %v1377
      %1837 = vmatpush1.bf16.msra.mxu0 %v1376
      %1838 = vmatprep.subr.bf16.mxu0 %v1385
      %1839 = vmatpush1.bf16.msra.mxu0 %v1384
      %1840 = vmatprep.subr.bf16.mxu0 %v1393
      %1841 = vmatpush1.bf16.msra.mxu0 %v1392
      %1842 = vmatprep.subr.bf16.mxu0 %v1401
      %1843 = vmatpush1.bf16.msra.mxu0 %v1400
      %1844 = vmatprep.subr.bf16.mxu0 %v1409
      %1845 = vmatpush1.bf16.msra.mxu0 %v1408
      %1846 = vmatprep.subr.bf16.mxu0 %v1417
      %1847 = vmatpush1.bf16.msra.mxu0 %v1416
      %1848 = vmatprep.subr.bf16.mxu0 %v1425
      %1849 = vmatpush1.bf16.msra.mxu0 %v1424
      %1850 = vmatprep.subr.bf16.mxu0 %v1433
      %1851 = vmatpush1.bf16.msra.mxu0 %v1432
      %1852 = vmatprep.subr.bf16.mxu0 %v1441
      %1853 = vmatpush1.bf16.msra.mxu0 %v1440
      %1854 = vmatprep.subr.bf16.mxu0 %v1449
      %1855 = vmatpush1.bf16.msra.mxu0 %v1448
      %1856 = vmatprep.subr.bf16.mxu0 %v1457
      %1857 = vmatpush1.bf16.msra.mxu0 %v1456
      %1858 = vmatprep.subr.bf16.mxu0 %v1465
      %1859 = vmatpush1.bf16.msra.mxu0 %v1464
      %1860 = vmatprep.subr.bf16.mxu0 %v1473
      %1861 = vmatpush1.bf16.msra.mxu0 %v1472
      %1862 = vmatprep.mubr.bf16.mxu0 %v779
      %1863 = vmatmul.mubr.bf16.gmra.mrb[0].mxu0 %v778
      %v1864 = vpop.f32.mrb[0].mxu0
      %v1865 = vadd.f32 %v943, %v1864
      %v1866 = vpop.f32.mrb[0].mxu0
      %v1867 = vadd.f32 %v947, %v1866
      %v1868 = vpop.f32.mrb[0].mxu0
      %v1869 = vadd.f32 %v943, %v1868
      %v1870 = vpop.f32.mrb[0].mxu0
      %v1871 = vadd.f32 %v947, %v1870
      %1872 = vmatprep.mubr.bf16.mxu0 %v781
      %1873 = vmatmul.mubr.bf16.gmra.mrb[0].mxu0 %v780
      %v1874 = vpop.f32.mrb[0].mxu0
      %v1875 = vadd.f32 %v943, %v1874
      %v1876 = vpop.f32.mrb[0].mxu0
      %v1877 = vadd.f32 %v947, %v1876
      %v1878 = vpop.f32.mrb[0].mxu0
      %v1879 = vadd.f32 %v943, %v1878
      %v1880 = vpop.f32.mrb[0].mxu0
      %v1881 = vadd.f32 %v947, %v1880
      %1882 = vmatprep.mubr.bf16.mxu0 %v783
      %1883 = vmatmul.mubr.bf16.gmra.mrb[0].mxu0 %v782
      %v1884 = vpop.f32.mrb[0].mxu0
      %v1885 = vadd.f32 %v943, %v1884
      %v1886 = vpop.f32.mrb[0].mxu0
      %v1887 = vadd.f32 %v947, %v1886
      %v1888 = vpop.f32.mrb[0].mxu0
      %v1889 = vadd.f32 %v943, %v1888
      %v1890 = vpop.f32.mrb[0].mxu0
      %v1891 = vadd.f32 %v947, %v1890
      %1892 = vmatprep.mubr.bf16.mxu0 %v785
      %1893 = vmatmul.mubr.bf16.gmra.mrb[0].mxu0 %v784
      %v1894 = vpop.f32.mrb[0].mxu0
      %v1895 = vadd.f32 %v943, %v1894
      %v1896 = vpop.f32.mrb[0].mxu0
      %v1897 = vadd.f32 %v947, %v1896
      %v1898 = vpop.f32.mrb[0].mxu0
      %v1899 = vadd.f32 %v943, %v1898
      %v1900 = vpop.f32.mrb[0].mxu0
      %v1901 = vadd.f32 %v947, %v1900
      %1902 = vmatprep.mubr.bf16.mxu0 %v787
      %1903 = vmatmul.mubr.bf16.gmra.mrb[0].mxu0 %v786
      %v1904 = vpop.f32.mrb[0].mxu0
      %v1905 = vadd.f32 %v943, %v1904
      %v1906 = vpop.f32.mrb[0].mxu0
      %v1907 = vadd.f32 %v947, %v1906
      %v1908 = vpop.f32.mrb[0].mxu0
      %v1909 = vadd.f32 %v943, %v1908
      %v1910 = vpop.f32.mrb[0].mxu0
      %v1911 = vadd.f32 %v947, %v1910
      %1912 = vmatprep.mubr.bf16.mxu0 %v789
      %1913 = vmatmul.mubr.bf16.gmra.mrb[0].mxu0 %v788
      %v1914 = vpop.f32.mrb[0].mxu0
      %v1915 = vadd.f32 %v943, %v1914
      %v1916 = vpop.f32.mrb[0].mxu0
      %v1917 = vadd.f32 %v947, %v1916
      %v1918 = vpop.f32.mrb[0].mxu0
      %v1919 = vadd.f32 %v943, %v1918
      %v1920 = vpop.f32.mrb[0].mxu0
      %v1921 = vadd.f32 %v947, %v1920
      %1922 = vmatprep.mubr.bf16.mxu0 %v791
      %1923 = vmatmul.mubr.bf16.gmra.mrb[0].mxu0 %v790
      %v1924 = vpop.f32.mrb[0].mxu0
      %v1925 = vadd.f32 %v943, %v1924
      %v1926 = vpop.f32.mrb[0].mxu0
      %v1927 = vadd.f32 %v947, %v1926
      %v1928 = vpop.f32.mrb[0].mxu0
      %v1929 = vadd.f32 %v943, %v1928
      %v1930 = vpop.f32.mrb[0].mxu0
      %v1931 = vadd.f32 %v947, %v1930
      %1932 = vmatprep.mubr.bf16.mxu0 %v793
      %1933 = vmatmul.mubr.bf16.gmra.mrb[0].mxu0 %v792
      %v1934 = vpop.f32.mrb[0].mxu0
      %v1935 = vadd.f32 %v943, %v1934
      %v1936 = vpop.f32.mrb[0].mxu0
      %v1937 = vadd.f32 %v947, %v1936
      %v1938 = vpop.f32.mrb[0].mxu0
      %v1939 = vadd.f32 %v943, %v1938
      %v1940 = vpop.f32.mrb[0].mxu0
      %v1941 = vadd.f32 %v947, %v1940
      %1942 = vdwg.mxu0
      %1943 = vmatprep.subr.bf16.mxu0 %v1355
      %1944 = vmatpush1.bf16.msra.mxu0 %v1354
      %1945 = vmatprep.subr.bf16.mxu0 %v1363
      %1946 = vmatpush1.bf16.msra.mxu0 %v1362
      %1947 = vmatprep.subr.bf16.mxu0 %v1371
      %1948 = vmatpush1.bf16.msra.mxu0 %v1370
      %1949 = vmatprep.subr.bf16.mxu0 %v1379
      %1950 = vmatpush1.bf16.msra.mxu0 %v1378
      %1951 = vmatprep.subr.bf16.mxu0 %v1387
      %1952 = vmatpush1.bf16.msra.mxu0 %v1386
      %1953 = vmatprep.subr.bf16.mxu0 %v1395
      %1954 = vmatpush1.bf16.msra.mxu0 %v1394
      %1955 = vmatprep.subr.bf16.mxu0 %v1403
      %1956 = vmatpush1.bf16.msra.mxu0 %v1402
      %1957 = vmatprep.subr.bf16.mxu0 %v1411
      %1958 = vmatpush1.bf16.msra.mxu0 %v1410
      %1959 = vmatprep.subr.bf16.mxu0 %v1419
      %1960 = vmatpush1.bf16.msra.mxu0 %v1418
      %1961 = vmatprep.subr.bf16.mxu0 %v1427
      %1962 = vmatpush1.bf16.msra.mxu0 %v1426
      %1963 = vmatprep.subr.bf16.mxu0 %v1435
      %1964 = vmatpush1.bf16.msra.mxu0 %v1434
      %1965 = vmatprep.subr.bf16.mxu0 %v1443
      %1966 = vmatpush1.bf16.msra.mxu0 %v1442
      %1967 = vmatprep.subr.bf16.mxu0 %v1451
      %1968 = vmatpush1.bf16.msra.mxu0 %v1450
      %1969 = vmatprep.subr.bf16.mxu0 %v1459
      %1970 = vmatpush1.bf16.msra.mxu0 %v1458
      %1971 = vmatprep.subr.bf16.mxu0 %v1467
      %1972 = vmatpush1.bf16.msra.mxu0 %v1466
      %1973 = vmatprep.subr.bf16.mxu0 %v1475
      %1974 = vmatpush1.bf16.msra.mxu0 %v1474
      %1975 = vmatprep.mubr.bf16.mxu0 %v779
      %1976 = vmatmul.mubr.bf16.gmra.mrb[0].mxu0 %v778
      %v1977 = vpop.f32.mrb[0].mxu0
      %v1978 = vadd.f32 %v951, %v1977
      %v1979 = vpop.f32.mrb[0].mxu0
      %v1980 = vadd.f32 %v955, %v1979
      %v1981 = vpop.f32.mrb[0].mxu0
      %v1982 = vadd.f32 %v951, %v1981
      %v1983 = vpop.f32.mrb[0].mxu0
      %v1984 = vadd.f32 %v955, %v1983
      %1985 = vmatprep.mubr.bf16.mxu0 %v781
      %1986 = vmatmul.mubr.bf16.gmra.mrb[0].mxu0 %v780
      %v1987 = vpop.f32.mrb[0].mxu0
      %v1988 = vadd.f32 %v951, %v1987
      %v1989 = vpop.f32.mrb[0].mxu0
      %v1990 = vadd.f32 %v955, %v1989
      %v1991 = vpop.f32.mrb[0].mxu0
      %v1992 = vadd.f32 %v951, %v1991
      %v1993 = vpop.f32.mrb[0].mxu0
      %v1994 = vadd.f32 %v955, %v1993
      %1995 = vmatprep.mubr.bf16.mxu0 %v783
      %1996 = vmatmul.mubr.bf16.gmra.mrb[0].mxu0 %v782
      %v1997 = vpop.f32.mrb[0].mxu0
      %v1998 = vadd.f32 %v951, %v1997
      %v1999 = vpop.f32.mrb[0].mxu0
      %v2000 = vadd.f32 %v955, %v1999
      %v2001 = vpop.f32.mrb[0].mxu0
      %v2002 = vadd.f32 %v951, %v2001
      %v2003 = vpop.f32.mrb[0].mxu0
      %v2004 = vadd.f32 %v955, %v2003
      %2005 = vmatprep.mubr.bf16.mxu0 %v785
      %2006 = vmatmul.mubr.bf16.gmra.mrb[0].mxu0 %v784
      %v2007 = vpop.f32.mrb[0].mxu0
      %v2008 = vadd.f32 %v951, %v2007
      %v2009 = vpop.f32.mrb[0].mxu0
      %v2010 = vadd.f32 %v955, %v2009
      %v2011 = vpop.f32.mrb[0].mxu0
      %v2012 = vadd.f32 %v951, %v2011
      %v2013 = vpop.f32.mrb[0].mxu0
      %v2014 = vadd.f32 %v955, %v2013
      %2015 = vmatprep.mubr.bf16.mxu0 %v787
      %2016 = vmatmul.mubr.bf16.gmra.mrb[0].mxu0 %v786
      %v2017 = vpop.f32.mrb[0].mxu0
      %v2018 = vadd.f32 %v951, %v2017
      %v2019 = vpop.f32.mrb[0].mxu0
      %v2020 = vadd.f32 %v955, %v2019
      %v2021 = vpop.f32.mrb[0].mxu0
      %v2022 = vadd.f32 %v951, %v2021
      %v2023 = vpop.f32.mrb[0].mxu0
      %v2024 = vadd.f32 %v955, %v2023
      %2025 = vmatprep.mubr.bf16.mxu0 %v789
      %2026 = vmatmul.mubr.bf16.gmra.mrb[0].mxu0 %v788
      %v2027 = vpop.f32.mrb[0].mxu0
      %v2028 = vadd.f32 %v951, %v2027
      %v2029 = vpop.f32.mrb[0].mxu0
      %v2030 = vadd.f32 %v955, %v2029
      %v2031 = vpop.f32.mrb[0].mxu0
      %v2032 = vadd.f32 %v951, %v2031
      %v2033 = vpop.f32.mrb[0].mxu0
      %v2034 = vadd.f32 %v955, %v2033
      %2035 = vmatprep.mubr.bf16.mxu0 %v791
      %2036 = vmatmul.mubr.bf16.gmra.mrb[0].mxu0 %v790
      %v2037 = vpop.f32.mrb[0].mxu0
      %v2038 = vadd.f32 %v951, %v2037
      %v2039 = vpop.f32.mrb[0].mxu0
      %v2040 = vadd.f32 %v955, %v2039
      %v2041 = vpop.f32.mrb[0].mxu0
      %v2042 = vadd.f32 %v951, %v2041
      %v2043 = vpop.f32.mrb[0].mxu0
      %v2044 = vadd.f32 %v955, %v2043
      %2045 = vmatprep.mubr.bf16.mxu0 %v793
      %2046 = vmatmul.mubr.bf16.gmra.mrb[0].mxu0 %v792
      %v2047 = vpop.f32.mrb[0].mxu0
      %v2048 = vadd.f32 %v951, %v2047
      %v2049 = vpop.f32.mrb[0].mxu0
      %v2050 = vadd.f32 %v955, %v2049
      %v2051 = vpop.f32.mrb[0].mxu0
      %v2052 = vadd.f32 %v951, %v2051
      %v2053 = vpop.f32.mrb[0].mxu0
      %v2054 = vadd.f32 %v955, %v2053
      %2055 = vdwg.mxu0
      %s2056 = smul.u32 %s23, 128
      %v2057 = vlaneseq
      %v2058 = vshrl.u32 %v2057, 7
      %v2059 = vadd.s32 %v2058, 8
      %v2060 = vadd.s32 %v2058, 16
      %v2061 = vadd.s32 %v2058, 24
      %v2062 = vadd.s32 %v2058, 32
      %v2063 = vadd.s32 %v2058, 40
      %v2064 = vadd.s32 %v2058, 48
      %v2065 = vadd.s32 %v2058, 56
      %v2066 = vadd.s32 %v2058, 64
      %v2067 = vadd.s32 %v2058, 72
      %v2068 = vadd.s32 %v2058, 80
      %v2069 = vadd.s32 %v2058, 88
      %v2070 = vadd.s32 %v2058, 96
      %v2071 = vadd.s32 %v2058, 104
      %v2072 = vadd.s32 %v2058, 112
      %v2073 = vadd.s32 %v2058, 120
      %v2074 = vstv %s2056
      %v2075 = vadd.s32 %v2074, %v2058
      %v2076 = vadd.s32 %v2074, %v2059
      %v2077 = vadd.s32 %v2074, %v2060
      %v2078 = vadd.s32 %v2074, %v2061
      %v2079 = vadd.s32 %v2074, %v2062
      %v2080 = vadd.s32 %v2074, %v2063
      %v2081 = vadd.s32 %v2074, %v2064
      %v2082 = vadd.s32 %v2074, %v2065
      %v2083 = vadd.s32 %v2074, %v2066
      %v2084 = vadd.s32 %v2074, %v2067
      %v2085 = vadd.s32 %v2074, %v2068
      %v2086 = vadd.s32 %v2074, %v2069
      %v2087 = vadd.s32 %v2074, %v2070
      %v2088 = vadd.s32 %v2074, %v2071
      %v2089 = vadd.s32 %v2074, %v2072
      %v2090 = vadd.s32 %v2074, %v2073
      %vm2091 = vcmp.lt.s32.totalorder %v2075, 16
      %vm2092 = vcmp.lt.s32.totalorder %v2076, 16
      %vm2093 = vcmp.lt.s32.totalorder %v2077, 16
      %vm2094 = vcmp.lt.s32.totalorder %v2078, 16
      %vm2095 = vcmp.lt.s32.totalorder %v2079, 16
      %vm2096 = vcmp.lt.s32.totalorder %v2080, 16
      %vm2097 = vcmp.lt.s32.totalorder %v2081, 16
      %vm2098 = vcmp.lt.s32.totalorder %v2082, 16
      %vm2099 = vcmp.lt.s32.totalorder %v2083, 16
      %vm2100 = vcmp.lt.s32.totalorder %v2084, 16
      %vm2101 = vcmp.lt.s32.totalorder %v2085, 16
      %vm2102 = vcmp.lt.s32.totalorder %v2086, 16
      %vm2103 = vcmp.lt.s32.totalorder %v2087, 16
      %vm2104 = vcmp.lt.s32.totalorder %v2088, 16
      %vm2105 = vcmp.lt.s32.totalorder %v2089, 16
      %vm2106 = vcmp.lt.s32.totalorder %v2090, 16
      %v2107 = vsel %vm2091, 1, 0
      %v2108 = vsel %vm2092, 1, 0
      %v2109 = vsel %vm2093, 1, 0
      %v2110 = vsel %vm2094, 1, 0
      %v2111 = vsel %vm2095, 1, 0
      %v2112 = vsel %vm2096, 1, 0
      %v2113 = vsel %vm2097, 1, 0
      %v2114 = vsel %vm2098, 1, 0
      %v2115 = vsel %vm2099, 1, 0
      %v2116 = vsel %vm2100, 1, 0
      %v2117 = vsel %vm2101, 1, 0
      %v2118 = vsel %vm2102, 1, 0
      %v2119 = vsel %vm2103, 1, 0
      %v2120 = vsel %vm2104, 1, 0
      %v2121 = vsel %vm2105, 1, 0
      %v2122 = vsel %vm2106, 1, 0
      %vm2123 = vcmp.eq.s32.totalorder %v2107, 1
      %vm2124 = vcmp.eq.s32.totalorder %v2108, 1
      %vm2125 = vcmp.eq.s32.totalorder %v2109, 1
      %vm2126 = vcmp.eq.s32.totalorder %v2110, 1
      %vm2127 = vcmp.eq.s32.totalorder %v2111, 1
      %vm2128 = vcmp.eq.s32.totalorder %v2112, 1
      %vm2129 = vcmp.eq.s32.totalorder %v2113, 1
      %vm2130 = vcmp.eq.s32.totalorder %v2114, 1
      %vm2131 = vcmp.eq.s32.totalorder %v2115, 1
      %vm2132 = vcmp.eq.s32.totalorder %v2116, 1
      %vm2133 = vcmp.eq.s32.totalorder %v2117, 1
      %vm2134 = vcmp.eq.s32.totalorder %v2118, 1
      %vm2135 = vcmp.eq.s32.totalorder %v2119, 1
      %vm2136 = vcmp.eq.s32.totalorder %v2120, 1
      %vm2137 = vcmp.eq.s32.totalorder %v2121, 1
      %vm2138 = vcmp.eq.s32.totalorder %v2122, 1
      %v2139 = vsel %vm2123, %v1639, -inf
      %v2140 = vsel %vm2123, %v1641, -inf
      %v2141 = vsel %vm2123, %v1752, -inf
      %v2142 = vsel %vm2123, %v1754, -inf
      %v2143 = vsel %vm2123, %v1865, -inf
      %v2144 = vsel %vm2123, %v1867, -inf
      %v2145 = vsel %vm2123, %v1978, -inf
      %v2146 = vsel %vm2123, %v1980, -inf
      %v2147 = vsel %vm2124, %v1643, -inf
      %v2148 = vsel %vm2124, %v1645, -inf
      %v2149 = vsel %vm2124, %v1756, -inf
      %v2150 = vsel %vm2124, %v1758, -inf
      %v2151 = vsel %vm2124, %v1869, -inf
      %v2152 = vsel %vm2124, %v1871, -inf
      %v2153 = vsel %vm2124, %v1982, -inf
      %v2154 = vsel %vm2124, %v1984, -inf
      %v2155 = vsel %vm2125, %v1649, -inf
      %v2156 = vsel %vm2125, %v1651, -inf
      %v2157 = vsel %vm2125, %v1762, -inf
      %v2158 = vsel %vm2125, %v1764, -inf
      %v2159 = vsel %vm2125, %v1875, -inf
      %v2160 = vsel %vm2125, %v1877, -inf
      %v2161 = vsel %vm2125, %v1988, -inf
      %v2162 = vsel %vm2125, %v1990, -inf
      %v2163 = vsel %vm2126, %v1653, -inf
      %v2164 = vsel %vm2126, %v1655, -inf
      %v2165 = vsel %vm2126, %v1766, -inf
      %v2166 = vsel %vm2126, %v1768, -inf
      %v2167 = vsel %vm2126, %v1879, -inf
      %v2168 = vsel %vm2126, %v1881, -inf
      %v2169 = vsel %vm2126, %v1992, -inf
      %v2170 = vsel %vm2126, %v1994, -inf
      %v2171 = vsel %vm2127, %v1659, -inf
      %v2172 = vsel %vm2127, %v1661, -inf
      %v2173 = vsel %vm2127, %v1772, -inf
      %v2174 = vsel %vm2127, %v1774, -inf
      %v2175 = vsel %vm2127, %v1885, -inf
      %v2176 = vsel %vm2127, %v1887, -inf
      %v2177 = vsel %vm2127, %v1998, -inf
      %v2178 = vsel %vm2127, %v2000, -inf
      %v2179 = vsel %vm2128, %v1663, -inf
      %v2180 = vsel %vm2128, %v1665, -inf
      %v2181 = vsel %vm2128, %v1776, -inf
      %v2182 = vsel %vm2128, %v1778, -inf
      %v2183 = vsel %vm2128, %v1889, -inf
      %v2184 = vsel %vm2128, %v1891, -inf
      %v2185 = vsel %vm2128, %v2002, -inf
      %v2186 = vsel %vm2128, %v2004, -inf
      %v2187 = vsel %vm2129, %v1669, -inf
      %v2188 = vsel %vm2129, %v1671, -inf
      %v2189 = vsel %vm2129, %v1782, -inf
      %v2190 = vsel %vm2129, %v1784, -inf
      %v2191 = vsel %vm2129, %v1895, -inf
      %v2192 = vsel %vm2129, %v1897, -inf
      %v2193 = vsel %vm2129, %v2008, -inf
      %v2194 = vsel %vm2129, %v2010, -inf
      %v2195 = vsel %vm2130, %v1673, -inf
      %v2196 = vsel %vm2130, %v1675, -inf
      %v2197 = vsel %vm2130, %v1786, -inf
      %v2198 = vsel %vm2130, %v1788, -inf
      %v2199 = vsel %vm2130, %v1899, -inf
      %v2200 = vsel %vm2130, %v1901, -inf
      %v2201 = vsel %vm2130, %v2012, -inf
      %v2202 = vsel %vm2130, %v2014, -inf
      %v2203 = vsel %vm2131, %v1679, -inf
      %v2204 = vsel %vm2131, %v1681, -inf
      %v2205 = vsel %vm2131, %v1792, -inf
      %v2206 = vsel %vm2131, %v1794, -inf
      %v2207 = vsel %vm2131, %v1905, -inf
      %v2208 = vsel %vm2131, %v1907, -inf
      %v2209 = vsel %vm2131, %v2018, -inf
      %v2210 = vsel %vm2131, %v2020, -inf
      %v2211 = vsel %vm2132, %v1683, -inf
      %v2212 = vsel %vm2132, %v1685, -inf
      %v2213 = vsel %vm2132, %v1796, -inf
      %v2214 = vsel %vm2132, %v1798, -inf
      %v2215 = vsel %vm2132, %v1909, -inf
      %v2216 = vsel %vm2132, %v1911, -inf
      %v2217 = vsel %vm2132, %v2022, -inf
      %v2218 = vsel %vm2132, %v2024, -inf
      %v2219 = vsel %vm2133, %v1689, -inf
      %v2220 = vsel %vm2133, %v1691, -inf
      %v2221 = vsel %vm2133, %v1802, -inf
      %v2222 = vsel %vm2133, %v1804, -inf
      %v2223 = vsel %vm2133, %v1915, -inf
      %v2224 = vsel %vm2133, %v1917, -inf
      %v2225 = vsel %vm2133, %v2028, -inf
      %v2226 = vsel %vm2133, %v2030, -inf
      %v2227 = vsel %vm2134, %v1693, -inf
      %v2228 = vsel %vm2134, %v1695, -inf
      %v2229 = vsel %vm2134, %v1806, -inf
      %v2230 = vsel %vm2134, %v1808, -inf
      %v2231 = vsel %vm2134, %v1919, -inf
      %v2232 = vsel %vm2134, %v1921, -inf
      %v2233 = vsel %vm2134, %v2032, -inf
      %v2234 = vsel %vm2134, %v2034, -inf
      %v2235 = vsel %vm2135, %v1699, -inf
      %v2236 = vsel %vm2135, %v1701, -inf
      %v2237 = vsel %vm2135, %v1812, -inf
      %v2238 = vsel %vm2135, %v1814, -inf
      %v2239 = vsel %vm2135, %v1925, -inf
      %v2240 = vsel %vm2135, %v1927, -inf
      %v2241 = vsel %vm2135, %v2038, -inf
      %v2242 = vsel %vm2135, %v2040, -inf
      %v2243 = vsel %vm2136, %v1703, -inf
      %v2244 = vsel %vm2136, %v1705, -inf
      %v2245 = vsel %vm2136, %v1816, -inf
      %v2246 = vsel %vm2136, %v1818, -inf
      %v2247 = vsel %vm2136, %v1929, -inf
      %v2248 = vsel %vm2136, %v1931, -inf
      %v2249 = vsel %vm2136, %v2042, -inf
      %v2250 = vsel %vm2136, %v2044, -inf
      %v2251 = vsel %vm2137, %v1709, -inf
      %v2252 = vsel %vm2137, %v1711, -inf
      %v2253 = vsel %vm2137, %v1822, -inf
      %v2254 = vsel %vm2137, %v1824, -inf
      %v2255 = vsel %vm2137, %v1935, -inf
      %v2256 = vsel %vm2137, %v1937, -inf
      %v2257 = vsel %vm2137, %v2048, -inf
      %v2258 = vsel %vm2137, %v2050, -inf
      %v2259 = vsel %vm2138, %v1713, -inf
      %v2260 = vsel %vm2138, %v1715, -inf
      %v2261 = vsel %vm2138, %v1826, -inf
      %v2262 = vsel %vm2138, %v1828, -inf
      %v2263 = vsel %vm2138, %v1939, -inf
      %v2264 = vsel %vm2138, %v1941, -inf
      %v2265 = vsel %vm2138, %v2052, -inf
      %v2266 = vsel %vm2138, %v2054, -inf
      %v2267 = vld [vmem:[#allocation2] sm:$0xff]
      %v2268 = vmax.f32 %v2139, %v2147
      %v2269 = vmax.f32 %v2268, %v2155
      %v2270 = vmax.f32 %v2269, %v2163
      %v2271 = vmax.f32 %v2270, %v2171
      %v2272 = vmax.f32 %v2271, %v2179
      %v2273 = vmax.f32 %v2272, %v2187
      %v2274 = vmax.f32 %v2273, %v2195
      %v2275 = vmax.f32 %v2274, %v2203
      %v2276 = vmax.f32 %v2275, %v2211
      %v2277 = vmax.f32 %v2276, %v2219
      %v2278 = vmax.f32 %v2277, %v2227
      %v2279 = vmax.f32 %v2278, %v2235
      %v2280 = vmax.f32 %v2279, %v2243
      %v2281 = vmax.f32 %v2280, %v2251
      %v2282 = vmax.f32 %v2281, %v2259
      %v2283 = vrot.slane %v2282, 4
      %v2284 = vmax.f32 %v2282, %v2283
      %v2285 = vrot.slane %v2284, 2
      %v2286 = vmax.f32 %v2284, %v2285
      %v2287 = vrot.slane %v2286, 1
      %v2288 = vmax.f32 %v2286, %v2287
      %v2289 = vmax.f32 %v2140, %v2148
      %v2290 = vmax.f32 %v2289, %v2156
      %v2291 = vmax.f32 %v2290, %v2164
      %v2292 = vmax.f32 %v2291, %v2172
      %v2293 = vmax.f32 %v2292, %v2180
      %v2294 = vmax.f32 %v2293, %v2188
      %v2295 = vmax.f32 %v2294, %v2196
      %v2296 = vmax.f32 %v2295, %v2204
      %v2297 = vmax.f32 %v2296, %v2212
      %v2298 = vmax.f32 %v2297, %v2220
      %v2299 = vmax.f32 %v2298, %v2228
      %v2300 = vmax.f32 %v2299, %v2236
      %v2301 = vmax.f32 %v2300, %v2244
      %v2302 = vmax.f32 %v2301, %v2252
      %v2303 = vmax.f32 %v2302, %v2260
      %v2304 = vrot.slane %v2303, 4
      %v2305 = vmax.f32 %v2303, %v2304
      %v2306 = vrot.slane %v2305, 2
      %v2307 = vmax.f32 %v2305, %v2306
      %v2308 = vrot.slane %v2307, 1
      %v2309 = vmax.f32 %v2307, %v2308
      %v2310 = vmax.f32 %v2141, %v2149
      %v2311 = vmax.f32 %v2310, %v2157
      %v2312 = vmax.f32 %v2311, %v2165
      %v2313 = vmax.f32 %v2312, %v2173
      %v2314 = vmax.f32 %v2313, %v2181
      %v2315 = vmax.f32 %v2314, %v2189
      %v2316 = vmax.f32 %v2315, %v2197
      %v2317 = vmax.f32 %v2316, %v2205
      %v2318 = vmax.f32 %v2317, %v2213
      %v2319 = vmax.f32 %v2318, %v2221
      %v2320 = vmax.f32 %v2319, %v2229
      %v2321 = vmax.f32 %v2320, %v2237
      %v2322 = vmax.f32 %v2321, %v2245
      %v2323 = vmax.f32 %v2322, %v2253
      %v2324 = vmax.f32 %v2323, %v2261
      %v2325 = vrot.slane %v2324, 4
      %v2326 = vmax.f32 %v2324, %v2325
      %v2327 = vrot.slane %v2326, 2
      %v2328 = vmax.f32 %v2326, %v2327
      %v2329 = vrot.slane %v2328, 1
      %v2330 = vmax.f32 %v2328, %v2329
      %v2331 = vmax.f32 %v2142, %v2150
      %v2332 = vmax.f32 %v2331, %v2158
      %v2333 = vmax.f32 %v2332, %v2166
      %v2334 = vmax.f32 %v2333, %v2174
      %v2335 = vmax.f32 %v2334, %v2182
      %v2336 = vmax.f32 %v2335, %v2190
      %v2337 = vmax.f32 %v2336, %v2198
      %v2338 = vmax.f32 %v2337, %v2206
      %v2339 = vmax.f32 %v2338, %v2214
      %v2340 = vmax.f32 %v2339, %v2222
      %v2341 = vmax.f32 %v2340, %v2230
      %v2342 = vmax.f32 %v2341, %v2238
      %v2343 = vmax.f32 %v2342, %v2246
      %v2344 = vmax.f32 %v2343, %v2254
      %v2345 = vmax.f32 %v2344, %v2262
      %v2346 = vrot.slane %v2345, 4
      %v2347 = vmax.f32 %v2345, %v2346
      %v2348 = vrot.slane %v2347, 2
      %v2349 = vmax.f32 %v2347, %v2348
      %v2350 = vrot.slane %v2349, 1
      %v2351 = vmax.f32 %v2349, %v2350
      %v2352 = vmax.f32 %v2143, %v2151
      %v2353 = vmax.f32 %v2352, %v2159
      %v2354 = vmax.f32 %v2353, %v2167
      %v2355 = vmax.f32 %v2354, %v2175
      %v2356 = vmax.f32 %v2355, %v2183
      %v2357 = vmax.f32 %v2356, %v2191
      %v2358 = vmax.f32 %v2357, %v2199
      %v2359 = vmax.f32 %v2358, %v2207
      %v2360 = vmax.f32 %v2359, %v2215
      %v2361 = vmax.f32 %v2360, %v2223
      %v2362 = vmax.f32 %v2361, %v2231
      %v2363 = vmax.f32 %v2362, %v2239
      %v2364 = vmax.f32 %v2363, %v2247
      %v2365 = vmax.f32 %v2364, %v2255
      %v2366 = vmax.f32 %v2365, %v2263
      %v2367 = vrot.slane %v2366, 4
      %v2368 = vmax.f32 %v2366, %v2367
      %v2369 = vrot.slane %v2368, 2
      %v2370 = vmax.f32 %v2368, %v2369
      %v2371 = vrot.slane %v2370, 1
      %v2372 = vmax.f32 %v2370, %v2371
      %v2373 = vmax.f32 %v2144, %v2152
      %v2374 = vmax.f32 %v2373, %v2160
      %v2375 = vmax.f32 %v2374, %v2168
      %v2376 = vmax.f32 %v2375, %v2176
      %v2377 = vmax.f32 %v2376, %v2184
      %v2378 = vmax.f32 %v2377, %v2192
      %v2379 = vmax.f32 %v2378, %v2200
      %v2380 = vmax.f32 %v2379, %v2208
      %v2381 = vmax.f32 %v2380, %v2216
      %v2382 = vmax.f32 %v2381, %v2224
      %v2383 = vmax.f32 %v2382, %v2232
      %v2384 = vmax.f32 %v2383, %v2240
      %v2385 = vmax.f32 %v2384, %v2248
      %v2386 = vmax.f32 %v2385, %v2256
      %v2387 = vmax.f32 %v2386, %v2264
      %v2388 = vrot.slane %v2387, 4
      %v2389 = vmax.f32 %v2387, %v2388
      %v2390 = vrot.slane %v2389, 2
      %v2391 = vmax.f32 %v2389, %v2390
      %v2392 = vrot.slane %v2391, 1
      %v2393 = vmax.f32 %v2391, %v2392
      %v2394 = vmax.f32 %v2145, %v2153
      %v2395 = vmax.f32 %v2394, %v2161
      %v2396 = vmax.f32 %v2395, %v2169
      %v2397 = vmax.f32 %v2396, %v2177
      %v2398 = vmax.f32 %v2397, %v2185
      %v2399 = vmax.f32 %v2398, %v2193
      %v2400 = vmax.f32 %v2399, %v2201
      %v2401 = vmax.f32 %v2400, %v2209
      %v2402 = vmax.f32 %v2401, %v2217
      %v2403 = vmax.f32 %v2402, %v2225
      %v2404 = vmax.f32 %v2403, %v2233
      %v2405 = vmax.f32 %v2404, %v2241
      %v2406 = vmax.f32 %v2405, %v2249
      %v2407 = vmax.f32 %v2406, %v2257
      %v2408 = vmax.f32 %v2407, %v2265
      %v2409 = vrot.slane %v2408, 4
      %v2410 = vmax.f32 %v2408, %v2409
      %v2411 = vrot.slane %v2410, 2
      %v2412 = vmax.f32 %v2410, %v2411
      %v2413 = vrot.slane %v2412, 1
      %v2414 = vmax.f32 %v2412, %v2413
      %v2415 = vmax.f32 %v2146, %v2154
      %v2416 = vmax.f32 %v2415, %v2162
      %v2417 = vmax.f32 %v2416, %v2170
      %v2418 = vmax.f32 %v2417, %v2178
      %v2419 = vmax.f32 %v2418, %v2186
      %v2420 = vmax.f32 %v2419, %v2194
      %v2421 = vmax.f32 %v2420, %v2202
      %v2422 = vmax.f32 %v2421, %v2210
      %v2423 = vmax.f32 %v2422, %v2218
      %v2424 = vmax.f32 %v2423, %v2226
      %v2425 = vmax.f32 %v2424, %v2234
      %v2426 = vmax.f32 %v2425, %v2242
      %v2427 = vmax.f32 %v2426, %v2250
      %v2428 = vmax.f32 %v2427, %v2258
      %v2429 = vmax.f32 %v2428, %v2266
      %v2430 = vrot.slane %v2429, 4
      %v2431 = vmax.f32 %v2429, %v2430
      %v2432 = vrot.slane %v2431, 2
      %v2433 = vmax.f32 %v2431, %v2432
      %v2434 = vrot.slane %v2433, 1
      %v2435 = vmax.f32 %v2433, %v2434
      %v2444 = vcombine.low %v2288, %v2309
      %v2445 = vcombine.low %v2330, %v2351
      %v2446 = vcombine.low %v2372, %v2393
      %v2447 = vcombine.low %v2414, %v2435
      %v2449 = vunpack.c.l.s4 1966171168
      %v2450 = vunpack.c.0.s8 %v2449
      %v2451 = vlaneseq
      %v2452 = vshrl.u32 %v2451, 7
      %v2453 = vsub.s32 %v2450, %v2452
      %v2454 = vrot.slane %v2444, %v2453
      %v2456 = vunpack.c.l.s4 1966171168
      %v2457 = vunpack.c.0.s8 %v2456
      %v2458 = vlaneseq
      %v2459 = vshrl.u32 %v2458, 7
      %v2460 = vsub.s32 %v2457, %v2459
      %v2461 = vrot.slane %v2445, %v2460
      %v2463 = vunpack.c.l.s4 1966171168
      %v2464 = vunpack.c.0.s8 %v2463
      %v2465 = vlaneseq
      %v2466 = vshrl.u32 %v2465, 7
      %v2467 = vsub.s32 %v2464, %v2466
      %v2468 = vrot.slane %v2446, %v2467
      %v2470 = vunpack.c.l.s4 1966171168
      %v2471 = vunpack.c.0.s8 %v2470
      %v2472 = vlaneseq
      %v2473 = vshrl.u32 %v2472, 7
      %v2474 = vsub.s32 %v2471, %v2473
      %v2475 = vrot.slane %v2447, %v2474
      %v2476 = vcombine.low %v2454, %v2461
      %v2477 = vcombine.low %v2468, %v2475
      %v2479 = vunpack.c.l.s4 1966171168
      %v2480 = vunpack.c.0.s8 %v2479
      %v2481 = vlaneseq
      %v2482 = vshrl.u32 %v2481, 7
      %v2483 = vsub.s32 %v2480, %v2482
      %v2484 = vrot.slane %v2476, %v2483
      %v2486 = vunpack.c.l.s4 1966171168
      %v2487 = vunpack.c.0.s8 %v2486
      %v2488 = vlaneseq
      %v2489 = vshrl.u32 %v2488, 7
      %v2490 = vsub.s32 %v2487, %v2489
      %v2491 = vrot.slane %v2477, %v2490
      %v2492 = vcombine.low %v2484, %v2491
      %v2494 = vmax.f32 %v2267, %v2492
      %2495 = vst [vmem:[#allocation2] sm:$0xff] %v2494
      // Predicated region
      $region53: #{alignment_forward.3} parent=47 // pred_check
        %p2496 = pneg %p306
      $region54: #{alignment_forward.3} parent=47 // pred_check_branch
        %2498 = sbr.rel (%p2496) target = $region56
      $region55: #{alignment_forward.3} parent=47 // pred_region
        %v2499 = vld [vmem:[#allocation2] sm:$0xff]
        %2500 = vst [vmem:[%s304] sm:$0xff] %v2499
      $region56: #{alignment_forward.3} parent=47 // pred_fallthru
        _
      %p2501 = scmp.lt.s32.totalorder %s22, 1
      %s2502 = scalar_select %p2501, %s22, 1
      %s2503 = smul.addr %s2502, 8
      %s2504 = scalar_lea.vmem %s7, %s2503
      // Predicated region
      $region57: #{alignment_forward.3} parent=47 // pred_check
        %p2505 = pneg %p202
      $region58: #{alignment_forward.3} parent=47 // pred_check_branch
        %2507 = sbr.rel (%p2505) target = $region60
      $region59: #{alignment_forward.3} parent=47 // pred_region
        _
      $region60: #{alignment_forward.3} parent=47 // pred_fallthru
        _
    $region48: #{alignment_forward.3} parent=5 // pred_fallthru
      _
    %p2508 = scmp.le.s32.totalorder 2, %s13
    // Predicated region
    $region61: #{alignment_forward.3} parent=5 // pred_check
      %p2509 = pneg %p2508
    $region62: #{alignment_forward.3} parent=5 // pred_check_branch
      %2511 = sbr.rel (%p2509) target = $region64
    $region63: #{alignment_forward.3} parent=5 // pred_region
      %s2512 = ssub.s32 %s13, 2
      // Predicated region
      $region65: #{alignment_forward.3} parent=63 // pred_check
        %p2513 = pneg %p208
      $region66: #{alignment_forward.3} parent=63 // pred_check_branch
        %2515 = sbr.rel (%p2513) target = $region68
      $region67: #{alignment_forward.3} parent=63 // pred_region
        %p2516 = scmp.lt.s32.totalorder %s24, 1
        %s2517 = scalar_select %p2516, %s24, 1
        %s2518 = smul.addr %s2517, 8
        %s2519 = scalar_lea.vmem %s7, %s2518
      $region68: #{alignment_forward.3} parent=63 // pred_fallthru
        _
    $region64: #{alignment_forward.3} parent=5 // pred_fallthru
      _
  $region6: #{alignment_forward.3} parent=0 // loop_footer
    %s17 = sadd.s32 1, %s13
  $region7: #{alignment_forward.3} parent=0 // loop_footer_branch
    %12 = sbr.rel target = $region3
  $region8: #{alignment_forward.3} parent=0 // loop_exit
    _

// kernel: alignment_forward.4
$region0: #{alignment_forward.4}
  #allocation0 [shape = 'u32[]', space=smem, size = 0x4, offset = 0x4, fixed_abs, tag = 'smem constant byte address 0x4 - core index']
  #allocation1 [shape = 'u32[144,128]{1,0:T(1,128)}', space=vmem, size = 0x12000, scoped, tag = 'internal scratch']
  %s0 = inlined_call_operand.vmem [shape: f32[2,1024], index: 0, kind: input, shape index: {}]
  %s1 = inlined_call_operand.vmem [shape: bf16[1024,512], index: 1, kind: input, shape index: {}]
  %s2 = inlined_call_operand.vmem [shape: f32[1,512], index: 2, kind: input, shape index: {}]
  %s3 = inlined_call_operand.vmem [shape: bf16[512,256], index: 3, kind: input, shape index: {}]
  %s4 = inlined_call_operand.vmem [shape: f32[1,256], index: 4, kind: input, shape index: {}]
  %s5 = inlined_call_operand.vmem [shape: bf16[256,64], index: 5, kind: input, shape index: {}]
  %s6 = inlined_call_operand.vmem [shape: f32[1,64], index: 6, kind: input, shape index: {}]
  %s7 = inlined_call_operand.vmem [shape: f32[2,64], index: 7, kind: output, shape index: {}]
  %s8 = sld [smem:[#allocation0]]
  $region38: #{alignment_forward.4} parent=0
    _
  %s10 = ssub.s32 1, %s8
  %s11 = scalar_select 0, %s10, %s8
  // Predicated region
  $region2: #{alignment_forward.4} parent=0 // pred_check
    _
  $region3: #{alignment_forward.4} parent=0 // pred_check_branch
    %13 = sbr.rel (0) target = $region5
  $region4: #{alignment_forward.4} parent=0 // pred_region
    _
  $region5: #{alignment_forward.4} parent=0 // pred_fallthru
    _
  // Predicated region
  $region6: #{alignment_forward.4} parent=0 // pred_check
    _
  $region7: #{alignment_forward.4} parent=0 // pred_check_branch
    %15 = sbr.rel (0) target = $region9
  $region8: #{alignment_forward.4} parent=0 // pred_region
    _
  $region9: #{alignment_forward.4} parent=0 // pred_fallthru
    _
  // Predicated region
  $region10: #{alignment_forward.4} parent=0 // pred_check
    _
  $region11: #{alignment_forward.4} parent=0 // pred_check_branch
    %17 = sbr.rel (0) target = $region13
  $region12: #{alignment_forward.4} parent=0 // pred_region
    _
  $region13: #{alignment_forward.4} parent=0 // pred_fallthru
    _
  // Predicated region
  $region14: #{alignment_forward.4} parent=0 // pred_check
    _
  $region15: #{alignment_forward.4} parent=0 // pred_check_branch
    %19 = sbr.rel (0) target = $region17
  $region16: #{alignment_forward.4} parent=0 // pred_region
    _
  $region17: #{alignment_forward.4} parent=0 // pred_fallthru
    _
  // Predicated region
  $region18: #{alignment_forward.4} parent=0 // pred_check
    _
  $region19: #{alignment_forward.4} parent=0 // pred_check_branch
    %21 = sbr.rel (0) target = $region21
  $region20: #{alignment_forward.4} parent=0 // pred_region
    _
  $region21: #{alignment_forward.4} parent=0 // pred_fallthru
    _
  // Predicated region
  $region22: #{alignment_forward.4} parent=0 // pred_check
    _
  $region23: #{alignment_forward.4} parent=0 // pred_check_branch
    %23 = sbr.rel (0) target = $region25
  $region24: #{alignment_forward.4} parent=0 // pred_region
    _
  $region25: #{alignment_forward.4} parent=0 // pred_fallthru
    _
  // Predicated region
  $region26: #{alignment_forward.4} parent=0 // pred_check
    _
  $region27: #{alignment_forward.4} parent=0 // pred_check_branch
    %25 = sbr.rel (0) target = $region29
  $region28: #{alignment_forward.4} parent=0 // pred_region
    _
  $region29: #{alignment_forward.4} parent=0 // pred_fallthru
    _
  %v27 = vld [vmem:[%s0] sm:$0xff]
  %v28 = vld [vmem:[%s0 + $0x8] sm:$0xff]
  %v31 = vcombine.high %v27, %v27
  %v33 = vunpack.c.l.s4 1983009808
  %v34 = vunpack.c.0.s8 %v33
  %v35 = vlaneseq
  %v36 = vshrl.u32 %v35, 7
  %v37 = vsub.s32 %v34, %v36
  %v38 = vrot.slane %v27, %v37
  %v40 = vunpack.c.l.s4 1983009808
  %v41 = vunpack.c.0.s8 %v40
  %v42 = vlaneseq
  %v43 = vshrl.u32 %v42, 7
  %v44 = vsub.s32 %v41, %v43
  %v45 = vrot.slane %v31, %v44
  %v46 = vcombine.high %v38, %v38
  %v47 = vcombine.high %v45, %v45
  %v48 = vcombine.high %v28, %v28
  %v50 = vunpack.c.l.s4 1983009808
  %v51 = vunpack.c.0.s8 %v50
  %v52 = vlaneseq
  %v53 = vshrl.u32 %v52, 7
  %v54 = vsub.s32 %v51, %v53
  %v55 = vrot.slane %v28, %v54
  %v57 = vunpack.c.l.s4 1983009808
  %v58 = vunpack.c.0.s8 %v57
  %v59 = vlaneseq
  %v60 = vshrl.u32 %v59, 7
  %v61 = vsub.s32 %v58, %v60
  %v62 = vrot.slane %v48, %v61
  %v63 = vcombine.high %v55, %v55
  %v64 = vcombine.high %v62, %v62
  %v73 = vpack.c.bf16 %v38, %v38
  %v74 = vpack.c.bf16 %v46, %v46
  %v75 = vpack.c.bf16 %v45, %v45
  %v76 = vpack.c.bf16 %v47, %v47
  %v77 = vpack.c.bf16 %v55, %v55
  %v78 = vpack.c.bf16 %v63, %v63
  %v79 = vpack.c.bf16 %v62, %v62
  %v80 = vpack.c.bf16 %v64, %v64
  %v81 = vld [vmem:[%s1] sm:$0xff]
  %v82 = vld [vmem:[%s1 + $0x8] sm:$0xff]
  %v83 = vld [vmem:[%s1 + $0x10] sm:$0xff]
  %v84 = vld [vmem:[%s1 + $0x18] sm:$0xff]
  %v85 = vld [vmem:[%s1 + $0x20] sm:$0xff]
  %v86 = vld [vmem:[%s1 + $0x28] sm:$0xff]
  %v87 = vld [vmem:[%s1 + $0x30] sm:$0xff]
  %v88 = vld [vmem:[%s1 + $0x38] sm:$0xff]
  %v89 = vld [vmem:[%s1 + $0x40] sm:$0xff]
  %v90 = vld [vmem:[%s1 + $0x48] sm:$0xff]
  %v91 = vld [vmem:[%s1 + $0x50] sm:$0xff]
  %v92 = vld [vmem:[%s1 + $0x58] sm:$0xff]
  %v93 = vld [vmem:[%s1 + $0x60] sm:$0xff]
  %v94 = vld [vmem:[%s1 + $0x68] sm:$0xff]
  %v95 = vld [vmem:[%s1 + $0x70] sm:$0xff]
  %v96 = vld [vmem:[%s1 + $0x78] sm:$0xff]
  %v97 = vld [vmem:[%s1 + $0x80] sm:$0xff]
  %v98 = vld [vmem:[%s1 + $0x88] sm:$0xff]
  %v99 = vld [vmem:[%s1 + $0x90] sm:$0xff]
  %v100 = vld [vmem:[%s1 + $0x98] sm:$0xff]
  %v101 = vld [vmem:[%s1 + $0xa0] sm:$0xff]
  %v102 = vld [vmem:[%s1 + $0xa8] sm:$0xff]
  %v103 = vld [vmem:[%s1 + $0xb0] sm:$0xff]
  %v104 = vld [vmem:[%s1 + $0xb8] sm:$0xff]
  %v105 = vld [vmem:[%s1 + $0xc0] sm:$0xff]
  %v106 = vld [vmem:[%s1 + $0xc8] sm:$0xff]
  %v107 = vld [vmem:[%s1 + $0xd0] sm:$0xff]
  %v108 = vld [vmem:[%s1 + $0xd8] sm:$0xff]
  %v109 = vld [vmem:[%s1 + $0xe0] sm:$0xff]
  %v110 = vld [vmem:[%s1 + $0xe8] sm:$0xff]
  %v111 = vld [vmem:[%s1 + $0xf0] sm:$0xff]
  %v112 = vld [vmem:[%s1 + $0xf8] sm:$0xff]
  %v113 = vld [vmem:[%s1 + $0x100] sm:$0xff]
  %v114 = vld [vmem:[%s1 + $0x108] sm:$0xff]
  %v115 = vld [vmem:[%s1 + $0x110] sm:$0xff]
  %v116 = vld [vmem:[%s1 + $0x118] sm:$0xff]
  %v117 = vld [vmem:[%s1 + $0x120] sm:$0xff]
  %v118 = vld [vmem:[%s1 + $0x128] sm:$0xff]
  %v119 = vld [vmem:[%s1 + $0x130] sm:$0xff]
  %v120 = vld [vmem:[%s1 + $0x138] sm:$0xff]
  %v121 = vld [vmem:[%s1 + $0x140] sm:$0xff]
  %v122 = vld [vmem:[%s1 + $0x148] sm:$0xff]
  %v123 = vld [vmem:[%s1 + $0x150] sm:$0xff]
  %v124 = vld [vmem:[%s1 + $0x158] sm:$0xff]
  %v125 = vld [vmem:[%s1 + $0x160] sm:$0xff]
  %v126 = vld [vmem:[%s1 + $0x168] sm:$0xff]
  %v127 = vld [vmem:[%s1 + $0x170] sm:$0xff]
  %v128 = vld [vmem:[%s1 + $0x178] sm:$0xff]
  %v129 = vld [vmem:[%s1 + $0x180] sm:$0xff]
  %v130 = vld [vmem:[%s1 + $0x188] sm:$0xff]
  %v131 = vld [vmem:[%s1 + $0x190] sm:$0xff]
  %v132 = vld [vmem:[%s1 + $0x198] sm:$0xff]
  %v133 = vld [vmem:[%s1 + $0x1a0] sm:$0xff]
  %v134 = vld [vmem:[%s1 + $0x1a8] sm:$0xff]
  %v135 = vld [vmem:[%s1 + $0x1b0] sm:$0xff]
  %v136 = vld [vmem:[%s1 + $0x1b8] sm:$0xff]
  %v137 = vld [vmem:[%s1 + $0x1c0] sm:$0xff]
  %v138 = vld [vmem:[%s1 + $0x1c8] sm:$0xff]
  %v139 = vld [vmem:[%s1 + $0x1d0] sm:$0xff]
  %v140 = vld [vmem:[%s1 + $0x1d8] sm:$0xff]
  %v141 = vld [vmem:[%s1 + $0x1e0] sm:$0xff]
  %v142 = vld [vmem:[%s1 + $0x1e8] sm:$0xff]
  %v143 = vld [vmem:[%s1 + $0x1f0] sm:$0xff]
  %v144 = vld [vmem:[%s1 + $0x1f8] sm:$0xff]
  %v145 = vld [vmem:[%s1 + $0x200] sm:$0xff]
  %v146 = vld [vmem:[%s1 + $0x208] sm:$0xff]
  %v147 = vld [vmem:[%s1 + $0x210] sm:$0xff]
  %v148 = vld [vmem:[%s1 + $0x218] sm:$0xff]
  %v149 = vld [vmem:[%s1 + $0x220] sm:$0xff]
  %v150 = vld [vmem:[%s1 + $0x228] sm:$0xff]
  %v151 = vld [vmem:[%s1 + $0x230] sm:$0xff]
  %v152 = vld [vmem:[%s1 + $0x238] sm:$0xff]
  %v153 = vld [vmem:[%s1 + $0x240] sm:$0xff]
  %v154 = vld [vmem:[%s1 + $0x248] sm:$0xff]
  %v155 = vld [vmem:[%s1 + $0x250] sm:$0xff]
  %v156 = vld [vmem:[%s1 + $0x258] sm:$0xff]
  %v157 = vld [vmem:[%s1 + $0x260] sm:$0xff]
  %v158 = vld [vmem:[%s1 + $0x268] sm:$0xff]
  %v159 = vld [vmem:[%s1 + $0x270] sm:$0xff]
  %v160 = vld [vmem:[%s1 + $0x278] sm:$0xff]
  %v161 = vld [vmem:[%s1 + $0x280] sm:$0xff]
  %v162 = vld [vmem:[%s1 + $0x288] sm:$0xff]
  %v163 = vld [vmem:[%s1 + $0x290] sm:$0xff]
  %v164 = vld [vmem:[%s1 + $0x298] sm:$0xff]
  %v165 = vld [vmem:[%s1 + $0x2a0] sm:$0xff]
  %v166 = vld [vmem:[%s1 + $0x2a8] sm:$0xff]
  %v167 = vld [vmem:[%s1 + $0x2b0] sm:$0xff]
  %v168 = vld [vmem:[%s1 + $0x2b8] sm:$0xff]
  %v169 = vld [vmem:[%s1 + $0x2c0] sm:$0xff]
  %v170 = vld [vmem:[%s1 + $0x2c8] sm:$0xff]
  %v171 = vld [vmem:[%s1 + $0x2d0] sm:$0xff]
  %v172 = vld [vmem:[%s1 + $0x2d8] sm:$0xff]
  %v173 = vld [vmem:[%s1 + $0x2e0] sm:$0xff]
  %v174 = vld [vmem:[%s1 + $0x2e8] sm:$0xff]
  %v175 = vld [vmem:[%s1 + $0x2f0] sm:$0xff]
  %v176 = vld [vmem:[%s1 + $0x2f8] sm:$0xff]
  %v177 = vld [vmem:[%s1 + $0x300] sm:$0xff]
  %v178 = vld [vmem:[%s1 + $0x308] sm:$0xff]
  %v179 = vld [vmem:[%s1 + $0x310] sm:$0xff]
  %v180 = vld [vmem:[%s1 + $0x318] sm:$0xff]
  %v181 = vld [vmem:[%s1 + $0x320] sm:$0xff]
  %v182 = vld [vmem:[%s1 + $0x328] sm:$0xff]
  %v183 = vld [vmem:[%s1 + $0x330] sm:$0xff]
  %v184 = vld [vmem:[%s1 + $0x338] sm:$0xff]
  %v185 = vld [vmem:[%s1 + $0x340] sm:$0xff]
  %v186 = vld [vmem:[%s1 + $0x348] sm:$0xff]
  %v187 = vld [vmem:[%s1 + $0x350] sm:$0xff]
  %v188 = vld [vmem:[%s1 + $0x358] sm:$0xff]
  %v189 = vld [vmem:[%s1 + $0x360] sm:$0xff]
  %v190 = vld [vmem:[%s1 + $0x368] sm:$0xff]
  %v191 = vld [vmem:[%s1 + $0x370] sm:$0xff]
  %v192 = vld [vmem:[%s1 + $0x378] sm:$0xff]
  %v193 = vld [vmem:[%s1 + $0x380] sm:$0xff]
  %v194 = vld [vmem:[%s1 + $0x388] sm:$0xff]
  %v195 = vld [vmem:[%s1 + $0x390] sm:$0xff]
  %v196 = vld [vmem:[%s1 + $0x398] sm:$0xff]
  %v197 = vld [vmem:[%s1 + $0x3a0] sm:$0xff]
  %v198 = vld [vmem:[%s1 + $0x3a8] sm:$0xff]
  %v199 = vld [vmem:[%s1 + $0x3b0] sm:$0xff]
  %v200 = vld [vmem:[%s1 + $0x3b8] sm:$0xff]
  %v201 = vld [vmem:[%s1 + $0x3c0] sm:$0xff]
  %v202 = vld [vmem:[%s1 + $0x3c8] sm:$0xff]
  %v203 = vld [vmem:[%s1 + $0x3d0] sm:$0xff]
  %v204 = vld [vmem:[%s1 + $0x3d8] sm:$0xff]
  %v205 = vld [vmem:[%s1 + $0x3e0] sm:$0xff]
  %v206 = vld [vmem:[%s1 + $0x3e8] sm:$0xff]
  %v207 = vld [vmem:[%s1 + $0x3f0] sm:$0xff]
  %v208 = vld [vmem:[%s1 + $0x3f8] sm:$0xff]
  %v209 = vld [vmem:[%s1 + $0x400] sm:$0xff]
  %v210 = vld [vmem:[%s1 + $0x408] sm:$0xff]
  %v211 = vld [vmem:[%s1 + $0x410] sm:$0xff]
  %v212 = vld [vmem:[%s1 + $0x418] sm:$0xff]
  %v213 = vld [vmem:[%s1 + $0x420] sm:$0xff]
  %v214 = vld [vmem:[%s1 + $0x428] sm:$0xff]
  %v215 = vld [vmem:[%s1 + $0x430] sm:$0xff]
  %v216 = vld [vmem:[%s1 + $0x438] sm:$0xff]
  %v217 = vld [vmem:[%s1 + $0x440] sm:$0xff]
  %v218 = vld [vmem:[%s1 + $0x448] sm:$0xff]
  %v219 = vld [vmem:[%s1 + $0x450] sm:$0xff]
  %v220 = vld [vmem:[%s1 + $0x458] sm:$0xff]
  %v221 = vld [vmem:[%s1 + $0x460] sm:$0xff]
  %v222 = vld [vmem:[%s1 + $0x468] sm:$0xff]
  %v223 = vld [vmem:[%s1 + $0x470] sm:$0xff]
  %v224 = vld [vmem:[%s1 + $0x478] sm:$0xff]
  %v225 = vld [vmem:[%s1 + $0x480] sm:$0xff]
  %v226 = vld [vmem:[%s1 + $0x488] sm:$0xff]
  %v227 = vld [vmem:[%s1 + $0x490] sm:$0xff]
  %v228 = vld [vmem:[%s1 + $0x498] sm:$0xff]
  %v229 = vld [vmem:[%s1 + $0x4a0] sm:$0xff]
  %v230 = vld [vmem:[%s1 + $0x4a8] sm:$0xff]
  %v231 = vld [vmem:[%s1 + $0x4b0] sm:$0xff]
  %v232 = vld [vmem:[%s1 + $0x4b8] sm:$0xff]
  %v233 = vld [vmem:[%s1 + $0x4c0] sm:$0xff]
  %v234 = vld [vmem:[%s1 + $0x4c8] sm:$0xff]
  %v235 = vld [vmem:[%s1 + $0x4d0] sm:$0xff]
  %v236 = vld [vmem:[%s1 + $0x4d8] sm:$0xff]
  %v237 = vld [vmem:[%s1 + $0x4e0] sm:$0xff]
  %v238 = vld [vmem:[%s1 + $0x4e8] sm:$0xff]
  %v239 = vld [vmem:[%s1 + $0x4f0] sm:$0xff]
  %v240 = vld [vmem:[%s1 + $0x4f8] sm:$0xff]
  %v241 = vld [vmem:[%s1 + $0x500] sm:$0xff]
  %v242 = vld [vmem:[%s1 + $0x508] sm:$0xff]
  %v243 = vld [vmem:[%s1 + $0x510] sm:$0xff]
  %v244 = vld [vmem:[%s1 + $0x518] sm:$0xff]
  %v245 = vld [vmem:[%s1 + $0x520] sm:$0xff]
  %v246 = vld [vmem:[%s1 + $0x528] sm:$0xff]
  %v247 = vld [vmem:[%s1 + $0x530] sm:$0xff]
  %v248 = vld [vmem:[%s1 + $0x538] sm:$0xff]
  %v249 = vld [vmem:[%s1 + $0x540] sm:$0xff]
  %v250 = vld [vmem:[%s1 + $0x548] sm:$0xff]
  %v251 = vld [vmem:[%s1 + $0x550] sm:$0xff]
  %v252 = vld [vmem:[%s1 + $0x558] sm:$0xff]
  %v253 = vld [vmem:[%s1 + $0x560] sm:$0xff]
  %v254 = vld [vmem:[%s1 + $0x568] sm:$0xff]
  %v255 = vld [vmem:[%s1 + $0x570] sm:$0xff]
  %v256 = vld [vmem:[%s1 + $0x578] sm:$0xff]
  %v257 = vld [vmem:[%s1 + $0x580] sm:$0xff]
  %v258 = vld [vmem:[%s1 + $0x588] sm:$0xff]
  %v259 = vld [vmem:[%s1 + $0x590] sm:$0xff]
  %v260 = vld [vmem:[%s1 + $0x598] sm:$0xff]
  %v261 = vld [vmem:[%s1 + $0x5a0] sm:$0xff]
  %v262 = vld [vmem:[%s1 + $0x5a8] sm:$0xff]
  %v263 = vld [vmem:[%s1 + $0x5b0] sm:$0xff]
  %v264 = vld [vmem:[%s1 + $0x5b8] sm:$0xff]
  %v265 = vld [vmem:[%s1 + $0x5c0] sm:$0xff]
  %v266 = vld [vmem:[%s1 + $0x5c8] sm:$0xff]
  %v267 = vld [vmem:[%s1 + $0x5d0] sm:$0xff]
  %v268 = vld [vmem:[%s1 + $0x5d8] sm:$0xff]
  %v269 = vld [vmem:[%s1 + $0x5e0] sm:$0xff]
  %v270 = vld [vmem:[%s1 + $0x5e8] sm:$0xff]
  %v271 = vld [vmem:[%s1 + $0x5f0] sm:$0xff]
  %v272 = vld [vmem:[%s1 + $0x5f8] sm:$0xff]
  %v273 = vld [vmem:[%s1 + $0x600] sm:$0xff]
  %v274 = vld [vmem:[%s1 + $0x608] sm:$0xff]
  %v275 = vld [vmem:[%s1 + $0x610] sm:$0xff]
  %v276 = vld [vmem:[%s1 + $0x618] sm:$0xff]
  %v277 = vld [vmem:[%s1 + $0x620] sm:$0xff]
  %v278 = vld [vmem:[%s1 + $0x628] sm:$0xff]
  %v279 = vld [vmem:[%s1 + $0x630] sm:$0xff]
  %v280 = vld [vmem:[%s1 + $0x638] sm:$0xff]
  %v281 = vld [vmem:[%s1 + $0x640] sm:$0xff]
  %v282 = vld [vmem:[%s1 + $0x648] sm:$0xff]
  %v283 = vld [vmem:[%s1 + $0x650] sm:$0xff]
  %v284 = vld [vmem:[%s1 + $0x658] sm:$0xff]
  %v285 = vld [vmem:[%s1 + $0x660] sm:$0xff]
  %v286 = vld [vmem:[%s1 + $0x668] sm:$0xff]
  %v287 = vld [vmem:[%s1 + $0x670] sm:$0xff]
  %v288 = vld [vmem:[%s1 + $0x678] sm:$0xff]
  %v289 = vld [vmem:[%s1 + $0x680] sm:$0xff]
  %v290 = vld [vmem:[%s1 + $0x688] sm:$0xff]
  %v291 = vld [vmem:[%s1 + $0x690] sm:$0xff]
  %v292 = vld [vmem:[%s1 + $0x698] sm:$0xff]
  %v293 = vld [vmem:[%s1 + $0x6a0] sm:$0xff]
  %v294 = vld [vmem:[%s1 + $0x6a8] sm:$0xff]
  %v295 = vld [vmem:[%s1 + $0x6b0] sm:$0xff]
  %v296 = vld [vmem:[%s1 + $0x6b8] sm:$0xff]
  %v297 = vld [vmem:[%s1 + $0x6c0] sm:$0xff]
  %v298 = vld [vmem:[%s1 + $0x6c8] sm:$0xff]
  %v299 = vld [vmem:[%s1 + $0x6d0] sm:$0xff]
  %v300 = vld [vmem:[%s1 + $0x6d8] sm:$0xff]
  %v301 = vld [vmem:[%s1 + $0x6e0] sm:$0xff]
  %v302 = vld [vmem:[%s1 + $0x6e8] sm:$0xff]
  %v303 = vld [vmem:[%s1 + $0x6f0] sm:$0xff]
  %v304 = vld [vmem:[%s1 + $0x6f8] sm:$0xff]
  %v305 = vld [vmem:[%s1 + $0x700] sm:$0xff]
  %v306 = vld [vmem:[%s1 + $0x708] sm:$0xff]
  %v307 = vld [vmem:[%s1 + $0x710] sm:$0xff]
  %v308 = vld [vmem:[%s1 + $0x718] sm:$0xff]
  %v309 = vld [vmem:[%s1 + $0x720] sm:$0xff]
  %v310 = vld [vmem:[%s1 + $0x728] sm:$0xff]
  %v311 = vld [vmem:[%s1 + $0x730] sm:$0xff]
  %v312 = vld [vmem:[%s1 + $0x738] sm:$0xff]
  %v313 = vld [vmem:[%s1 + $0x740] sm:$0xff]
  %v314 = vld [vmem:[%s1 + $0x748] sm:$0xff]
  %v315 = vld [vmem:[%s1 + $0x750] sm:$0xff]
  %v316 = vld [vmem:[%s1 + $0x758] sm:$0xff]
  %v317 = vld [vmem:[%s1 + $0x760] sm:$0xff]
  %v318 = vld [vmem:[%s1 + $0x768] sm:$0xff]
  %v319 = vld [vmem:[%s1 + $0x770] sm:$0xff]
  %v320 = vld [vmem:[%s1 + $0x778] sm:$0xff]
  %v321 = vld [vmem:[%s1 + $0x780] sm:$0xff]
  %v322 = vld [vmem:[%s1 + $0x788] sm:$0xff]
  %v323 = vld [vmem:[%s1 + $0x790] sm:$0xff]
  %v324 = vld [vmem:[%s1 + $0x798] sm:$0xff]
  %v325 = vld [vmem:[%s1 + $0x7a0] sm:$0xff]
  %v326 = vld [vmem:[%s1 + $0x7a8] sm:$0xff]
  %v327 = vld [vmem:[%s1 + $0x7b0] sm:$0xff]
  %v328 = vld [vmem:[%s1 + $0x7b8] sm:$0xff]
  %v329 = vld [vmem:[%s1 + $0x7c0] sm:$0xff]
  %v330 = vld [vmem:[%s1 + $0x7c8] sm:$0xff]
  %v331 = vld [vmem:[%s1 + $0x7d0] sm:$0xff]
  %v332 = vld [vmem:[%s1 + $0x7d8] sm:$0xff]
  %v333 = vld [vmem:[%s1 + $0x7e0] sm:$0xff]
  %v334 = vld [vmem:[%s1 + $0x7e8] sm:$0xff]
  %v335 = vld [vmem:[%s1 + $0x7f0] sm:$0xff]
  %v336 = vld [vmem:[%s1 + $0x7f8] sm:$0xff]
  %v337 = vld [vmem:[%s2] sm:$0xf]
  %v339 = vlaneseq
  %v340 = vshrl.u32 %v339, 7
  %v341 = vsub.s32 0, %v340
  %v342 = vrot.slane %v337, %v341
  %v343 = vlaneseq
  %v344 = vshrl.u32 %v343, 7
  %v345 = vsub.s32 1, %v344
  %v346 = vrot.slane %v337, %v345
  %v347 = vlaneseq
  %v348 = vshrl.u32 %v347, 7
  %v349 = vsub.s32 2, %v348
  %v350 = vrot.slane %v337, %v349
  %v351 = vlaneseq
  %v352 = vshrl.u32 %v351, 7
  %v353 = vsub.s32 3, %v352
  %v354 = vrot.slane %v337, %v353
  %v615 = vunpack.c.l.b16 %v81
  %v616 = vunpack.c.h.b16 %v81
  %v617 = vunpack.c.l.b16 %v82
  %v618 = vunpack.c.h.b16 %v82
  %v619 = vunpack.c.l.b16 %v83
  %v620 = vunpack.c.h.b16 %v83
  %v621 = vunpack.c.l.b16 %v84
  %v622 = vunpack.c.h.b16 %v84
  %v623 = vunpack.c.l.b16 %v85
  %v624 = vunpack.c.h.b16 %v85
  %v625 = vunpack.c.l.b16 %v86
  %v626 = vunpack.c.h.b16 %v86
  %v627 = vunpack.c.l.b16 %v87
  %v628 = vunpack.c.h.b16 %v87
  %v629 = vunpack.c.l.b16 %v88
  %v630 = vunpack.c.h.b16 %v88
  %v631 = vunpack.c.l.b16 %v89
  %v632 = vunpack.c.h.b16 %v89
  %v633 = vunpack.c.l.b16 %v90
  %v634 = vunpack.c.h.b16 %v90
  %v635 = vunpack.c.l.b16 %v91
  %v636 = vunpack.c.h.b16 %v91
  %v637 = vunpack.c.l.b16 %v92
  %v638 = vunpack.c.h.b16 %v92
  %v639 = vunpack.c.l.b16 %v93
  %v640 = vunpack.c.h.b16 %v93
  %v641 = vunpack.c.l.b16 %v94
  %v642 = vunpack.c.h.b16 %v94
  %v643 = vunpack.c.l.b16 %v95
  %v644 = vunpack.c.h.b16 %v95
  %v645 = vunpack.c.l.b16 %v96
  %v646 = vunpack.c.h.b16 %v96
  %v647 = vunpack.c.l.b16 %v97
  %v648 = vunpack.c.h.b16 %v97
  %v649 = vunpack.c.l.b16 %v98
  %v650 = vunpack.c.h.b16 %v98
  %v651 = vunpack.c.l.b16 %v99
  %v652 = vunpack.c.h.b16 %v99
  %v653 = vunpack.c.l.b16 %v100
  %v654 = vunpack.c.h.b16 %v100
  %v655 = vunpack.c.l.b16 %v101
  %v656 = vunpack.c.h.b16 %v101
  %v657 = vunpack.c.l.b16 %v102
  %v658 = vunpack.c.h.b16 %v102
  %v659 = vunpack.c.l.b16 %v103
  %v660 = vunpack.c.h.b16 %v103
  %v661 = vunpack.c.l.b16 %v104
  %v662 = vunpack.c.h.b16 %v104
  %v663 = vunpack.c.l.b16 %v105
  %v664 = vunpack.c.h.b16 %v105
  %v665 = vunpack.c.l.b16 %v106
  %v666 = vunpack.c.h.b16 %v106
  %v667 = vunpack.c.l.b16 %v107
  %v668 = vunpack.c.h.b16 %v107
  %v669 = vunpack.c.l.b16 %v108
  %v670 = vunpack.c.h.b16 %v108
  %v671 = vunpack.c.l.b16 %v109
  %v672 = vunpack.c.h.b16 %v109
  %v673 = vunpack.c.l.b16 %v110
  %v674 = vunpack.c.h.b16 %v110
  %v675 = vunpack.c.l.b16 %v111
  %v676 = vunpack.c.h.b16 %v111
  %v677 = vunpack.c.l.b16 %v112
  %v678 = vunpack.c.h.b16 %v112
  %v679 = vunpack.c.l.b16 %v113
  %v680 = vunpack.c.h.b16 %v113
  %v681 = vunpack.c.l.b16 %v114
  %v682 = vunpack.c.h.b16 %v114
  %v683 = vunpack.c.l.b16 %v115
  %v684 = vunpack.c.h.b16 %v115
  %v685 = vunpack.c.l.b16 %v116
  %v686 = vunpack.c.h.b16 %v116
  %v687 = vunpack.c.l.b16 %v117
  %v688 = vunpack.c.h.b16 %v117
  %v689 = vunpack.c.l.b16 %v118
  %v690 = vunpack.c.h.b16 %v118
  %v691 = vunpack.c.l.b16 %v119
  %v692 = vunpack.c.h.b16 %v119
  %v693 = vunpack.c.l.b16 %v120
  %v694 = vunpack.c.h.b16 %v120
  %v695 = vunpack.c.l.b16 %v121
  %v696 = vunpack.c.h.b16 %v121
  %v697 = vunpack.c.l.b16 %v122
  %v698 = vunpack.c.h.b16 %v122
  %v699 = vunpack.c.l.b16 %v123
  %v700 = vunpack.c.h.b16 %v123
  %v701 = vunpack.c.l.b16 %v124
  %v702 = vunpack.c.h.b16 %v124
  %v703 = vunpack.c.l.b16 %v125
  %v704 = vunpack.c.h.b16 %v125
  %v705 = vunpack.c.l.b16 %v126
  %v706 = vunpack.c.h.b16 %v126
  %v707 = vunpack.c.l.b16 %v127
  %v708 = vunpack.c.h.b16 %v127
  %v709 = vunpack.c.l.b16 %v128
  %v710 = vunpack.c.h.b16 %v128
  %v711 = vunpack.c.l.b16 %v129
  %v712 = vunpack.c.h.b16 %v129
  %v713 = vunpack.c.l.b16 %v130
  %v714 = vunpack.c.h.b16 %v130
  %v715 = vunpack.c.l.b16 %v131
  %v716 = vunpack.c.h.b16 %v131
  %v717 = vunpack.c.l.b16 %v132
  %v718 = vunpack.c.h.b16 %v132
  %v719 = vunpack.c.l.b16 %v133
  %v720 = vunpack.c.h.b16 %v133
  %v721 = vunpack.c.l.b16 %v134
  %v722 = vunpack.c.h.b16 %v134
  %v723 = vunpack.c.l.b16 %v135
  %v724 = vunpack.c.h.b16 %v135
  %v725 = vunpack.c.l.b16 %v136
  %v726 = vunpack.c.h.b16 %v136
  %v727 = vunpack.c.l.b16 %v137
  %v728 = vunpack.c.h.b16 %v137
  %v729 = vunpack.c.l.b16 %v138
  %v730 = vunpack.c.h.b16 %v138
  %v731 = vunpack.c.l.b16 %v139
  %v732 = vunpack.c.h.b16 %v139
  %v733 = vunpack.c.l.b16 %v140
  %v734 = vunpack.c.h.b16 %v140
  %v735 = vunpack.c.l.b16 %v141
  %v736 = vunpack.c.h.b16 %v141
  %v737 = vunpack.c.l.b16 %v142
  %v738 = vunpack.c.h.b16 %v142
  %v739 = vunpack.c.l.b16 %v143
  %v740 = vunpack.c.h.b16 %v143
  %v741 = vunpack.c.l.b16 %v144
  %v742 = vunpack.c.h.b16 %v144
  %v743 = vunpack.c.l.b16 %v145
  %v744 = vunpack.c.h.b16 %v145
  %v745 = vunpack.c.l.b16 %v146
  %v746 = vunpack.c.h.b16 %v146
  %v747 = vunpack.c.l.b16 %v147
  %v748 = vunpack.c.h.b16 %v147
  %v749 = vunpack.c.l.b16 %v148
  %v750 = vunpack.c.h.b16 %v148
  %v751 = vunpack.c.l.b16 %v149
  %v752 = vunpack.c.h.b16 %v149
  %v753 = vunpack.c.l.b16 %v150
  %v754 = vunpack.c.h.b16 %v150
  %v755 = vunpack.c.l.b16 %v151
  %v756 = vunpack.c.h.b16 %v151
  %v757 = vunpack.c.l.b16 %v152
  %v758 = vunpack.c.h.b16 %v152
  %v759 = vunpack.c.l.b16 %v153
  %v760 = vunpack.c.h.b16 %v153
  %v761 = vunpack.c.l.b16 %v154
  %v762 = vunpack.c.h.b16 %v154
  %v763 = vunpack.c.l.b16 %v155
  %v764 = vunpack.c.h.b16 %v155
  %v765 = vunpack.c.l.b16 %v156
  %v766 = vunpack.c.h.b16 %v156
  %v767 = vunpack.c.l.b16 %v157
  %v768 = vunpack.c.h.b16 %v157
  %v769 = vunpack.c.l.b16 %v158
  %v770 = vunpack.c.h.b16 %v158
  %v771 = vunpack.c.l.b16 %v159
  %v772 = vunpack.c.h.b16 %v159
  %v773 = vunpack.c.l.b16 %v160
  %v774 = vunpack.c.h.b16 %v160
  %v775 = vunpack.c.l.b16 %v161
  %v776 = vunpack.c.h.b16 %v161
  %v777 = vunpack.c.l.b16 %v162
  %v778 = vunpack.c.h.b16 %v162
  %v779 = vunpack.c.l.b16 %v163
  %v780 = vunpack.c.h.b16 %v163
  %v781 = vunpack.c.l.b16 %v164
  %v782 = vunpack.c.h.b16 %v164
  %v783 = vunpack.c.l.b16 %v165
  %v784 = vunpack.c.h.b16 %v165
  %v785 = vunpack.c.l.b16 %v166
  %v786 = vunpack.c.h.b16 %v166
  %v787 = vunpack.c.l.b16 %v167
  %v788 = vunpack.c.h.b16 %v167
  %v789 = vunpack.c.l.b16 %v168
  %v790 = vunpack.c.h.b16 %v168
  %v791 = vunpack.c.l.b16 %v169
  %v792 = vunpack.c.h.b16 %v169
  %v793 = vunpack.c.l.b16 %v170
  %v794 = vunpack.c.h.b16 %v170
  %v795 = vunpack.c.l.b16 %v171
  %v796 = vunpack.c.h.b16 %v171
  %v797 = vunpack.c.l.b16 %v172
  %v798 = vunpack.c.h.b16 %v172
  %v799 = vunpack.c.l.b16 %v173
  %v800 = vunpack.c.h.b16 %v173
  %v801 = vunpack.c.l.b16 %v174
  %v802 = vunpack.c.h.b16 %v174
  %v803 = vunpack.c.l.b16 %v175
  %v804 = vunpack.c.h.b16 %v175
  %v805 = vunpack.c.l.b16 %v176
  %v806 = vunpack.c.h.b16 %v176
  %v807 = vunpack.c.l.b16 %v177
  %v808 = vunpack.c.h.b16 %v177
  %v809 = vunpack.c.l.b16 %v178
  %v810 = vunpack.c.h.b16 %v178
  %v811 = vunpack.c.l.b16 %v179
  %v812 = vunpack.c.h.b16 %v179
  %v813 = vunpack.c.l.b16 %v180
  %v814 = vunpack.c.h.b16 %v180
  %v815 = vunpack.c.l.b16 %v181
  %v816 = vunpack.c.h.b16 %v181
  %v817 = vunpack.c.l.b16 %v182
  %v818 = vunpack.c.h.b16 %v182
  %v819 = vunpack.c.l.b16 %v183
  %v820 = vunpack.c.h.b16 %v183
  %v821 = vunpack.c.l.b16 %v184
  %v822 = vunpack.c.h.b16 %v184
  %v823 = vunpack.c.l.b16 %v185
  %v824 = vunpack.c.h.b16 %v185
  %v825 = vunpack.c.l.b16 %v186
  %v826 = vunpack.c.h.b16 %v186
  %v827 = vunpack.c.l.b16 %v187
  %v828 = vunpack.c.h.b16 %v187
  %v829 = vunpack.c.l.b16 %v188
  %v830 = vunpack.c.h.b16 %v188
  %v831 = vunpack.c.l.b16 %v189
  %v832 = vunpack.c.h.b16 %v189
  %v833 = vunpack.c.l.b16 %v190
  %v834 = vunpack.c.h.b16 %v190
  %v835 = vunpack.c.l.b16 %v191
  %v836 = vunpack.c.h.b16 %v191
  %v837 = vunpack.c.l.b16 %v192
  %v838 = vunpack.c.h.b16 %v192
  %v839 = vunpack.c.l.b16 %v193
  %v840 = vunpack.c.h.b16 %v193
  %v841 = vunpack.c.l.b16 %v194
  %v842 = vunpack.c.h.b16 %v194
  %v843 = vunpack.c.l.b16 %v195
  %v844 = vunpack.c.h.b16 %v195
  %v845 = vunpack.c.l.b16 %v196
  %v846 = vunpack.c.h.b16 %v196
  %v847 = vunpack.c.l.b16 %v197
  %v848 = vunpack.c.h.b16 %v197
  %v849 = vunpack.c.l.b16 %v198
  %v850 = vunpack.c.h.b16 %v198
  %v851 = vunpack.c.l.b16 %v199
  %v852 = vunpack.c.h.b16 %v199
  %v853 = vunpack.c.l.b16 %v200
  %v854 = vunpack.c.h.b16 %v200
  %v855 = vunpack.c.l.b16 %v201
  %v856 = vunpack.c.h.b16 %v201
  %v857 = vunpack.c.l.b16 %v202
  %v858 = vunpack.c.h.b16 %v202
  %v859 = vunpack.c.l.b16 %v203
  %v860 = vunpack.c.h.b16 %v203
  %v861 = vunpack.c.l.b16 %v204
  %v862 = vunpack.c.h.b16 %v204
  %v863 = vunpack.c.l.b16 %v205
  %v864 = vunpack.c.h.b16 %v205
  %v865 = vunpack.c.l.b16 %v206
  %v866 = vunpack.c.h.b16 %v206
  %v867 = vunpack.c.l.b16 %v207
  %v868 = vunpack.c.h.b16 %v207
  %v869 = vunpack.c.l.b16 %v208
  %v870 = vunpack.c.h.b16 %v208
  %v871 = vunpack.c.l.b16 %v209
  %v872 = vunpack.c.h.b16 %v209
  %v873 = vunpack.c.l.b16 %v210
  %v874 = vunpack.c.h.b16 %v210
  %v875 = vunpack.c.l.b16 %v211
  %v876 = vunpack.c.h.b16 %v211
  %v877 = vunpack.c.l.b16 %v212
  %v878 = vunpack.c.h.b16 %v212
  %v879 = vunpack.c.l.b16 %v213
  %v880 = vunpack.c.h.b16 %v213
  %v881 = vunpack.c.l.b16 %v214
  %v882 = vunpack.c.h.b16 %v214
  %v883 = vunpack.c.l.b16 %v215
  %v884 = vunpack.c.h.b16 %v215
  %v885 = vunpack.c.l.b16 %v216
  %v886 = vunpack.c.h.b16 %v216
  %v887 = vunpack.c.l.b16 %v217
  %v888 = vunpack.c.h.b16 %v217
  %v889 = vunpack.c.l.b16 %v218
  %v890 = vunpack.c.h.b16 %v218
  %v891 = vunpack.c.l.b16 %v219
  %v892 = vunpack.c.h.b16 %v219
  %v893 = vunpack.c.l.b16 %v220
  %v894 = vunpack.c.h.b16 %v220
  %v895 = vunpack.c.l.b16 %v221
  %v896 = vunpack.c.h.b16 %v221
  %v897 = vunpack.c.l.b16 %v222
  %v898 = vunpack.c.h.b16 %v222
  %v899 = vunpack.c.l.b16 %v223
  %v900 = vunpack.c.h.b16 %v223
  %v901 = vunpack.c.l.b16 %v224
  %v902 = vunpack.c.h.b16 %v224
  %v903 = vunpack.c.l.b16 %v225
  %v904 = vunpack.c.h.b16 %v225
  %v905 = vunpack.c.l.b16 %v226
  %v906 = vunpack.c.h.b16 %v226
  %v907 = vunpack.c.l.b16 %v227
  %v908 = vunpack.c.h.b16 %v227
  %v909 = vunpack.c.l.b16 %v228
  %v910 = vunpack.c.h.b16 %v228
  %v911 = vunpack.c.l.b16 %v229
  %v912 = vunpack.c.h.b16 %v229
  %v913 = vunpack.c.l.b16 %v230
  %v914 = vunpack.c.h.b16 %v230
  %v915 = vunpack.c.l.b16 %v231
  %v916 = vunpack.c.h.b16 %v231
  %v917 = vunpack.c.l.b16 %v232
  %v918 = vunpack.c.h.b16 %v232
  %v919 = vunpack.c.l.b16 %v233
  %v920 = vunpack.c.h.b16 %v233
  %v921 = vunpack.c.l.b16 %v234
  %v922 = vunpack.c.h.b16 %v234
  %v923 = vunpack.c.l.b16 %v235
  %v924 = vunpack.c.h.b16 %v235
  %v925 = vunpack.c.l.b16 %v236
  %v926 = vunpack.c.h.b16 %v236
  %v927 = vunpack.c.l.b16 %v237
  %v928 = vunpack.c.h.b16 %v237
  %v929 = vunpack.c.l.b16 %v238
  %v930 = vunpack.c.h.b16 %v238
  %v931 = vunpack.c.l.b16 %v239
  %v932 = vunpack.c.h.b16 %v239
  %v933 = vunpack.c.l.b16 %v240
  %v934 = vunpack.c.h.b16 %v240
  %v935 = vunpack.c.l.b16 %v241
  %v936 = vunpack.c.h.b16 %v241
  %v937 = vunpack.c.l.b16 %v242
  %v938 = vunpack.c.h.b16 %v242
  %v939 = vunpack.c.l.b16 %v243
  %v940 = vunpack.c.h.b16 %v243
  %v941 = vunpack.c.l.b16 %v244
  %v942 = vunpack.c.h.b16 %v244
  %v943 = vunpack.c.l.b16 %v245
  %v944 = vunpack.c.h.b16 %v245
  %v945 = vunpack.c.l.b16 %v246
  %v946 = vunpack.c.h.b16 %v246
  %v947 = vunpack.c.l.b16 %v247
  %v948 = vunpack.c.h.b16 %v247
  %v949 = vunpack.c.l.b16 %v248
  %v950 = vunpack.c.h.b16 %v248
  %v951 = vunpack.c.l.b16 %v249
  %v952 = vunpack.c.h.b16 %v249
  %v953 = vunpack.c.l.b16 %v250
  %v954 = vunpack.c.h.b16 %v250
  %v955 = vunpack.c.l.b16 %v251
  %v956 = vunpack.c.h.b16 %v251
  %v957 = vunpack.c.l.b16 %v252
  %v958 = vunpack.c.h.b16 %v252
  %v959 = vunpack.c.l.b16 %v253
  %v960 = vunpack.c.h.b16 %v253
  %v961 = vunpack.c.l.b16 %v254
  %v962 = vunpack.c.h.b16 %v254
  %v963 = vunpack.c.l.b16 %v255
  %v964 = vunpack.c.h.b16 %v255
  %v965 = vunpack.c.l.b16 %v256
  %v966 = vunpack.c.h.b16 %v256
  %v967 = vunpack.c.l.b16 %v257
  %v968 = vunpack.c.h.b16 %v257
  %v969 = vunpack.c.l.b16 %v258
  %v970 = vunpack.c.h.b16 %v258
  %v971 = vunpack.c.l.b16 %v259
  %v972 = vunpack.c.h.b16 %v259
  %v973 = vunpack.c.l.b16 %v260
  %v974 = vunpack.c.h.b16 %v260
  %v975 = vunpack.c.l.b16 %v261
  %v976 = vunpack.c.h.b16 %v261
  %v977 = vunpack.c.l.b16 %v262
  %v978 = vunpack.c.h.b16 %v262
  %v979 = vunpack.c.l.b16 %v263
  %v980 = vunpack.c.h.b16 %v263
  %v981 = vunpack.c.l.b16 %v264
  %v982 = vunpack.c.h.b16 %v264
  %v983 = vunpack.c.l.b16 %v265
  %v984 = vunpack.c.h.b16 %v265
  %v985 = vunpack.c.l.b16 %v266
  %v986 = vunpack.c.h.b16 %v266
  %v987 = vunpack.c.l.b16 %v267
  %v988 = vunpack.c.h.b16 %v267
  %v989 = vunpack.c.l.b16 %v268
  %v990 = vunpack.c.h.b16 %v268
  %v991 = vunpack.c.l.b16 %v269
  %v992 = vunpack.c.h.b16 %v269
  %v993 = vunpack.c.l.b16 %v270
  %v994 = vunpack.c.h.b16 %v270
  %v995 = vunpack.c.l.b16 %v271
  %v996 = vunpack.c.h.b16 %v271
  %v997 = vunpack.c.l.b16 %v272
  %v998 = vunpack.c.h.b16 %v272
  %v999 = vunpack.c.l.b16 %v273
  %v1000 = vunpack.c.h.b16 %v273
  %v1001 = vunpack.c.l.b16 %v274
  %v1002 = vunpack.c.h.b16 %v274
  %v1003 = vunpack.c.l.b16 %v275
  %v1004 = vunpack.c.h.b16 %v275
  %v1005 = vunpack.c.l.b16 %v276
  %v1006 = vunpack.c.h.b16 %v276
  %v1007 = vunpack.c.l.b16 %v277
  %v1008 = vunpack.c.h.b16 %v277
  %v1009 = vunpack.c.l.b16 %v278
  %v1010 = vunpack.c.h.b16 %v278
  %v1011 = vunpack.c.l.b16 %v279
  %v1012 = vunpack.c.h.b16 %v279
  %v1013 = vunpack.c.l.b16 %v280
  %v1014 = vunpack.c.h.b16 %v280
  %v1015 = vunpack.c.l.b16 %v281
  %v1016 = vunpack.c.h.b16 %v281
  %v1017 = vunpack.c.l.b16 %v282
  %v1018 = vunpack.c.h.b16 %v282
  %v1019 = vunpack.c.l.b16 %v283
  %v1020 = vunpack.c.h.b16 %v283
  %v1021 = vunpack.c.l.b16 %v284
  %v1022 = vunpack.c.h.b16 %v284
  %v1023 = vunpack.c.l.b16 %v285
  %v1024 = vunpack.c.h.b16 %v285
  %v1025 = vunpack.c.l.b16 %v286
  %v1026 = vunpack.c.h.b16 %v286
  %v1027 = vunpack.c.l.b16 %v287
  %v1028 = vunpack.c.h.b16 %v287
  %v1029 = vunpack.c.l.b16 %v288
  %v1030 = vunpack.c.h.b16 %v288
  %v1031 = vunpack.c.l.b16 %v289
  %v1032 = vunpack.c.h.b16 %v289
  %v1033 = vunpack.c.l.b16 %v290
  %v1034 = vunpack.c.h.b16 %v290
  %v1035 = vunpack.c.l.b16 %v291
  %v1036 = vunpack.c.h.b16 %v291
  %v1037 = vunpack.c.l.b16 %v292
  %v1038 = vunpack.c.h.b16 %v292
  %v1039 = vunpack.c.l.b16 %v293
  %v1040 = vunpack.c.h.b16 %v293
  %v1041 = vunpack.c.l.b16 %v294
  %v1042 = vunpack.c.h.b16 %v294
  %v1043 = vunpack.c.l.b16 %v295
  %v1044 = vunpack.c.h.b16 %v295
  %v1045 = vunpack.c.l.b16 %v296
  %v1046 = vunpack.c.h.b16 %v296
  %v1047 = vunpack.c.l.b16 %v297
  %v1048 = vunpack.c.h.b16 %v297
  %v1049 = vunpack.c.l.b16 %v298
  %v1050 = vunpack.c.h.b16 %v298
  %v1051 = vunpack.c.l.b16 %v299
  %v1052 = vunpack.c.h.b16 %v299
  %v1053 = vunpack.c.l.b16 %v300
  %v1054 = vunpack.c.h.b16 %v300
  %v1055 = vunpack.c.l.b16 %v301
  %v1056 = vunpack.c.h.b16 %v301
  %v1057 = vunpack.c.l.b16 %v302
  %v1058 = vunpack.c.h.b16 %v302
  %v1059 = vunpack.c.l.b16 %v303
  %v1060 = vunpack.c.h.b16 %v303
  %v1061 = vunpack.c.l.b16 %v304
  %v1062 = vunpack.c.h.b16 %v304
  %v1063 = vunpack.c.l.b16 %v305
  %v1064 = vunpack.c.h.b16 %v305
  %v1065 = vunpack.c.l.b16 %v306
  %v1066 = vunpack.c.h.b16 %v306
  %v1067 = vunpack.c.l.b16 %v307
  %v1068 = vunpack.c.h.b16 %v307
  %v1069 = vunpack.c.l.b16 %v308
  %v1070 = vunpack.c.h.b16 %v308
  %v1071 = vunpack.c.l.b16 %v309
  %v1072 = vunpack.c.h.b16 %v309
  %v1073 = vunpack.c.l.b16 %v310
  %v1074 = vunpack.c.h.b16 %v310
  %v1075 = vunpack.c.l.b16 %v311
  %v1076 = vunpack.c.h.b16 %v311
  %v1077 = vunpack.c.l.b16 %v312
  %v1078 = vunpack.c.h.b16 %v312
  %v1079 = vunpack.c.l.b16 %v313
  %v1080 = vunpack.c.h.b16 %v313
  %v1081 = vunpack.c.l.b16 %v314
  %v1082 = vunpack.c.h.b16 %v314
  %v1083 = vunpack.c.l.b16 %v315
  %v1084 = vunpack.c.h.b16 %v315
  %v1085 = vunpack.c.l.b16 %v316
  %v1086 = vunpack.c.h.b16 %v316
  %v1087 = vunpack.c.l.b16 %v317
  %v1088 = vunpack.c.h.b16 %v317
  %v1089 = vunpack.c.l.b16 %v318
  %v1090 = vunpack.c.h.b16 %v318
  %v1091 = vunpack.c.l.b16 %v319
  %v1092 = vunpack.c.h.b16 %v319
  %v1093 = vunpack.c.l.b16 %v320
  %v1094 = vunpack.c.h.b16 %v320
  %v1095 = vunpack.c.l.b16 %v321
  %v1096 = vunpack.c.h.b16 %v321
  %v1097 = vunpack.c.l.b16 %v322
  %v1098 = vunpack.c.h.b16 %v322
  %v1099 = vunpack.c.l.b16 %v323
  %v1100 = vunpack.c.h.b16 %v323
  %v1101 = vunpack.c.l.b16 %v324
  %v1102 = vunpack.c.h.b16 %v324
  %v1103 = vunpack.c.l.b16 %v325
  %v1104 = vunpack.c.h.b16 %v325
  %v1105 = vunpack.c.l.b16 %v326
  %v1106 = vunpack.c.h.b16 %v326
  %v1107 = vunpack.c.l.b16 %v327
  %v1108 = vunpack.c.h.b16 %v327
  %v1109 = vunpack.c.l.b16 %v328
  %v1110 = vunpack.c.h.b16 %v328
  %v1111 = vunpack.c.l.b16 %v329
  %v1112 = vunpack.c.h.b16 %v329
  %v1113 = vunpack.c.l.b16 %v330
  %v1114 = vunpack.c.h.b16 %v330
  %v1115 = vunpack.c.l.b16 %v331
  %v1116 = vunpack.c.h.b16 %v331
  %v1117 = vunpack.c.l.b16 %v332
  %v1118 = vunpack.c.h.b16 %v332
  %v1119 = vunpack.c.l.b16 %v333
  %v1120 = vunpack.c.h.b16 %v333
  %v1121 = vunpack.c.l.b16 %v334
  %v1122 = vunpack.c.h.b16 %v334
  %v1123 = vunpack.c.l.b16 %v335
  %v1124 = vunpack.c.h.b16 %v335
  %v1125 = vunpack.c.l.b16 %v336
  %v1126 = vunpack.c.h.b16 %v336
  %v1127 = vpack.c.b16 %v619, %v615
  %v1128 = vpack.c.b16 %v620, %v616
  %v1129 = vpack.c.b16 %v621, %v617
  %v1130 = vpack.c.b16 %v622, %v618
  %v1131 = vpack.c.b16 %v627, %v623
  %v1132 = vpack.c.b16 %v628, %v624
  %v1133 = vpack.c.b16 %v629, %v625
  %v1134 = vpack.c.b16 %v630, %v626
  %v1135 = vpack.c.b16 %v635, %v631
  %v1136 = vpack.c.b16 %v636, %v632
  %v1137 = vpack.c.b16 %v637, %v633
  %v1138 = vpack.c.b16 %v638, %v634
  %v1139 = vpack.c.b16 %v643, %v639
  %v1140 = vpack.c.b16 %v644, %v640
  %v1141 = vpack.c.b16 %v645, %v641
  %v1142 = vpack.c.b16 %v646, %v642
  %v1143 = vpack.c.b16 %v651, %v647
  %v1144 = vpack.c.b16 %v652, %v648
  %v1145 = vpack.c.b16 %v653, %v649
  %v1146 = vpack.c.b16 %v654, %v650
  %v1147 = vpack.c.b16 %v659, %v655
  %v1148 = vpack.c.b16 %v660, %v656
  %v1149 = vpack.c.b16 %v661, %v657
  %v1150 = vpack.c.b16 %v662, %v658
  %v1151 = vpack.c.b16 %v667, %v663
  %v1152 = vpack.c.b16 %v668, %v664
  %v1153 = vpack.c.b16 %v669, %v665
  %v1154 = vpack.c.b16 %v670, %v666
  %v1155 = vpack.c.b16 %v675, %v671
  %v1156 = vpack.c.b16 %v676, %v672
  %v1157 = vpack.c.b16 %v677, %v673
  %v1158 = vpack.c.b16 %v678, %v674
  %v1159 = vpack.c.b16 %v683, %v679
  %v1160 = vpack.c.b16 %v684, %v680
  %v1161 = vpack.c.b16 %v685, %v681
  %v1162 = vpack.c.b16 %v686, %v682
  %v1163 = vpack.c.b16 %v691, %v687
  %v1164 = vpack.c.b16 %v692, %v688
  %v1165 = vpack.c.b16 %v693, %v689
  %v1166 = vpack.c.b16 %v694, %v690
  %v1167 = vpack.c.b16 %v699, %v695
  %v1168 = vpack.c.b16 %v700, %v696
  %v1169 = vpack.c.b16 %v701, %v697
  %v1170 = vpack.c.b16 %v702, %v698
  %v1171 = vpack.c.b16 %v707, %v703
  %v1172 = vpack.c.b16 %v708, %v704
  %v1173 = vpack.c.b16 %v709, %v705
  %v1174 = vpack.c.b16 %v710, %v706
  %v1175 = vpack.c.b16 %v715, %v711
  %v1176 = vpack.c.b16 %v716, %v712
  %v1177 = vpack.c.b16 %v717, %v713
  %v1178 = vpack.c.b16 %v718, %v714
  %v1179 = vpack.c.b16 %v723, %v719
  %v1180 = vpack.c.b16 %v724, %v720
  %v1181 = vpack.c.b16 %v725, %v721
  %v1182 = vpack.c.b16 %v726, %v722
  %v1183 = vpack.c.b16 %v731, %v727
  %v1184 = vpack.c.b16 %v732, %v728
  %v1185 = vpack.c.b16 %v733, %v729
  %v1186 = vpack.c.b16 %v734, %v730
  %v1187 = vpack.c.b16 %v739, %v735
  %v1188 = vpack.c.b16 %v740, %v736
  %v1189 = vpack.c.b16 %v741, %v737
  %v1190 = vpack.c.b16 %v742, %v738
  %v1191 = vpack.c.b16 %v747, %v743
  %v1192 = vpack.c.b16 %v748, %v744
  %v1193 = vpack.c.b16 %v749, %v745
  %v1194 = vpack.c.b16 %v750, %v746
  %v1195 = vpack.c.b16 %v755, %v751
  %v1196 = vpack.c.b16 %v756, %v752
  %v1197 = vpack.c.b16 %v757, %v753
  %v1198 = vpack.c.b16 %v758, %v754
  %v1199 = vpack.c.b16 %v763, %v759
  %v1200 = vpack.c.b16 %v764, %v760
  %v1201 = vpack.c.b16 %v765, %v761
  %v1202 = vpack.c.b16 %v766, %v762
  %v1203 = vpack.c.b16 %v771, %v767
  %v1204 = vpack.c.b16 %v772, %v768
  %v1205 = vpack.c.b16 %v773, %v769
  %v1206 = vpack.c.b16 %v774, %v770
  %v1207 = vpack.c.b16 %v779, %v775
  %v1208 = vpack.c.b16 %v780, %v776
  %v1209 = vpack.c.b16 %v781, %v777
  %v1210 = vpack.c.b16 %v782, %v778
  %v1211 = vpack.c.b16 %v787, %v783
  %v1212 = vpack.c.b16 %v788, %v784
  %v1213 = vpack.c.b16 %v789, %v785
  %v1214 = vpack.c.b16 %v790, %v786
  %v1215 = vpack.c.b16 %v795, %v791
  %v1216 = vpack.c.b16 %v796, %v792
  %v1217 = vpack.c.b16 %v797, %v793
  %v1218 = vpack.c.b16 %v798, %v794
  %v1219 = vpack.c.b16 %v803, %v799
  %v1220 = vpack.c.b16 %v804, %v800
  %v1221 = vpack.c.b16 %v805, %v801
  %v1222 = vpack.c.b16 %v806, %v802
  %v1223 = vpack.c.b16 %v811, %v807
  %v1224 = vpack.c.b16 %v812, %v808
  %v1225 = vpack.c.b16 %v813, %v809
  %v1226 = vpack.c.b16 %v814, %v810
  %v1227 = vpack.c.b16 %v819, %v815
  %v1228 = vpack.c.b16 %v820, %v816
  %v1229 = vpack.c.b16 %v821, %v817
  %v1230 = vpack.c.b16 %v822, %v818
  %v1231 = vpack.c.b16 %v827, %v823
  %v1232 = vpack.c.b16 %v828, %v824
  %v1233 = vpack.c.b16 %v829, %v825
  %v1234 = vpack.c.b16 %v830, %v826
  %v1235 = vpack.c.b16 %v835, %v831
  %v1236 = vpack.c.b16 %v836, %v832
  %v1237 = vpack.c.b16 %v837, %v833
  %v1238 = vpack.c.b16 %v838, %v834
  %v1239 = vpack.c.b16 %v843, %v839
  %v1240 = vpack.c.b16 %v844, %v840
  %v1241 = vpack.c.b16 %v845, %v841
  %v1242 = vpack.c.b16 %v846, %v842
  %v1243 = vpack.c.b16 %v851, %v847
  %v1244 = vpack.c.b16 %v852, %v848
  %v1245 = vpack.c.b16 %v853, %v849
  %v1246 = vpack.c.b16 %v854, %v850
  %v1247 = vpack.c.b16 %v859, %v855
  %v1248 = vpack.c.b16 %v860, %v856
  %v1249 = vpack.c.b16 %v861, %v857
  %v1250 = vpack.c.b16 %v862, %v858
  %v1251 = vpack.c.b16 %v867, %v863
  %v1252 = vpack.c.b16 %v868, %v864
  %v1253 = vpack.c.b16 %v869, %v865
  %v1254 = vpack.c.b16 %v870, %v866
  %v1255 = vpack.c.b16 %v875, %v871
  %v1256 = vpack.c.b16 %v876, %v872
  %v1257 = vpack.c.b16 %v877, %v873
  %v1258 = vpack.c.b16 %v878, %v874
  %v1259 = vpack.c.b16 %v883, %v879
  %v1260 = vpack.c.b16 %v884, %v880
  %v1261 = vpack.c.b16 %v885, %v881
  %v1262 = vpack.c.b16 %v886, %v882
  %v1263 = vpack.c.b16 %v891, %v887
  %v1264 = vpack.c.b16 %v892, %v888
  %v1265 = vpack.c.b16 %v893, %v889
  %v1266 = vpack.c.b16 %v894, %v890
  %v1267 = vpack.c.b16 %v899, %v895
  %v1268 = vpack.c.b16 %v900, %v896
  %v1269 = vpack.c.b16 %v901, %v897
  %v1270 = vpack.c.b16 %v902, %v898
  %v1271 = vpack.c.b16 %v907, %v903
  %v1272 = vpack.c.b16 %v908, %v904
  %v1273 = vpack.c.b16 %v909, %v905
  %v1274 = vpack.c.b16 %v910, %v906
  %v1275 = vpack.c.b16 %v915, %v911
  %v1276 = vpack.c.b16 %v916, %v912
  %v1277 = vpack.c.b16 %v917, %v913
  %v1278 = vpack.c.b16 %v918, %v914
  %v1279 = vpack.c.b16 %v923, %v919
  %v1280 = vpack.c.b16 %v924, %v920
  %v1281 = vpack.c.b16 %v925, %v921
  %v1282 = vpack.c.b16 %v926, %v922
  %v1283 = vpack.c.b16 %v931, %v927
  %v1284 = vpack.c.b16 %v932, %v928
  %v1285 = vpack.c.b16 %v933, %v929
  %v1286 = vpack.c.b16 %v934, %v930
  %v1287 = vpack.c.b16 %v939, %v935
  %v1288 = vpack.c.b16 %v940, %v936
  %v1289 = vpack.c.b16 %v941, %v937
  %v1290 = vpack.c.b16 %v942, %v938
  %v1291 = vpack.c.b16 %v947, %v943
  %v1292 = vpack.c.b16 %v948, %v944
  %v1293 = vpack.c.b16 %v949, %v945
  %v1294 = vpack.c.b16 %v950, %v946
  %v1295 = vpack.c.b16 %v955, %v951
  %v1296 = vpack.c.b16 %v956, %v952
  %v1297 = vpack.c.b16 %v957, %v953
  %v1298 = vpack.c.b16 %v958, %v954
  %v1299 = vpack.c.b16 %v963, %v959
  %v1300 = vpack.c.b16 %v964, %v960
  %v1301 = vpack.c.b16 %v965, %v961
  %v1302 = vpack.c.b16 %v966, %v962
  %v1303 = vpack.c.b16 %v971, %v967
  %v1304 = vpack.c.b16 %v972, %v968
  %v1305 = vpack.c.b16 %v973, %v969
  %v1306 = vpack.c.b16 %v974, %v970
  %v1307 = vpack.c.b16 %v979, %v975
  %v1308 = vpack.c.b16 %v980, %v976
  %v1309 = vpack.c.b16 %v981, %v977
  %v1310 = vpack.c.b16 %v982, %v978
  %v1311 = vpack.c.b16 %v987, %v983
  %v1312 = vpack.c.b16 %v988, %v984
  %v1313 = vpack.c.b16 %v989, %v985
  %v1314 = vpack.c.b16 %v990, %v986
  %v1315 = vpack.c.b16 %v995, %v991
  %v1316 = vpack.c.b16 %v996, %v992
  %v1317 = vpack.c.b16 %v997, %v993
  %v1318 = vpack.c.b16 %v998, %v994
  %v1319 = vpack.c.b16 %v1003, %v999
  %v1320 = vpack.c.b16 %v1004, %v1000
  %v1321 = vpack.c.b16 %v1005, %v1001
  %v1322 = vpack.c.b16 %v1006, %v1002
  %v1323 = vpack.c.b16 %v1011, %v1007
  %v1324 = vpack.c.b16 %v1012, %v1008
  %v1325 = vpack.c.b16 %v1013, %v1009
  %v1326 = vpack.c.b16 %v1014, %v1010
  %v1327 = vpack.c.b16 %v1019, %v1015
  %v1328 = vpack.c.b16 %v1020, %v1016
  %v1329 = vpack.c.b16 %v1021, %v1017
  %v1330 = vpack.c.b16 %v1022, %v1018
  %v1331 = vpack.c.b16 %v1027, %v1023
  %v1332 = vpack.c.b16 %v1028, %v1024
  %v1333 = vpack.c.b16 %v1029, %v1025
  %v1334 = vpack.c.b16 %v1030, %v1026
  %v1335 = vpack.c.b16 %v1035, %v1031
  %v1336 = vpack.c.b16 %v1036, %v1032
  %v1337 = vpack.c.b16 %v1037, %v1033
  %v1338 = vpack.c.b16 %v1038, %v1034
  %v1339 = vpack.c.b16 %v1043, %v1039
  %v1340 = vpack.c.b16 %v1044, %v1040
  %v1341 = vpack.c.b16 %v1045, %v1041
  %v1342 = vpack.c.b16 %v1046, %v1042
  %v1343 = vpack.c.b16 %v1051, %v1047
  %v1344 = vpack.c.b16 %v1052, %v1048
  %v1345 = vpack.c.b16 %v1053, %v1049
  %v1346 = vpack.c.b16 %v1054, %v1050
  %v1347 = vpack.c.b16 %v1059, %v1055
  %v1348 = vpack.c.b16 %v1060, %v1056
  %v1349 = vpack.c.b16 %v1061, %v1057
  %v1350 = vpack.c.b16 %v1062, %v1058
  %v1351 = vpack.c.b16 %v1067, %v1063
  %v1352 = vpack.c.b16 %v1068, %v1064
  %v1353 = vpack.c.b16 %v1069, %v1065
  %v1354 = vpack.c.b16 %v1070, %v1066
  %v1355 = vpack.c.b16 %v1075, %v1071
  %v1356 = vpack.c.b16 %v1076, %v1072
  %v1357 = vpack.c.b16 %v1077, %v1073
  %v1358 = vpack.c.b16 %v1078, %v1074
  %v1359 = vpack.c.b16 %v1083, %v1079
  %v1360 = vpack.c.b16 %v1084, %v1080
  %v1361 = vpack.c.b16 %v1085, %v1081
  %v1362 = vpack.c.b16 %v1086, %v1082
  %v1363 = vpack.c.b16 %v1091, %v1087
  %v1364 = vpack.c.b16 %v1092, %v1088
  %v1365 = vpack.c.b16 %v1093, %v1089
  %v1366 = vpack.c.b16 %v1094, %v1090
  %v1367 = vpack.c.b16 %v1099, %v1095
  %v1368 = vpack.c.b16 %v1100, %v1096
  %v1369 = vpack.c.b16 %v1101, %v1097
  %v1370 = vpack.c.b16 %v1102, %v1098
  %v1371 = vpack.c.b16 %v1107, %v1103
  %v1372 = vpack.c.b16 %v1108, %v1104
  %v1373 = vpack.c.b16 %v1109, %v1105
  %v1374 = vpack.c.b16 %v1110, %v1106
  %v1375 = vpack.c.b16 %v1115, %v1111
  %v1376 = vpack.c.b16 %v1116, %v1112
  %v1377 = vpack.c.b16 %v1117, %v1113
  %v1378 = vpack.c.b16 %v1118, %v1114
  %v1379 = vpack.c.b16 %v1123, %v1119
  %v1380 = vpack.c.b16 %v1124, %v1120
  %v1381 = vpack.c.b16 %v1125, %v1121
  %v1382 = vpack.c.b16 %v1126, %v1122
  %1639 = vmatprep.subr.bf16.mxu0 %v1128
  %1640 = vmatpush1.bf16.msra.mxu0 %v1127
  %1641 = vmatprep.subr.bf16.mxu0 %v1132
  %1642 = vmatpush1.bf16.msra.mxu0 %v1131
  %1643 = vmatprep.subr.bf16.mxu0 %v1136
  %1644 = vmatpush1.bf16.msra.mxu0 %v1135
  %1645 = vmatprep.subr.bf16.mxu0 %v1140
  %1646 = vmatpush1.bf16.msra.mxu0 %v1139
  %1647 = vmatprep.subr.bf16.mxu0 %v1144
  %1648 = vmatpush1.bf16.msra.mxu0 %v1143
  %1649 = vmatprep.subr.bf16.mxu0 %v1148
  %1650 = vmatpush1.bf16.msra.mxu0 %v1147
  %1651 = vmatprep.subr.bf16.mxu0 %v1152
  %1652 = vmatpush1.bf16.msra.mxu0 %v1151
  %1653 = vmatprep.subr.bf16.mxu0 %v1156
  %1654 = vmatpush1.bf16.msra.mxu0 %v1155
  %1655 = vmatprep.subr.bf16.mxu0 %v1160
  %1656 = vmatpush1.bf16.msra.mxu0 %v1159
  %1657 = vmatprep.subr.bf16.mxu0 %v1164
  %1658 = vmatpush1.bf16.msra.mxu0 %v1163
  %1659 = vmatprep.subr.bf16.mxu0 %v1168
  %1660 = vmatpush1.bf16.msra.mxu0 %v1167
  %1661 = vmatprep.subr.bf16.mxu0 %v1172
  %1662 = vmatpush1.bf16.msra.mxu0 %v1171
  %1663 = vmatprep.subr.bf16.mxu0 %v1176
  %1664 = vmatpush1.bf16.msra.mxu0 %v1175
  %1665 = vmatprep.subr.bf16.mxu0 %v1180
  %1666 = vmatpush1.bf16.msra.mxu0 %v1179
  %1667 = vmatprep.subr.bf16.mxu0 %v1184
  %1668 = vmatpush1.bf16.msra.mxu0 %v1183
  %1669 = vmatprep.subr.bf16.mxu0 %v1188
  %1670 = vmatpush1.bf16.msra.mxu0 %v1187
  %1671 = vmatprep.mubr.bf16.mxu0 %v74
  %1672 = vmatmul.mubr.bf16.gmra.mrb[0].mxu0 %v73
  %v1673 = vpop.f32.mrb[0].mxu0
  %v1674 = vadd.f32 %v342, %v1673
  %v1675 = vpop.f32.mrb[0].mxu0
  %v1676 = vadd.f32 %v346, %v1675
  %v1677 = vpop.f32.mrb[0].mxu0
  %v1678 = vpop.f32.mrb[0].mxu0
  %1679 = vdwg.mxu0
  %1680 = vmatprep.subr.bf16.mxu0 %v1192
  %1681 = vmatpush1.bf16.msra.mxu0 %v1191
  %1682 = vmatprep.subr.bf16.mxu0 %v1196
  %1683 = vmatpush1.bf16.msra.mxu0 %v1195
  %1684 = vmatprep.subr.bf16.mxu0 %v1200
  %1685 = vmatpush1.bf16.msra.mxu0 %v1199
  %1686 = vmatprep.subr.bf16.mxu0 %v1204
  %1687 = vmatpush1.bf16.msra.mxu0 %v1203
  %1688 = vmatprep.subr.bf16.mxu0 %v1208
  %1689 = vmatpush1.bf16.msra.mxu0 %v1207
  %1690 = vmatprep.subr.bf16.mxu0 %v1212
  %1691 = vmatpush1.bf16.msra.mxu0 %v1211
  %1692 = vmatprep.subr.bf16.mxu0 %v1216
  %1693 = vmatpush1.bf16.msra.mxu0 %v1215
  %1694 = vmatprep.subr.bf16.mxu0 %v1220
  %1695 = vmatpush1.bf16.msra.mxu0 %v1219
  %1696 = vmatprep.subr.bf16.mxu0 %v1224
  %1697 = vmatpush1.bf16.msra.mxu0 %v1223
  %1698 = vmatprep.subr.bf16.mxu0 %v1228
  %1699 = vmatpush1.bf16.msra.mxu0 %v1227
  %1700 = vmatprep.subr.bf16.mxu0 %v1232
  %1701 = vmatpush1.bf16.msra.mxu0 %v1231
  %1702 = vmatprep.subr.bf16.mxu0 %v1236
  %1703 = vmatpush1.bf16.msra.mxu0 %v1235
  %1704 = vmatprep.subr.bf16.mxu0 %v1240
  %1705 = vmatpush1.bf16.msra.mxu0 %v1239
  %1706 = vmatprep.subr.bf16.mxu0 %v1244
  %1707 = vmatpush1.bf16.msra.mxu0 %v1243
  %1708 = vmatprep.subr.bf16.mxu0 %v1248
  %1709 = vmatpush1.bf16.msra.mxu0 %v1247
  %1710 = vmatprep.subr.bf16.mxu0 %v1252
  %1711 = vmatpush1.bf16.msra.mxu0 %v1251
  %1712 = vmatprep.mubr.bf16.mxu0 %v76
  %1713 = vmatmul.mubr.bf16.gmra.mrb[0].mxu0 %v75
  %v1714 = vpop.f32.mrb[0].mxu0
  %v1715 = vadd.f32 %v1674, %v1714
  %v1716 = vpop.f32.mrb[0].mxu0
  %v1717 = vadd.f32 %v1676, %v1716
  %v1718 = vpop.f32.mrb[0].mxu0
  %v1719 = vpop.f32.mrb[0].mxu0
  %1720 = vdwg.mxu0
  %1721 = vmatprep.subr.bf16.mxu0 %v1256
  %1722 = vmatpush1.bf16.msra.mxu0 %v1255
  %1723 = vmatprep.subr.bf16.mxu0 %v1260
  %1724 = vmatpush1.bf16.msra.mxu0 %v1259
  %1725 = vmatprep.subr.bf16.mxu0 %v1264
  %1726 = vmatpush1.bf16.msra.mxu0 %v1263
  %1727 = vmatprep.subr.bf16.mxu0 %v1268
  %1728 = vmatpush1.bf16.msra.mxu0 %v1267
  %1729 = vmatprep.subr.bf16.mxu0 %v1272
  %1730 = vmatpush1.bf16.msra.mxu0 %v1271
  %1731 = vmatprep.subr.bf16.mxu0 %v1276
  %1732 = vmatpush1.bf16.msra.mxu0 %v1275
  %1733 = vmatprep.subr.bf16.mxu0 %v1280
  %1734 = vmatpush1.bf16.msra.mxu0 %v1279
  %1735 = vmatprep.subr.bf16.mxu0 %v1284
  %1736 = vmatpush1.bf16.msra.mxu0 %v1283
  %1737 = vmatprep.subr.bf16.mxu0 %v1288
  %1738 = vmatpush1.bf16.msra.mxu0 %v1287
  %1739 = vmatprep.subr.bf16.mxu0 %v1292
  %1740 = vmatpush1.bf16.msra.mxu0 %v1291
  %1741 = vmatprep.subr.bf16.mxu0 %v1296
  %1742 = vmatpush1.bf16.msra.mxu0 %v1295
  %1743 = vmatprep.subr.bf16.mxu0 %v1300
  %1744 = vmatpush1.bf16.msra.mxu0 %v1299
  %1745 = vmatprep.subr.bf16.mxu0 %v1304
  %1746 = vmatpush1.bf16.msra.mxu0 %v1303
  %1747 = vmatprep.subr.bf16.mxu0 %v1308
  %1748 = vmatpush1.bf16.msra.mxu0 %v1307
  %1749 = vmatprep.subr.bf16.mxu0 %v1312
  %1750 = vmatpush1.bf16.msra.mxu0 %v1311
  %1751 = vmatprep.subr.bf16.mxu0 %v1316
  %1752 = vmatpush1.bf16.msra.mxu0 %v1315
  %1753 = vmatprep.mubr.bf16.mxu0 %v78
  %1754 = vmatmul.mubr.bf16.gmra.mrb[0].mxu0 %v77
  %v1755 = vpop.f32.mrb[0].mxu0
  %v1756 = vadd.f32 %v1715, %v1755
  %v1757 = vpop.f32.mrb[0].mxu0
  %v1758 = vadd.f32 %v1717, %v1757
  %v1759 = vpop.f32.mrb[0].mxu0
  %v1760 = vpop.f32.mrb[0].mxu0
  %1761 = vdwg.mxu0
  %1762 = vmatprep.subr.bf16.mxu0 %v1320
  %1763 = vmatpush1.bf16.msra.mxu0 %v1319
  %1764 = vmatprep.subr.bf16.mxu0 %v1324
  %1765 = vmatpush1.bf16.msra.mxu0 %v1323
  %1766 = vmatprep.subr.bf16.mxu0 %v1328
  %1767 = vmatpush1.bf16.msra.mxu0 %v1327
  %1768 = vmatprep.subr.bf16.mxu0 %v1332
  %1769 = vmatpush1.bf16.msra.mxu0 %v1331
  %1770 = vmatprep.subr.bf16.mxu0 %v1336
  %1771 = vmatpush1.bf16.msra.mxu0 %v1335
  %1772 = vmatprep.subr.bf16.mxu0 %v1340
  %1773 = vmatpush1.bf16.msra.mxu0 %v1339
  %1774 = vmatprep.subr.bf16.mxu0 %v1344
  %1775 = vmatpush1.bf16.msra.mxu0 %v1343
  %1776 = vmatprep.subr.bf16.mxu0 %v1348
  %1777 = vmatpush1.bf16.msra.mxu0 %v1347
  %1778 = vmatprep.subr.bf16.mxu0 %v1352
  %1779 = vmatpush1.bf16.msra.mxu0 %v1351
  %1780 = vmatprep.subr.bf16.mxu0 %v1356
  %1781 = vmatpush1.bf16.msra.mxu0 %v1355
  %1782 = vmatprep.subr.bf16.mxu0 %v1360
  %1783 = vmatpush1.bf16.msra.mxu0 %v1359
  %1784 = vmatprep.subr.bf16.mxu0 %v1364
  %1785 = vmatpush1.bf16.msra.mxu0 %v1363
  %1786 = vmatprep.subr.bf16.mxu0 %v1368
  %1787 = vmatpush1.bf16.msra.mxu0 %v1367
  %1788 = vmatprep.subr.bf16.mxu0 %v1372
  %1789 = vmatpush1.bf16.msra.mxu0 %v1371
  %1790 = vmatprep.subr.bf16.mxu0 %v1376
  %1791 = vmatpush1.bf16.msra.mxu0 %v1375
  %1792 = vmatprep.subr.bf16.mxu0 %v1380
  %1793 = vmatpush1.bf16.msra.mxu0 %v1379
  %1794 = vmatprep.mubr.bf16.mxu0 %v80
  %1795 = vmatmul.mubr.bf16.gmra.mrb[0].mxu0 %v79
  %v1796 = vpop.f32.mrb[0].mxu0
  %v1797 = vadd.f32 %v1756, %v1796
  %v1798 = vpop.f32.mrb[0].mxu0
  %v1799 = vadd.f32 %v1758, %v1798
  %v1800 = vpop.f32.mrb[0].mxu0
  %v1801 = vpop.f32.mrb[0].mxu0
  %1802 = vdwg.mxu0
  %1803 = vmatprep.subr.bf16.mxu0 %v1130
  %1804 = vmatpush1.bf16.msra.mxu0 %v1129
  %1805 = vmatprep.subr.bf16.mxu0 %v1134
  %1806 = vmatpush1.bf16.msra.mxu0 %v1133
  %1807 = vmatprep.subr.bf16.mxu0 %v1138
  %1808 = vmatpush1.bf16.msra.mxu0 %v1137
  %1809 = vmatprep.subr.bf16.mxu0 %v1142
  %1810 = vmatpush1.bf16.msra.mxu0 %v1141
  %1811 = vmatprep.subr.bf16.mxu0 %v1146
  %1812 = vmatpush1.bf16.msra.mxu0 %v1145
  %1813 = vmatprep.subr.bf16.mxu0 %v1150
  %1814 = vmatpush1.bf16.msra.mxu0 %v1149
  %1815 = vmatprep.subr.bf16.mxu0 %v1154
  %1816 = vmatpush1.bf16.msra.mxu0 %v1153
  %1817 = vmatprep.subr.bf16.mxu0 %v1158
  %1818 = vmatpush1.bf16.msra.mxu0 %v1157
  %1819 = vmatprep.subr.bf16.mxu0 %v1162
  %1820 = vmatpush1.bf16.msra.mxu0 %v1161
  %1821 = vmatprep.subr.bf16.mxu0 %v1166
  %1822 = vmatpush1.bf16.msra.mxu0 %v1165
  %1823 = vmatprep.subr.bf16.mxu0 %v1170
  %1824 = vmatpush1.bf16.msra.mxu0 %v1169
  %1825 = vmatprep.subr.bf16.mxu0 %v1174
  %1826 = vmatpush1.bf16.msra.mxu0 %v1173
  %1827 = vmatprep.subr.bf16.mxu0 %v1178
  %1828 = vmatpush1.bf16.msra.mxu0 %v1177
  %1829 = vmatprep.subr.bf16.mxu0 %v1182
  %1830 = vmatpush1.bf16.msra.mxu0 %v1181
  %1831 = vmatprep.subr.bf16.mxu0 %v1186
  %1832 = vmatpush1.bf16.msra.mxu0 %v1185
  %1833 = vmatprep.subr.bf16.mxu0 %v1190
  %1834 = vmatpush1.bf16.msra.mxu0 %v1189
  %1835 = vmatprep.mubr.bf16.mxu0 %v74
  %1836 = vmatmul.mubr.bf16.gmra.mrb[0].mxu0 %v73
  %v1837 = vpop.f32.mrb[0].mxu0
  %v1838 = vadd.f32 %v350, %v1837
  %v1839 = vpop.f32.mrb[0].mxu0
  %v1840 = vadd.f32 %v354, %v1839
  %v1841 = vpop.f32.mrb[0].mxu0
  %v1842 = vpop.f32.mrb[0].mxu0
  %1843 = vdwg.mxu0
  %1844 = vmatprep.subr.bf16.mxu0 %v1194
  %1845 = vmatpush1.bf16.msra.mxu0 %v1193
  %1846 = vmatprep.subr.bf16.mxu0 %v1198
  %1847 = vmatpush1.bf16.msra.mxu0 %v1197
  %1848 = vmatprep.subr.bf16.mxu0 %v1202
  %1849 = vmatpush1.bf16.msra.mxu0 %v1201
  %1850 = vmatprep.subr.bf16.mxu0 %v1206
  %1851 = vmatpush1.bf16.msra.mxu0 %v1205
  %1852 = vmatprep.subr.bf16.mxu0 %v1210
  %1853 = vmatpush1.bf16.msra.mxu0 %v1209
  %1854 = vmatprep.subr.bf16.mxu0 %v1214
  %1855 = vmatpush1.bf16.msra.mxu0 %v1213
  %1856 = vmatprep.subr.bf16.mxu0 %v1218
  %1857 = vmatpush1.bf16.msra.mxu0 %v1217
  %1858 = vmatprep.subr.bf16.mxu0 %v1222
  %1859 = vmatpush1.bf16.msra.mxu0 %v1221
  %1860 = vmatprep.subr.bf16.mxu0 %v1226
  %1861 = vmatpush1.bf16.msra.mxu0 %v1225
  %1862 = vmatprep.subr.bf16.mxu0 %v1230
  %1863 = vmatpush1.bf16.msra.mxu0 %v1229
  %1864 = vmatprep.subr.bf16.mxu0 %v1234
  %1865 = vmatpush1.bf16.msra.mxu0 %v1233
  %1866 = vmatprep.subr.bf16.mxu0 %v1238
  %1867 = vmatpush1.bf16.msra.mxu0 %v1237
  %1868 = vmatprep.subr.bf16.mxu0 %v1242
  %1869 = vmatpush1.bf16.msra.mxu0 %v1241
  %1870 = vmatprep.subr.bf16.mxu0 %v1246
  %1871 = vmatpush1.bf16.msra.mxu0 %v1245
  %1872 = vmatprep.subr.bf16.mxu0 %v1250
  %1873 = vmatpush1.bf16.msra.mxu0 %v1249
  %1874 = vmatprep.subr.bf16.mxu0 %v1254
  %1875 = vmatpush1.bf16.msra.mxu0 %v1253
  %1876 = vmatprep.mubr.bf16.mxu0 %v76
  %1877 = vmatmul.mubr.bf16.gmra.mrb[0].mxu0 %v75
  %v1878 = vpop.f32.mrb[0].mxu0
  %v1879 = vadd.f32 %v1838, %v1878
  %v1880 = vpop.f32.mrb[0].mxu0
  %v1881 = vadd.f32 %v1840, %v1880
  %v1882 = vpop.f32.mrb[0].mxu0
  %v1883 = vpop.f32.mrb[0].mxu0
  %1884 = vdwg.mxu0
  %1885 = vmatprep.subr.bf16.mxu0 %v1258
  %1886 = vmatpush1.bf16.msra.mxu0 %v1257
  %1887 = vmatprep.subr.bf16.mxu0 %v1262
  %1888 = vmatpush1.bf16.msra.mxu0 %v1261
  %1889 = vmatprep.subr.bf16.mxu0 %v1266
  %1890 = vmatpush1.bf16.msra.mxu0 %v1265
  %1891 = vmatprep.subr.bf16.mxu0 %v1270
  %1892 = vmatpush1.bf16.msra.mxu0 %v1269
  %1893 = vmatprep.subr.bf16.mxu0 %v1274
  %1894 = vmatpush1.bf16.msra.mxu0 %v1273
  %1895 = vmatprep.subr.bf16.mxu0 %v1278
  %1896 = vmatpush1.bf16.msra.mxu0 %v1277
  %1897 = vmatprep.subr.bf16.mxu0 %v1282
  %1898 = vmatpush1.bf16.msra.mxu0 %v1281
  %1899 = vmatprep.subr.bf16.mxu0 %v1286
  %1900 = vmatpush1.bf16.msra.mxu0 %v1285
  %1901 = vmatprep.subr.bf16.mxu0 %v1290
  %1902 = vmatpush1.bf16.msra.mxu0 %v1289
  %1903 = vmatprep.subr.bf16.mxu0 %v1294
  %1904 = vmatpush1.bf16.msra.mxu0 %v1293
  %1905 = vmatprep.subr.bf16.mxu0 %v1298
  %1906 = vmatpush1.bf16.msra.mxu0 %v1297
  %1907 = vmatprep.subr.bf16.mxu0 %v1302
  %1908 = vmatpush1.bf16.msra.mxu0 %v1301
  %1909 = vmatprep.subr.bf16.mxu0 %v1306
  %1910 = vmatpush1.bf16.msra.mxu0 %v1305
  %1911 = vmatprep.subr.bf16.mxu0 %v1310
  %1912 = vmatpush1.bf16.msra.mxu0 %v1309
  %1913 = vmatprep.subr.bf16.mxu0 %v1314
  %1914 = vmatpush1.bf16.msra.mxu0 %v1313
  %1915 = vmatprep.subr.bf16.mxu0 %v1318
  %1916 = vmatpush1.bf16.msra.mxu0 %v1317
  %1917 = vmatprep.mubr.bf16.mxu0 %v78
  %1918 = vmatmul.mubr.bf16.gmra.mrb[0].mxu0 %v77
  %v1919 = vpop.f32.mrb[0].mxu0
  %v1920 = vadd.f32 %v1879, %v1919
  %v1921 = vpop.f32.mrb[0].mxu0
  %v1922 = vadd.f32 %v1881, %v1921
  %v1923 = vpop.f32.mrb[0].mxu0
  %v1924 = vpop.f32.mrb[0].mxu0
  %1925 = vdwg.mxu0
  %1926 = vmatprep.subr.bf16.mxu0 %v1322
  %1927 = vmatpush1.bf16.msra.mxu0 %v1321
  %1928 = vmatprep.subr.bf16.mxu0 %v1326
  %1929 = vmatpush1.bf16.msra.mxu0 %v1325
  %1930 = vmatprep.subr.bf16.mxu0 %v1330
  %1931 = vmatpush1.bf16.msra.mxu0 %v1329
  %1932 = vmatprep.subr.bf16.mxu0 %v1334
  %1933 = vmatpush1.bf16.msra.mxu0 %v1333
  %1934 = vmatprep.subr.bf16.mxu0 %v1338
  %1935 = vmatpush1.bf16.msra.mxu0 %v1337
  %1936 = vmatprep.subr.bf16.mxu0 %v1342
  %1937 = vmatpush1.bf16.msra.mxu0 %v1341
  %1938 = vmatprep.subr.bf16.mxu0 %v1346
  %1939 = vmatpush1.bf16.msra.mxu0 %v1345
  %1940 = vmatprep.subr.bf16.mxu0 %v1350
  %1941 = vmatpush1.bf16.msra.mxu0 %v1349
  %1942 = vmatprep.subr.bf16.mxu0 %v1354
  %1943 = vmatpush1.bf16.msra.mxu0 %v1353
  %1944 = vmatprep.subr.bf16.mxu0 %v1358
  %1945 = vmatpush1.bf16.msra.mxu0 %v1357
  %1946 = vmatprep.subr.bf16.mxu0 %v1362
  %1947 = vmatpush1.bf16.msra.mxu0 %v1361
  %1948 = vmatprep.subr.bf16.mxu0 %v1366
  %1949 = vmatpush1.bf16.msra.mxu0 %v1365
  %1950 = vmatprep.subr.bf16.mxu0 %v1370
  %1951 = vmatpush1.bf16.msra.mxu0 %v1369
  %1952 = vmatprep.subr.bf16.mxu0 %v1374
  %1953 = vmatpush1.bf16.msra.mxu0 %v1373
  %1954 = vmatprep.subr.bf16.mxu0 %v1378
  %1955 = vmatpush1.bf16.msra.mxu0 %v1377
  %1956 = vmatprep.subr.bf16.mxu0 %v1382
  %1957 = vmatpush1.bf16.msra.mxu0 %v1381
  %1958 = vmatprep.mubr.bf16.mxu0 %v80
  %1959 = vmatmul.mubr.bf16.gmra.mrb[0].mxu0 %v79
  %v1960 = vpop.f32.mrb[0].mxu0
  %v1961 = vadd.f32 %v1920, %v1960
  %v1962 = vpop.f32.mrb[0].mxu0
  %v1963 = vadd.f32 %v1922, %v1962
  %v1964 = vpop.f32.mrb[0].mxu0
  %v1965 = vpop.f32.mrb[0].mxu0
  %1966 = vdwg.mxu0
  %v1967 = vmax.f32 %v1797, 0.0
  %v1968 = vmax.f32 %v1799, 0.0
  %v1969 = vmax.f32 %v1961, 0.0
  %v1970 = vmax.f32 %v1963, 0.0
  %v1971 = vpack.c.bf16 %v1967, %v1967
  %v1972 = vpack.c.bf16 %v1968, %v1968
  %v1973 = vpack.c.bf16 %v1969, %v1969
  %v1974 = vpack.c.bf16 %v1970, %v1970
  %v1975 = vld [vmem:[%s3] sm:$0xff]
  %v1976 = vld [vmem:[%s3 + $0x8] sm:$0xff]
  %v1977 = vld [vmem:[%s3 + $0x10] sm:$0xff]
  %v1978 = vld [vmem:[%s3 + $0x18] sm:$0xff]
  %v1979 = vld [vmem:[%s3 + $0x20] sm:$0xff]
  %v1980 = vld [vmem:[%s3 + $0x28] sm:$0xff]
  %v1981 = vld [vmem:[%s3 + $0x30] sm:$0xff]
  %v1982 = vld [vmem:[%s3 + $0x38] sm:$0xff]
  %v1983 = vld [vmem:[%s3 + $0x40] sm:$0xff]
  %v1984 = vld [vmem:[%s3 + $0x48] sm:$0xff]
  %v1985 = vld [vmem:[%s3 + $0x50] sm:$0xff]
  %v1986 = vld [vmem:[%s3 + $0x58] sm:$0xff]
  %v1987 = vld [vmem:[%s3 + $0x60] sm:$0xff]
  %v1988 = vld [vmem:[%s3 + $0x68] sm:$0xff]
  %v1989 = vld [vmem:[%s3 + $0x70] sm:$0xff]
  %v1990 = vld [vmem:[%s3 + $0x78] sm:$0xff]
  %v1991 = vld [vmem:[%s3 + $0x80] sm:$0xff]
  %v1992 = vld [vmem:[%s3 + $0x88] sm:$0xff]
  %v1993 = vld [vmem:[%s3 + $0x90] sm:$0xff]
  %v1994 = vld [vmem:[%s3 + $0x98] sm:$0xff]
  %v1995 = vld [vmem:[%s3 + $0xa0] sm:$0xff]
  %v1996 = vld [vmem:[%s3 + $0xa8] sm:$0xff]
  %v1997 = vld [vmem:[%s3 + $0xb0] sm:$0xff]
  %v1998 = vld [vmem:[%s3 + $0xb8] sm:$0xff]
  %v1999 = vld [vmem:[%s3 + $0xc0] sm:$0xff]
  %v2000 = vld [vmem:[%s3 + $0xc8] sm:$0xff]
  %v2001 = vld [vmem:[%s3 + $0xd0] sm:$0xff]
  %v2002 = vld [vmem:[%s3 + $0xd8] sm:$0xff]
  %v2003 = vld [vmem:[%s3 + $0xe0] sm:$0xff]
  %v2004 = vld [vmem:[%s3 + $0xe8] sm:$0xff]
  %v2005 = vld [vmem:[%s3 + $0xf0] sm:$0xff]
  %v2006 = vld [vmem:[%s3 + $0xf8] sm:$0xff]
  %v2007 = vld [vmem:[%s3 + $0x100] sm:$0xff]
  %v2008 = vld [vmem:[%s3 + $0x108] sm:$0xff]
  %v2009 = vld [vmem:[%s3 + $0x110] sm:$0xff]
  %v2010 = vld [vmem:[%s3 + $0x118] sm:$0xff]
  %v2011 = vld [vmem:[%s3 + $0x120] sm:$0xff]
  %v2012 = vld [vmem:[%s3 + $0x128] sm:$0xff]
  %v2013 = vld [vmem:[%s3 + $0x130] sm:$0xff]
  %v2014 = vld [vmem:[%s3 + $0x138] sm:$0xff]
  %v2015 = vld [vmem:[%s3 + $0x140] sm:$0xff]
  %v2016 = vld [vmem:[%s3 + $0x148] sm:$0xff]
  %v2017 = vld [vmem:[%s3 + $0x150] sm:$0xff]
  %v2018 = vld [vmem:[%s3 + $0x158] sm:$0xff]
  %v2019 = vld [vmem:[%s3 + $0x160] sm:$0xff]
  %v2020 = vld [vmem:[%s3 + $0x168] sm:$0xff]
  %v2021 = vld [vmem:[%s3 + $0x170] sm:$0xff]
  %v2022 = vld [vmem:[%s3 + $0x178] sm:$0xff]
  %v2023 = vld [vmem:[%s3 + $0x180] sm:$0xff]
  %v2024 = vld [vmem:[%s3 + $0x188] sm:$0xff]
  %v2025 = vld [vmem:[%s3 + $0x190] sm:$0xff]
  %v2026 = vld [vmem:[%s3 + $0x198] sm:$0xff]
  %v2027 = vld [vmem:[%s3 + $0x1a0] sm:$0xff]
  %v2028 = vld [vmem:[%s3 + $0x1a8] sm:$0xff]
  %v2029 = vld [vmem:[%s3 + $0x1b0] sm:$0xff]
  %v2030 = vld [vmem:[%s3 + $0x1b8] sm:$0xff]
  %v2031 = vld [vmem:[%s3 + $0x1c0] sm:$0xff]
  %v2032 = vld [vmem:[%s3 + $0x1c8] sm:$0xff]
  %v2033 = vld [vmem:[%s3 + $0x1d0] sm:$0xff]
  %v2034 = vld [vmem:[%s3 + $0x1d8] sm:$0xff]
  %v2035 = vld [vmem:[%s3 + $0x1e0] sm:$0xff]
  %v2036 = vld [vmem:[%s3 + $0x1e8] sm:$0xff]
  %v2037 = vld [vmem:[%s3 + $0x1f0] sm:$0xff]
  %v2038 = vld [vmem:[%s3 + $0x1f8] sm:$0xff]
  %v2039 = vld [vmem:[%s4] sm:$0x3]
  %v2041 = vlaneseq
  %v2042 = vshrl.u32 %v2041, 7
  %v2043 = vsub.s32 0, %v2042
  %v2044 = vrot.slane %v2039, %v2043
  %v2045 = vlaneseq
  %v2046 = vshrl.u32 %v2045, 7
  %v2047 = vsub.s32 1, %v2046
  %v2048 = vrot.slane %v2039, %v2047
  %v2115 = vunpack.c.l.b16 %v1975
  %v2116 = vunpack.c.h.b16 %v1975
  %v2117 = vunpack.c.l.b16 %v1976
  %v2118 = vunpack.c.h.b16 %v1976
  %v2119 = vunpack.c.l.b16 %v1977
  %v2120 = vunpack.c.h.b16 %v1977
  %v2121 = vunpack.c.l.b16 %v1978
  %v2122 = vunpack.c.h.b16 %v1978
  %v2123 = vunpack.c.l.b16 %v1979
  %v2124 = vunpack.c.h.b16 %v1979
  %v2125 = vunpack.c.l.b16 %v1980
  %v2126 = vunpack.c.h.b16 %v1980
  %v2127 = vunpack.c.l.b16 %v1981
  %v2128 = vunpack.c.h.b16 %v1981
  %v2129 = vunpack.c.l.b16 %v1982
  %v2130 = vunpack.c.h.b16 %v1982
  %v2131 = vunpack.c.l.b16 %v1983
  %v2132 = vunpack.c.h.b16 %v1983
  %v2133 = vunpack.c.l.b16 %v1984
  %v2134 = vunpack.c.h.b16 %v1984
  %v2135 = vunpack.c.l.b16 %v1985
  %v2136 = vunpack.c.h.b16 %v1985
  %v2137 = vunpack.c.l.b16 %v1986
  %v2138 = vunpack.c.h.b16 %v1986
  %v2139 = vunpack.c.l.b16 %v1987
  %v2140 = vunpack.c.h.b16 %v1987
  %v2141 = vunpack.c.l.b16 %v1988
  %v2142 = vunpack.c.h.b16 %v1988
  %v2143 = vunpack.c.l.b16 %v1989
  %v2144 = vunpack.c.h.b16 %v1989
  %v2145 = vunpack.c.l.b16 %v1990
  %v2146 = vunpack.c.h.b16 %v1990
  %v2147 = vunpack.c.l.b16 %v1991
  %v2148 = vunpack.c.h.b16 %v1991
  %v2149 = vunpack.c.l.b16 %v1992
  %v2150 = vunpack.c.h.b16 %v1992
  %v2151 = vunpack.c.l.b16 %v1993
  %v2152 = vunpack.c.h.b16 %v1993
  %v2153 = vunpack.c.l.b16 %v1994
  %v2154 = vunpack.c.h.b16 %v1994
  %v2155 = vunpack.c.l.b16 %v1995
  %v2156 = vunpack.c.h.b16 %v1995
  %v2157 = vunpack.c.l.b16 %v1996
  %v2158 = vunpack.c.h.b16 %v1996
  %v2159 = vunpack.c.l.b16 %v1997
  %v2160 = vunpack.c.h.b16 %v1997
  %v2161 = vunpack.c.l.b16 %v1998
  %v2162 = vunpack.c.h.b16 %v1998
  %v2163 = vunpack.c.l.b16 %v1999
  %v2164 = vunpack.c.h.b16 %v1999
  %v2165 = vunpack.c.l.b16 %v2000
  %v2166 = vunpack.c.h.b16 %v2000
  %v2167 = vunpack.c.l.b16 %v2001
  %v2168 = vunpack.c.h.b16 %v2001
  %v2169 = vunpack.c.l.b16 %v2002
  %v2170 = vunpack.c.h.b16 %v2002
  %v2171 = vunpack.c.l.b16 %v2003
  %v2172 = vunpack.c.h.b16 %v2003
  %v2173 = vunpack.c.l.b16 %v2004
  %v2174 = vunpack.c.h.b16 %v2004
  %v2175 = vunpack.c.l.b16 %v2005
  %v2176 = vunpack.c.h.b16 %v2005
  %v2177 = vunpack.c.l.b16 %v2006
  %v2178 = vunpack.c.h.b16 %v2006
  %v2179 = vunpack.c.l.b16 %v2007
  %v2180 = vunpack.c.h.b16 %v2007
  %v2181 = vunpack.c.l.b16 %v2008
  %v2182 = vunpack.c.h.b16 %v2008
  %v2183 = vunpack.c.l.b16 %v2009
  %v2184 = vunpack.c.h.b16 %v2009
  %v2185 = vunpack.c.l.b16 %v2010
  %v2186 = vunpack.c.h.b16 %v2010
  %v2187 = vunpack.c.l.b16 %v2011
  %v2188 = vunpack.c.h.b16 %v2011
  %v2189 = vunpack.c.l.b16 %v2012
  %v2190 = vunpack.c.h.b16 %v2012
  %v2191 = vunpack.c.l.b16 %v2013
  %v2192 = vunpack.c.h.b16 %v2013
  %v2193 = vunpack.c.l.b16 %v2014
  %v2194 = vunpack.c.h.b16 %v2014
  %v2195 = vunpack.c.l.b16 %v2015
  %v2196 = vunpack.c.h.b16 %v2015
  %v2197 = vunpack.c.l.b16 %v2016
  %v2198 = vunpack.c.h.b16 %v2016
  %v2199 = vunpack.c.l.b16 %v2017
  %v2200 = vunpack.c.h.b16 %v2017
  %v2201 = vunpack.c.l.b16 %v2018
  %v2202 = vunpack.c.h.b16 %v2018
  %v2203 = vunpack.c.l.b16 %v2019
  %v2204 = vunpack.c.h.b16 %v2019
  %v2205 = vunpack.c.l.b16 %v2020
  %v2206 = vunpack.c.h.b16 %v2020
  %v2207 = vunpack.c.l.b16 %v2021
  %v2208 = vunpack.c.h.b16 %v2021
  %v2209 = vunpack.c.l.b16 %v2022
  %v2210 = vunpack.c.h.b16 %v2022
  %v2211 = vunpack.c.l.b16 %v2023
  %v2212 = vunpack.c.h.b16 %v2023
  %v2213 = vunpack.c.l.b16 %v2024
  %v2214 = vunpack.c.h.b16 %v2024
  %v2215 = vunpack.c.l.b16 %v2025
  %v2216 = vunpack.c.h.b16 %v2025
  %v2217 = vunpack.c.l.b16 %v2026
  %v2218 = vunpack.c.h.b16 %v2026
  %v2219 = vunpack.c.l.b16 %v2027
  %v2220 = vunpack.c.h.b16 %v2027
  %v2221 = vunpack.c.l.b16 %v2028
  %v2222 = vunpack.c.h.b16 %v2028
  %v2223 = vunpack.c.l.b16 %v2029
  %v2224 = vunpack.c.h.b16 %v2029
  %v2225 = vunpack.c.l.b16 %v2030
  %v2226 = vunpack.c.h.b16 %v2030
  %v2227 = vunpack.c.l.b16 %v2031
  %v2228 = vunpack.c.h.b16 %v2031
  %v2229 = vunpack.c.l.b16 %v2032
  %v2230 = vunpack.c.h.b16 %v2032
  %v2231 = vunpack.c.l.b16 %v2033
  %v2232 = vunpack.c.h.b16 %v2033
  %v2233 = vunpack.c.l.b16 %v2034
  %v2234 = vunpack.c.h.b16 %v2034
  %v2235 = vunpack.c.l.b16 %v2035
  %v2236 = vunpack.c.h.b16 %v2035
  %v2237 = vunpack.c.l.b16 %v2036
  %v2238 = vunpack.c.h.b16 %v2036
  %v2239 = vunpack.c.l.b16 %v2037
  %v2240 = vunpack.c.h.b16 %v2037
  %v2241 = vunpack.c.l.b16 %v2038
  %v2242 = vunpack.c.h.b16 %v2038
  %v2243 = vpack.c.b16 %v2117, %v2115
  %v2244 = vpack.c.b16 %v2118, %v2116
  %v2245 = vpack.c.b16 %v2121, %v2119
  %v2246 = vpack.c.b16 %v2122, %v2120
  %v2247 = vpack.c.b16 %v2125, %v2123
  %v2248 = vpack.c.b16 %v2126, %v2124
  %v2249 = vpack.c.b16 %v2129, %v2127
  %v2250 = vpack.c.b16 %v2130, %v2128
  %v2251 = vpack.c.b16 %v2133, %v2131
  %v2252 = vpack.c.b16 %v2134, %v2132
  %v2253 = vpack.c.b16 %v2137, %v2135
  %v2254 = vpack.c.b16 %v2138, %v2136
  %v2255 = vpack.c.b16 %v2141, %v2139
  %v2256 = vpack.c.b16 %v2142, %v2140
  %v2257 = vpack.c.b16 %v2145, %v2143
  %v2258 = vpack.c.b16 %v2146, %v2144
  %v2259 = vpack.c.b16 %v2149, %v2147
  %v2260 = vpack.c.b16 %v2150, %v2148
  %v2261 = vpack.c.b16 %v2153, %v2151
  %v2262 = vpack.c.b16 %v2154, %v2152
  %v2263 = vpack.c.b16 %v2157, %v2155
  %v2264 = vpack.c.b16 %v2158, %v2156
  %v2265 = vpack.c.b16 %v2161, %v2159
  %v2266 = vpack.c.b16 %v2162, %v2160
  %v2267 = vpack.c.b16 %v2165, %v2163
  %v2268 = vpack.c.b16 %v2166, %v2164
  %v2269 = vpack.c.b16 %v2169, %v2167
  %v2270 = vpack.c.b16 %v2170, %v2168
  %v2271 = vpack.c.b16 %v2173, %v2171
  %v2272 = vpack.c.b16 %v2174, %v2172
  %v2273 = vpack.c.b16 %v2177, %v2175
  %v2274 = vpack.c.b16 %v2178, %v2176
  %v2275 = vpack.c.b16 %v2181, %v2179
  %v2276 = vpack.c.b16 %v2182, %v2180
  %v2277 = vpack.c.b16 %v2185, %v2183
  %v2278 = vpack.c.b16 %v2186, %v2184
  %v2279 = vpack.c.b16 %v2189, %v2187
  %v2280 = vpack.c.b16 %v2190, %v2188
  %v2281 = vpack.c.b16 %v2193, %v2191
  %v2282 = vpack.c.b16 %v2194, %v2192
  %v2283 = vpack.c.b16 %v2197, %v2195
  %v2284 = vpack.c.b16 %v2198, %v2196
  %v2285 = vpack.c.b16 %v2201, %v2199
  %v2286 = vpack.c.b16 %v2202, %v2200
  %v2287 = vpack.c.b16 %v2205, %v2203
  %v2288 = vpack.c.b16 %v2206, %v2204
  %v2289 = vpack.c.b16 %v2209, %v2207
  %v2290 = vpack.c.b16 %v2210, %v2208
  %v2291 = vpack.c.b16 %v2213, %v2211
  %v2292 = vpack.c.b16 %v2214, %v2212
  %v2293 = vpack.c.b16 %v2217, %v2215
  %v2294 = vpack.c.b16 %v2218, %v2216
  %v2295 = vpack.c.b16 %v2221, %v2219
  %v2296 = vpack.c.b16 %v2222, %v2220
  %v2297 = vpack.c.b16 %v2225, %v2223
  %v2298 = vpack.c.b16 %v2226, %v2224
  %v2299 = vpack.c.b16 %v2229, %v2227
  %v2300 = vpack.c.b16 %v2230, %v2228
  %v2301 = vpack.c.b16 %v2233, %v2231
  %v2302 = vpack.c.b16 %v2234, %v2232
  %v2303 = vpack.c.b16 %v2237, %v2235
  %v2304 = vpack.c.b16 %v2238, %v2236
  %v2305 = vpack.c.b16 %v2241, %v2239
  %v2306 = vpack.c.b16 %v2242, %v2240
  %2371 = vmatprep.subr.bf16.mxu0 %v2244
  %2372 = vmatpush1.bf16.msra.mxu0 %v2243
  %2373 = vmatprep.subr.bf16.mxu0 %v2246
  %2374 = vmatpush1.bf16.msra.mxu0 %v2245
  %2375 = vmatprep.subr.bf16.mxu0 %v2248
  %2376 = vmatpush1.bf16.msra.mxu0 %v2247
  %2377 = vmatprep.subr.bf16.mxu0 %v2250
  %2378 = vmatpush1.bf16.msra.mxu0 %v2249
  %2379 = vmatprep.subr.bf16.mxu0 %v2252
  %2380 = vmatpush1.bf16.msra.mxu0 %v2251
  %2381 = vmatprep.subr.bf16.mxu0 %v2254
  %2382 = vmatpush1.bf16.msra.mxu0 %v2253
  %2383 = vmatprep.subr.bf16.mxu0 %v2256
  %2384 = vmatpush1.bf16.msra.mxu0 %v2255
  %2385 = vmatprep.subr.bf16.mxu0 %v2258
  %2386 = vmatpush1.bf16.msra.mxu0 %v2257
  %2387 = vmatprep.subr.bf16.mxu0 %v2260
  %2388 = vmatpush1.bf16.msra.mxu0 %v2259
  %2389 = vmatprep.subr.bf16.mxu0 %v2262
  %2390 = vmatpush1.bf16.msra.mxu0 %v2261
  %2391 = vmatprep.subr.bf16.mxu0 %v2264
  %2392 = vmatpush1.bf16.msra.mxu0 %v2263
  %2393 = vmatprep.subr.bf16.mxu0 %v2266
  %2394 = vmatpush1.bf16.msra.mxu0 %v2265
  %2395 = vmatprep.subr.bf16.mxu0 %v2268
  %2396 = vmatpush1.bf16.msra.mxu0 %v2267
  %2397 = vmatprep.subr.bf16.mxu0 %v2270
  %2398 = vmatpush1.bf16.msra.mxu0 %v2269
  %2399 = vmatprep.subr.bf16.mxu0 %v2272
  %2400 = vmatpush1.bf16.msra.mxu0 %v2271
  %2401 = vmatprep.subr.bf16.mxu0 %v2274
  %2402 = vmatpush1.bf16.msra.mxu0 %v2273
  %2403 = vmatprep.mubr.bf16.mxu0 %v1972
  %2404 = vmatmul.mubr.bf16.gmra.mrb[0].mxu0 %v1971
  %v2405 = vpop.f32.mrb[0].mxu0
  %v2406 = vadd.f32 %v2044, %v2405
  %v2407 = vpop.f32.mrb[0].mxu0
  %v2408 = vadd.f32 %v2048, %v2407
  %v2409 = vpop.f32.mrb[0].mxu0
  %v2410 = vpop.f32.mrb[0].mxu0
  %2411 = vdwg.mxu0
  %2412 = vmatprep.subr.bf16.mxu0 %v2276
  %2413 = vmatpush1.bf16.msra.mxu0 %v2275
  %2414 = vmatprep.subr.bf16.mxu0 %v2278
  %2415 = vmatpush1.bf16.msra.mxu0 %v2277
  %2416 = vmatprep.subr.bf16.mxu0 %v2280
  %2417 = vmatpush1.bf16.msra.mxu0 %v2279
  %2418 = vmatprep.subr.bf16.mxu0 %v2282
  %2419 = vmatpush1.bf16.msra.mxu0 %v2281
  %2420 = vmatprep.subr.bf16.mxu0 %v2284
  %2421 = vmatpush1.bf16.msra.mxu0 %v2283
  %2422 = vmatprep.subr.bf16.mxu0 %v2286
  %2423 = vmatpush1.bf16.msra.mxu0 %v2285
  %2424 = vmatprep.subr.bf16.mxu0 %v2288
  %2425 = vmatpush1.bf16.msra.mxu0 %v2287
  %2426 = vmatprep.subr.bf16.mxu0 %v2290
  %2427 = vmatpush1.bf16.msra.mxu0 %v2289
  %2428 = vmatprep.subr.bf16.mxu0 %v2292
  %2429 = vmatpush1.bf16.msra.mxu0 %v2291
  %2430 = vmatprep.subr.bf16.mxu0 %v2294
  %2431 = vmatpush1.bf16.msra.mxu0 %v2293
  %2432 = vmatprep.subr.bf16.mxu0 %v2296
  %2433 = vmatpush1.bf16.msra.mxu0 %v2295
  %2434 = vmatprep.subr.bf16.mxu0 %v2298
  %2435 = vmatpush1.bf16.msra.mxu0 %v2297
  %2436 = vmatprep.subr.bf16.mxu0 %v2300
  %2437 = vmatpush1.bf16.msra.mxu0 %v2299
  %2438 = vmatprep.subr.bf16.mxu0 %v2302
  %2439 = vmatpush1.bf16.msra.mxu0 %v2301
  %2440 = vmatprep.subr.bf16.mxu0 %v2304
  %2441 = vmatpush1.bf16.msra.mxu0 %v2303
  %2442 = vmatprep.subr.bf16.mxu0 %v2306
  %2443 = vmatpush1.bf16.msra.mxu0 %v2305
  %2444 = vmatprep.mubr.bf16.mxu0 %v1974
  %2445 = vmatmul.mubr.bf16.gmra.mrb[0].mxu0 %v1973
  %v2446 = vpop.f32.mrb[0].mxu0
  %v2447 = vadd.f32 %v2406, %v2446
  %v2448 = vpop.f32.mrb[0].mxu0
  %v2449 = vadd.f32 %v2408, %v2448
  %v2450 = vpop.f32.mrb[0].mxu0
  %v2451 = vpop.f32.mrb[0].mxu0
  %2452 = vdwg.mxu0
  %v2453 = vmax.f32 %v2447, 0.0
  %v2454 = vmax.f32 %v2449, 0.0
  %v2455 = vpack.c.bf16 %v2453, %v2453
  %v2456 = vpack.c.bf16 %v2454, %v2454
  %v2457 = vld [vmem:[%s5] sm:$0xf]
  %v2458 = vld [vmem:[%s5 + $0x4] sm:$0xf]
  %v2459 = vld [vmem:[%s5 + $0x8] sm:$0xf]
  %v2460 = vld [vmem:[%s5 + $0xc] sm:$0xf]
  %v2461 = vld [vmem:[%s5 + $0x10] sm:$0xf]
  %v2462 = vld [vmem:[%s5 + $0x14] sm:$0xf]
  %v2463 = vld [vmem:[%s5 + $0x18] sm:$0xf]
  %v2464 = vld [vmem:[%s5 + $0x1c] sm:$0xf]
  %v2465 = vld [vmem:[%s5 + $0x20] sm:$0xf]
  %v2466 = vld [vmem:[%s5 + $0x24] sm:$0xf]
  %v2467 = vld [vmem:[%s5 + $0x28] sm:$0xf]
  %v2468 = vld [vmem:[%s5 + $0x2c] sm:$0xf]
  %v2469 = vld [vmem:[%s5 + $0x30] sm:$0xf]
  %v2470 = vld [vmem:[%s5 + $0x34] sm:$0xf]
  %v2471 = vld [vmem:[%s5 + $0x38] sm:$0xf]
  %v2472 = vld [vmem:[%s5 + $0x3c] sm:$0xf]
  %v2473 = vld [vmem:[%s5 + $0x40] sm:$0xf]
  %v2474 = vld [vmem:[%s5 + $0x44] sm:$0xf]
  %v2475 = vld [vmem:[%s5 + $0x48] sm:$0xf]
  %v2476 = vld [vmem:[%s5 + $0x4c] sm:$0xf]
  %v2477 = vld [vmem:[%s5 + $0x50] sm:$0xf]
  %v2478 = vld [vmem:[%s5 + $0x54] sm:$0xf]
  %v2479 = vld [vmem:[%s5 + $0x58] sm:$0xf]
  %v2480 = vld [vmem:[%s5 + $0x5c] sm:$0xf]
  %v2481 = vld [vmem:[%s5 + $0x60] sm:$0xf]
  %v2482 = vld [vmem:[%s5 + $0x64] sm:$0xf]
  %v2483 = vld [vmem:[%s5 + $0x68] sm:$0xf]
  %v2484 = vld [vmem:[%s5 + $0x6c] sm:$0xf]
  %v2485 = vld [vmem:[%s5 + $0x70] sm:$0xf]
  %v2486 = vld [vmem:[%s5 + $0x74] sm:$0xf]
  %v2487 = vld [vmem:[%s5 + $0x78] sm:$0xf]
  %v2488 = vld [vmem:[%s5 + $0x7c] sm:$0xf]
  %v2489 = vld [vmem:[%s6] sm:$0x1]
  %v2491 = vlaneseq
  %v2492 = vshrl.u32 %v2491, 7
  %v2493 = vsub.s32 0, %v2492
  %v2494 = vrot.slane %v2489, %v2493
  %v2528 = vunpack.c.l.b16 %v2457
  %v2529 = vunpack.c.l.b16 %v2458
  %v2530 = vunpack.c.l.b16 %v2459
  %v2531 = vunpack.c.l.b16 %v2460
  %v2532 = vunpack.c.l.b16 %v2461
  %v2533 = vunpack.c.l.b16 %v2462
  %v2534 = vunpack.c.l.b16 %v2463
  %v2535 = vunpack.c.l.b16 %v2464
  %v2536 = vunpack.c.l.b16 %v2465
  %v2537 = vunpack.c.l.b16 %v2466
  %v2538 = vunpack.c.l.b16 %v2467
  %v2539 = vunpack.c.l.b16 %v2468
  %v2540 = vunpack.c.l.b16 %v2469
  %v2541 = vunpack.c.l.b16 %v2470
  %v2542 = vunpack.c.l.b16 %v2471
  %v2543 = vunpack.c.l.b16 %v2472
  %v2544 = vunpack.c.l.b16 %v2473
  %v2545 = vunpack.c.l.b16 %v2474
  %v2546 = vunpack.c.l.b16 %v2475
  %v2547 = vunpack.c.l.b16 %v2476
  %v2548 = vunpack.c.l.b16 %v2477
  %v2549 = vunpack.c.l.b16 %v2478
  %v2550 = vunpack.c.l.b16 %v2479
  %v2551 = vunpack.c.l.b16 %v2480
  %v2552 = vunpack.c.l.b16 %v2481
  %v2553 = vunpack.c.l.b16 %v2482
  %v2554 = vunpack.c.l.b16 %v2483
  %v2555 = vunpack.c.l.b16 %v2484
  %v2556 = vunpack.c.l.b16 %v2485
  %v2557 = vunpack.c.l.b16 %v2486
  %v2558 = vunpack.c.l.b16 %v2487
  %v2559 = vunpack.c.l.b16 %v2488
  %v2560 = vpack.c.b16 %v2529, %v2528
  %v2561 = vpack.c.b16 %v2531, %v2530
  %v2562 = vpack.c.b16 %v2533, %v2532
  %v2563 = vpack.c.b16 %v2535, %v2534
  %v2564 = vpack.c.b16 %v2537, %v2536
  %v2565 = vpack.c.b16 %v2539, %v2538
  %v2566 = vpack.c.b16 %v2541, %v2540
  %v2567 = vpack.c.b16 %v2543, %v2542
  %v2568 = vpack.c.b16 %v2545, %v2544
  %v2569 = vpack.c.b16 %v2547, %v2546
  %v2570 = vpack.c.b16 %v2549, %v2548
  %v2571 = vpack.c.b16 %v2551, %v2550
  %v2572 = vpack.c.b16 %v2553, %v2552
  %v2573 = vpack.c.b16 %v2555, %v2554
  %v2574 = vpack.c.b16 %v2557, %v2556
  %v2575 = vpack.c.b16 %v2559, %v2558
  %2592 = vmatprep.subr.bf16.mxu0 0
  %2593 = vmatpush1.bf16.msra.mxu0 %v2560
  %2594 = vmatprep.subr.bf16.mxu0 0
  %2595 = vmatpush1.bf16.msra.mxu0 %v2561
  %2596 = vmatprep.subr.bf16.mxu0 0
  %2597 = vmatpush1.bf16.msra.mxu0 %v2562
  %2598 = vmatprep.subr.bf16.mxu0 0
  %2599 = vmatpush1.bf16.msra.mxu0 %v2563
  %2600 = vmatprep.subr.bf16.mxu0 0
  %2601 = vmatpush1.bf16.msra.mxu0 %v2564
  %2602 = vmatprep.subr.bf16.mxu0 0
  %2603 = vmatpush1.bf16.msra.mxu0 %v2565
  %2604 = vmatprep.subr.bf16.mxu0 0
  %2605 = vmatpush1.bf16.msra.mxu0 %v2566
  %2606 = vmatprep.subr.bf16.mxu0 0
  %2607 = vmatpush1.bf16.msra.mxu0 %v2567
  %2608 = vmatprep.subr.bf16.mxu0 0
  %2609 = vmatpush1.bf16.msra.mxu0 %v2568
  %2610 = vmatprep.subr.bf16.mxu0 0
  %2611 = vmatpush1.bf16.msra.mxu0 %v2569
  %2612 = vmatprep.subr.bf16.mxu0 0
  %2613 = vmatpush1.bf16.msra.mxu0 %v2570
  %2614 = vmatprep.subr.bf16.mxu0 0
  %2615 = vmatpush1.bf16.msra.mxu0 %v2571
  %2616 = vmatprep.subr.bf16.mxu0 0
  %2617 = vmatpush1.bf16.msra.mxu0 %v2572
  %2618 = vmatprep.subr.bf16.mxu0 0
  %2619 = vmatpush1.bf16.msra.mxu0 %v2573
  %2620 = vmatprep.subr.bf16.mxu0 0
  %2621 = vmatpush1.bf16.msra.mxu0 %v2574
  %2622 = vmatprep.subr.bf16.mxu0 0
  %2623 = vmatpush1.bf16.msra.mxu0 %v2575
  %2624 = vmatprep.mubr.bf16.mxu0 %v2456
  %2625 = vmatmul.mubr.bf16.gmra.mrb[0].mxu0 %v2455
  %v2626 = vpop.f32.mrb[0].mxu0
  %v2627 = vadd.f32 %v2494, %v2626
  %v2628 = vpop.f32.mrb[0].mxu0
  %v2629 = vpop.f32.mrb[0].mxu0
  %v2630 = vpop.f32.mrb[0].mxu0
  %2631 = vdwg.mxu0
  %vm2632 = vcmask 517120
  %2633 = vst.msk [vmem:[%s7] sm:$0x3] %vm2632, %v2627
  // Predicated region
  $region30: #{alignment_forward.4} parent=0 // pred_check
    _
  $region31: #{alignment_forward.4} parent=0 // pred_check_branch
    %2635 = sbr.rel (0) target = $region33
  $region32: #{alignment_forward.4} parent=0 // pred_region
    _
  $region33: #{alignment_forward.4} parent=0 // pred_fallthru
    _
  // Predicated region
  $region34: #{alignment_forward.4} parent=0 // pred_check
    _
  $region35: #{alignment_forward.4} parent=0 // pred_check_branch
    %2637 = sbr.rel (0) target = $region37
  $region36: #{alignment_forward.4} parent=0 // pred_region
    _
  $region37: #{alignment_forward.4} parent=0 // pred_fallthru
    _

</llo_original>
